<compile_context>
chip_gen: v6e
topology: v6e:2x2x1
jax: 0.10.0
libtpu: 0.0.40
codegen_flags: <defaults>
</compile_context>

<pallas_src>
import functools

import jax
import jax.numpy as jnp
from jax import lax
from jax.experimental import pallas as pl
from jax.experimental.pallas import tpu as pltpu


def attention_kernel(q_ref, c_ref, win_t_ref, wmix_t_ref, wq_t_ref, out_ref, attw_ref,
                     *, precision):
    rows, D = q_ref.shape          # rows = Bt * O (flattened batch x output_len)
    Bt, Q, _ = c_ref.shape
    O = rows // Bt
    mm_dtype = win_t_ref.dtype     # bf16 when use_bf16, else f32

    # ---- linear_in (general attention): qg = q @ W_in.T as one (rows, D) x (D, D) pass.
    qg2 = jnp.dot(q_ref[...], win_t_ref[...],
                  preferred_element_type=jnp.float32, precision=precision)   # (rows, D) f32

    # ---- hoisted half of linear_out: qg @ W_q.T.  Computing it here keeps only its
    #      result live through softmax / the batched matmuls (shorter qg live range).
    outq2 = jnp.dot(qg2.astype(mm_dtype), wq_t_ref[...],
                    preferred_element_type=jnp.float32, precision=precision)  # (rows, D) f32

    # ---- attention scores: qg @ ctx^T, contraction on last dims (no in-kernel transpose).
    ctx = c_ref[...]                                                          # (Bt, Q, D)
    qg3 = qg2.reshape(Bt, O, D).astype(mm_dtype)
    scores = lax.dot_general(
        qg3, ctx,
        dimension_numbers=(((2,), (2,)), ((0,), (0,))),
        preferred_element_type=jnp.float32, precision=precision,
    )                                                                         # (Bt, O, Q) f32

    # ---- softmax over Q (all element-wise math in f32).  Exact division: the weights
    #      are an exported output, so no approximate reciprocal here.
    m = jnp.max(scores, axis=-1, keepdims=True)
    e = jnp.exp(scores - m)
    w = e / jnp.sum(e, axis=-1, keepdims=True)                                # (Bt, O, Q) f32

    # ---- mix = w @ ctx (batched, contraction over Q).
    mix = lax.dot_general(
        w.astype(mm_dtype), ctx,
        dimension_numbers=(((2,), (1,)), ((0,), (0,))),
        preferred_element_type=jnp.float32, precision=precision,
    )                                                                         # (Bt, O, D) f32

    # ---- linear_out on concat(mix, qg) == mix @ W_mix.T + qg @ W_q.T, then tanh.
    out2 = jnp.tanh(
        jnp.dot(mix.reshape(rows, D).astype(mm_dtype), wmix_t_ref[...],
                preferred_element_type=jnp.float32, precision=precision)
        + outq2
    )                                                                         # (rows, D) f32

    out_ref[...] = out2.astype(out_ref.dtype)
    attw_ref[...] = w.reshape(rows, Q).astype(attw_ref.dtype)


def _vmem_capacity_bytes():
    """Per-core VMEM capacity; conservative 64 MiB (v7x per-TC) fallback off-TPU."""
    try:
        if jax.devices()[0].platform == "tpu":
            return int(pltpu.get_tpu_info().vmem_capacity_bytes)
    except Exception:
        pass
    return 64 * 1024 * 1024


def _pick_batch_tile(B, O, Q, D, in_itemsize, out_itemsize, use_bf16, vmem_budget_bytes):
    """Largest divisor of B whose per-step VMEM footprint fits the budget.

    - Keeps the grid >= 2 when possible (v7x has 2 TensorCores; a 1-step grid also has
      no DMA/compute overlap).
    - Keeps Bt*O a multiple of the sublane packing (8 rows f32 / 16 rows bf16) so the
      flattened (Bt*O, D) blocks are layout-legal and dense.
    - Prefers Bt*O multiples of 128 so the dense (Bt*O, D) x (D, D) linears fill MXU rows.
    - Counts double-buffered blocks, single-buffered weights and f32 intermediates.
    """
    sub = 16 if use_bf16 else 8

    def fits(bt):
        rows = bt * O
        blocked = 2 * (rows * D * in_itemsize        # query block (double-buffered)
                       + bt * Q * D * in_itemsize    # context block
                       + rows * D * out_itemsize     # output block
                       + rows * Q * 4)               # attention-weight block (f32)
        weights = 3 * D * D * in_itemsize            # grid-invariant, single-buffered
        interm = 4 * rows * (3 * D + 3 * Q)          # f32 qg/outq/mix + scores/e/w
        return blocked + weights + interm <= vmem_budget_bytes

    max_bt = B if B == 1 else B // 2                 # grid >= 2 (v7x dual-TC, pipelining)
    divisors = [bt for bt in range(max_bt, 0, -1)
                if B % bt == 0 and (bt * O) % sub == 0]
    for bt in divisors:                              # prefer MXU-row-filling tiles
        if (bt * O) % 128 == 0 and fits(bt):
            return bt
    for bt in divisors:                              # else largest that fits the budget
        if fits(bt):
            return bt
    # Pathological shapes: smallest legal tile, else full-extent blocks (always legal).
    return 1 if (O % sub) == 0 else B


@functools.partial(jax.jit, static_argnames=("use_bf16",))
def attention_forward(query, context, w_in, w_out, use_bf16=True):
    """query: (B, O, D), context: (B, Q, D), w_in: (D, D), w_out: (D, 2D)."""
    B, O, D = query.shape
    Q = context.shape[1]

    # Pre-transpose weights once in the wrapper (layout plumbing in HBM, no in-kernel XLU).
    w_in_t = jnp.transpose(w_in)            # (D, D): x @ w_in_t == x @ W_in.T
    w_mix_t = jnp.transpose(w_out[:, :D])   # (D, D)
    w_q_t = jnp.transpose(w_out[:, D:])     # (D, D)

    if use_bf16:
        # bf16 MXU inputs pay on every generation (v5e/v6e/v7x): the kernel is
        # memory-bound, so halving q/ctx/weight DMA bytes dominates; accumulation and
        # all element-wise math stay f32.
        query_k = query.astype(jnp.bfloat16)
        context_k = context.astype(jnp.bfloat16)
        w_in_t = w_in_t.astype(jnp.bfloat16)
        w_mix_t = w_mix_t.astype(jnp.bfloat16)
        w_q_t = w_q_t.astype(jnp.bfloat16)
        precision = None                      # single bf16 MXU pass
    else:
        query_k, context_k = query, context
        precision = lax.Precision.HIGHEST     # reference-accuracy f32 path

    # Flatten (B, O) -> rows so query/output/weight blocks are dense 2D slabs.
    query2 = query_k.reshape(B * O, D)

    capacity = _vmem_capacity_bytes()
    budget = min(int(capacity * 0.4), 48 * 1024 * 1024)   # ~48 MiB on v5e/v6e, ~25 MiB on v7x
    vmem_limit = int(min(capacity, max(2 * budget, 32 * 1024 * 1024)))

    Bt = _pick_batch_tile(
        B, O, Q, D,
        in_itemsize=jnp.dtype(query_k.dtype).itemsize,
        out_itemsize=jnp.dtype(query.dtype).itemsize,
        use_bf16=use_bf16,
        vmem_budget_bytes=budget,
    )
    rows = Bt * O

    out_shapes = (
        jax.ShapeDtypeStruct((B * O, D), query.dtype),
        jax.ShapeDtypeStruct((B * O, Q), jnp.float32),
    )

    grid_spec = pltpu.PrefetchScalarGridSpec(
        num_scalar_prefetch=0,
        grid=(B // Bt,),
        in_specs=[
            pl.BlockSpec((rows, D), lambda b: (b, 0)),       # query tile (flattened rows)
            pl.BlockSpec((Bt, Q, D), lambda b: (b, 0, 0)),   # context tile
            # Grid-invariant weights: whole-array VMEM residents (single-buffered, one copy-in).
            pl.BlockSpec(memory_space=pltpu.MemorySpace.VMEM),   # W_in^T
            pl.BlockSpec(memory_space=pltpu.MemorySpace.VMEM),   # W_mix^T
            pl.BlockSpec(memory_space=pltpu.MemorySpace.VMEM),   # W_q^T
        ],
        out_specs=[
            pl.BlockSpec((rows, D), lambda b: (b, 0)),       # output (flattened rows)
            pl.BlockSpec((rows, Q), lambda b: (b, 0)),       # attention weights (flattened rows)
        ],
    )

    out2, attw2 = pl.pallas_call(
        functools.partial(attention_kernel, precision=precision),
        out_shape=out_shapes,
        grid_spec=grid_spec,
        compiler_params=pltpu.CompilerParams(
            dimension_semantics=("parallel",),
            vmem_limit_bytes=vmem_limit,
        ),
    )(query2, context_k, w_in_t, w_mix_t, w_q_t)

    return out2.reshape(B, O, D), attw2.reshape(B, O, Q)


def attention_reference(query, context, w_in, w_out):
    """Pure-JAX reference mirroring the PyTorch forward (f32, highest precision)."""
    hp = lax.Precision.HIGHEST
    qg = jnp.einsum("bod,ed->boe", query, w_in, precision=hp)                 # linear_in
    scores = jnp.einsum("bod,bqd->boq", qg, context, precision=hp)
    w = jax.nn.softmax(scores, axis=-1)
    mix = jnp.einsum("boq,bqd->bod", w, context, precision=hp)
    combined = jnp.concatenate([mix, qg], axis=-1)
    out = jnp.tanh(jnp.einsum("boc,dc->bod", combined, w_out, precision=hp))  # linear_out
    return out, w


if __name__ == "__main__":
    # Small but lane-dense shapes: dimensions D = 128, query_len Q = 128, output_len O = 8.
    B, O, Q, D = 4, 8, 128, 128

    key = jax.random.PRNGKey(0)
    k_q, k_c, k_win, k_wout = jax.random.split(key, 4)

    query = jax.random.normal(k_q, (B, O, D), dtype=jnp.float32)
    context = jax.random.normal(k_c, (B, Q, D), dtype=jnp.float32)
    # Deterministic parameter init (shapes match nn.Linear(D, D) and nn.Linear(2D, D), no bias).
    w_in = jax.random.uniform(k_win, (D, D), dtype=jnp.float32,
                              minval=-1.0 / jnp.sqrt(D), maxval=1.0 / jnp.sqrt(D))
    w_out = jax.random.uniform(k_wout, (D, 2 * D), dtype=jnp.float32,
                               minval=-1.0 / jnp.sqrt(2 * D), maxval=1.0 / jnp.sqrt(2 * D))

    ref_out, ref_w = attention_reference(query, context, w_in, w_out)

    # ---- f32 reference-accuracy path.
    out, weights = attention_forward(query, context, w_in, w_out, use_bf16=False)
    out = jax.block_until_ready(out)
    weights = jax.block_until_ready(weights)

    assert out.shape == (B, O, D)
    assert weights.shape == (B, O, Q)
    assert jnp.allclose(out, ref_out, atol=2e-3, rtol=2e-3), "output mismatch (f32 path)"
    assert jnp.allclose(weights, ref_w, atol=2e-3, rtol=2e-3), "attention-weight mismatch (f32 path)"
    assert jnp.allclose(jnp.sum(weights, axis=-1), 1.0, atol=1e-4), "softmax not normalized"

    # ---- bf16 MXU-input path (the performance default): validate with a loose tolerance,
    #      since the scores feeding the softmax are computed from bf16-rounded inputs.
    out_bf, w_bf = attention_forward(query, context, w_in, w_out, use_bf16=True)
    out_bf = jax.block_until_ready(out_bf)
    w_bf = jax.block_until_ready(w_bf)

    assert out_bf.shape == (B, O, D)
    assert w_bf.shape == (B, O, Q)
    assert jnp.allclose(out_bf, ref_out, atol=1e-1, rtol=1e-1), "output mismatch (bf16 path)"
    assert jnp.allclose(w_bf, ref_w, atol=1e-1, rtol=1e-1), "attention-weight mismatch (bf16 path)"
    assert jnp.allclose(jnp.sum(w_bf, axis=-1), 1.0, atol=1e-3), "softmax not normalized (bf16 path)"

    print("KERNEL_OK")
</pallas_src>

<mosaic_0001>
module attributes {stable_mosaic.version = 11 : i64} {
  func.func @attention_kernel(%arg0: i32, %arg1: memref<16x128xf32, #tpu.memory_space<vmem>>, %arg2: memref<2x128x128xf32, #tpu.memory_space<vmem>>, %arg3: memref<128x128xf32, #tpu.memory_space<vmem>>, %arg4: memref<128x128xf32, #tpu.memory_space<vmem>>, %arg5: memref<128x128xf32, #tpu.memory_space<vmem>>, %arg6: memref<16x128xf32, #tpu.memory_space<vmem>>, %arg7: memref<16x128xf32, #tpu.memory_space<vmem>>) attributes {dimension_semantics = [#tpu.dimension_semantics<parallel>], iteration_bounds = array<i64: 2>, scalar_prefetch = 0 : i64, scratch_operands = 0 : i64, tpu.core_type = #tpu.core_type<tc>, window_params = [{transform_indices = @transform_0, window_bounds = array<i64: 16, 128>}, {transform_indices = @transform_1, window_bounds = array<i64: 2, 128, 128>}, {pipeline_mode = #tpu.pipeline_mode<synchronous>, transform_indices = @transform_2, window_bounds = array<i64: 128, 128>}, {pipeline_mode = #tpu.pipeline_mode<synchronous>, transform_indices = @transform_3, window_bounds = array<i64: 128, 128>}, {pipeline_mode = #tpu.pipeline_mode<synchronous>, transform_indices = @transform_4, window_bounds = array<i64: 128, 128>}, {transform_indices = @transform_5, window_bounds = array<i64: 16, 128>}, {transform_indices = @transform_6, window_bounds = array<i64: 16, 128>}]} {
    %c0 = arith.constant 0 : index
    %c0_0 = arith.constant 0 : index
    %0 = vector.load %arg1[%c0, %c0_0] : memref<16x128xf32, #tpu.memory_space<vmem>>, vector<16x128xf32>
    %c0_1 = arith.constant 0 : index
    %c0_2 = arith.constant 0 : index
    %1 = vector.load %arg3[%c0_1, %c0_2] : memref<128x128xf32, #tpu.memory_space<vmem>>, vector<128x128xf32>
    %cst = arith.constant dense<0.000000e+00> : vector<16x128xf32>
    %2 = tpu.matmul %0, %1, %cst {dimension_numbers = #tpu.dot_dimension_numbers<[1], [0], [0], [1], [0, 0, 1, 1], [], []>, precision = #tpu.contract_precision<fp32>} : vector<16x128xf32>, vector<128x128xf32>, vector<16x128xf32> -> vector<16x128xf32>
    %c0_3 = arith.constant 0 : index
    %c0_4 = arith.constant 0 : index
    %3 = vector.load %arg5[%c0_3, %c0_4] : memref<128x128xf32, #tpu.memory_space<vmem>>, vector<128x128xf32>
    %cst_5 = arith.constant dense<0.000000e+00> : vector<16x128xf32>
    %4 = tpu.matmul %2, %3, %cst_5 {dimension_numbers = #tpu.dot_dimension_numbers<[1], [0], [0], [1], [0, 0, 1, 1], [], []>, precision = #tpu.contract_precision<fp32>} : vector<16x128xf32>, vector<128x128xf32>, vector<16x128xf32> -> vector<16x128xf32>
    %c0_6 = arith.constant 0 : index
    %c0_7 = arith.constant 0 : index
    %c0_8 = arith.constant 0 : index
    %5 = vector.load %arg2[%c0_6, %c0_7, %c0_8] : memref<2x128x128xf32, #tpu.memory_space<vmem>>, vector<2x128x128xf32>
    %6 = vector.shape_cast %2 : vector<16x128xf32> to vector<2x8x128xf32>
    %cst_9 = arith.constant dense<0.000000e+00> : vector<2x8x128xf32>
    %7 = tpu.matmul %6, %5, %cst_9 {dimension_numbers = #tpu.dot_dimension_numbers<[2], [2], [1], [1], [0, 0, 0, 1, 1, 1], [0], [0]>, precision = #tpu.contract_precision<fp32>} : vector<2x8x128xf32>, vector<2x128x128xf32>, vector<2x8x128xf32> -> vector<2x8x128xf32>
    %cst_10 = arith.constant dense<0xFF800000> : vector<2x8xf32>
    %8 = vector.multi_reduction <maximumf>, %7, %cst_10 [2] : vector<2x8x128xf32> to vector<2x8xf32>
    %9 = vector.shape_cast %8 : vector<2x8xf32> to vector<2x8x1xf32>
    %10 = vector.broadcast %9 : vector<2x8x1xf32> to vector<2x8x128xf32>
    %11 = arith.subf %7, %10 : vector<2x8x128xf32>
    %12 = math.exp %11 : vector<2x8x128xf32>
    %cst_11 = arith.constant dense<0.000000e+00> : vector<2x8xf32>
    %13 = vector.multi_reduction <add>, %12, %cst_11 [2] : vector<2x8x128xf32> to vector<2x8xf32>
    %14 = vector.shape_cast %13 : vector<2x8xf32> to vector<2x8x1xf32>
    %15 = vector.broadcast %14 : vector<2x8x1xf32> to vector<2x8x128xf32>
    %16 = arith.divf %12, %15 : vector<2x8x128xf32>
    %cst_12 = arith.constant dense<0.000000e+00> : vector<2x8x128xf32>
    %17 = tpu.matmul %16, %5, %cst_12 {dimension_numbers = #tpu.dot_dimension_numbers<[2], [1], [1], [2], [0, 0, 0, 1, 1, 2], [0], [0]>, precision = #tpu.contract_precision<fp32>} : vector<2x8x128xf32>, vector<2x128x128xf32>, vector<2x8x128xf32> -> vector<2x8x128xf32>
    %18 = vector.shape_cast %17 : vector<2x8x128xf32> to vector<16x128xf32>
    %c0_13 = arith.constant 0 : index
    %c0_14 = arith.constant 0 : index
    %19 = vector.load %arg4[%c0_13, %c0_14] : memref<128x128xf32, #tpu.memory_space<vmem>>, vector<128x128xf32>
    %cst_15 = arith.constant dense<0.000000e+00> : vector<16x128xf32>
    %20 = tpu.matmul %18, %19, %cst_15 {dimension_numbers = #tpu.dot_dimension_numbers<[1], [0], [0], [1], [0, 0, 1, 1], [], []>, precision = #tpu.contract_precision<fp32>} : vector<16x128xf32>, vector<128x128xf32>, vector<16x128xf32> -> vector<16x128xf32>
    %21 = arith.addf %20, %4 : vector<16x128xf32>
    %22 = math.tanh %21 : vector<16x128xf32>
    %c0_16 = arith.constant 0 : index
    %c0_17 = arith.constant 0 : index
    %23 = vector.load %arg6[%c0_16, %c0_17] : memref<16x128xf32, #tpu.memory_space<vmem>>, vector<16x128xf32>
    tpu.vector_store %arg6[%c0_16, %c0_17], %22 {strides = array<i32>} : memref<16x128xf32, #tpu.memory_space<vmem>>, vector<16x128xf32>,
    %24 = vector.shape_cast %16 : vector<2x8x128xf32> to vector<16x128xf32>
    %c0_18 = arith.constant 0 : index
    %c0_19 = arith.constant 0 : index
    %25 = vector.load %arg7[%c0_18, %c0_19] : memref<16x128xf32, #tpu.memory_space<vmem>>, vector<16x128xf32>
    tpu.vector_store %arg7[%c0_18, %c0_19], %24 {strides = array<i32>} : memref<16x128xf32, #tpu.memory_space<vmem>>, vector<16x128xf32>,
    return
  }
  func.func @transform_0(%arg0: i32) -> (i32, i32) {
    %c0_i32 = arith.constant 0 : i32
    %c0_i32_0 = arith.constant 0 : i32
    return %arg0, %c0_i32 : i32, i32
  }
  func.func @transform_1(%arg0: i32) -> (i32, i32, i32) {
    %c0_i32 = arith.constant 0 : i32
    %c0_i32_0 = arith.constant 0 : i32
    %c0_i32_1 = arith.constant 0 : i32
    return %arg0, %c0_i32, %c0_i32_0 : i32, i32, i32
  }
  func.func @transform_2(%arg0: i32) -> (i32, i32) {
    %c0_i32 = arith.constant 0 : i32
    %c0_i32_0 = arith.constant 0 : i32
    %c0_i32_1 = arith.constant 0 : i32
    return %c0_i32, %c0_i32_0 : i32, i32
  }
  func.func @transform_3(%arg0: i32) -> (i32, i32) {
    %c0_i32 = arith.constant 0 : i32
    %c0_i32_0 = arith.constant 0 : i32
    %c0_i32_1 = arith.constant 0 : i32
    return %c0_i32, %c0_i32_0 : i32, i32
  }
  func.func @transform_4(%arg0: i32) -> (i32, i32) {
    %c0_i32 = arith.constant 0 : i32
    %c0_i32_0 = arith.constant 0 : i32
    %c0_i32_1 = arith.constant 0 : i32
    return %c0_i32, %c0_i32_0 : i32, i32
  }
  func.func @transform_5(%arg0: i32) -> (i32, i32) {
    %c0_i32 = arith.constant 0 : i32
    %c0_i32_0 = arith.constant 0 : i32
    return %arg0, %c0_i32 : i32, i32
  }
  func.func @transform_6(%arg0: i32) -> (i32, i32) {
    %c0_i32 = arith.constant 0 : i32
    %c0_i32_0 = arith.constant 0 : i32
    return %arg0, %c0_i32 : i32, i32
  }
}

</mosaic_0001>

<llo_original>
// kernel: attention_forward.1
$region0: #{attention_forward.1}
  #allocation0 [shape = 'u32[]', space=smem, size = 0x4, offset = 0x4, fixed_abs, tag = 'smem constant byte address 0x4 - core index']
  #allocation1 [shape = 'u32[144,128]{1,0:T(1,128)}', space=vmem, size = 0x12000, scoped, tag = 'internal scratch']
  %s0 = inlined_call_operand.vmem [shape: f32[32,128], index: 0, kind: input, shape index: {}]
  %s1 = inlined_call_operand.vmem [shape: f32[4,128,128], index: 1, kind: input, shape index: {}]
  %s2 = inlined_call_operand.vmem [shape: f32[128,128], index: 2, kind: input, shape index: {}]
  %s3 = inlined_call_operand.vmem [shape: f32[128,128], index: 3, kind: input, shape index: {}]
  %s4 = inlined_call_operand.vmem [shape: f32[128,128], index: 4, kind: input, shape index: {}]
  %s5 = inlined_call_operand.hbm [shape: f32[32,128], index: 5, kind: output, shape index: {0}]
  %s6 = inlined_call_operand.hbm [shape: f32[32,128], index: 6, kind: output, shape index: {1}]
  %7 = xla_tuple %s5, %s6
  %s8 = sld [smem:[#allocation0]]
  $region61: #{attention_forward.1} parent=0
    _
  %s10 = ssub.s32 1, %s8
  %s11 = scalar_select 0, %s10, %s8
  $region1: #{attention_forward.1} parent=0
    #allocation2 [shape = 'u8[16384]{0}', space=vmem, size = 0x4000, scoped, tag = 'output window, operand 0']
    #allocation3 [shape = 's32[2]{0}', space=sflag, size = 0x8, scoped, tag = 'scoped memory for attention_forward.1']
    #allocation4 [shape = 'u8[16384]{0}', space=vmem, size = 0x4000, scoped, tag = 'output window, operand 1']
    #allocation5 [shape = 's32[2]{0}', space=sflag, size = 0x8, scoped, tag = 'scoped memory for attention_forward.1']
    %12 = vsyncpa [#allocation3], 0
    %s13 = scalar_lea.sflag [#allocation3], 1
    %14 = vsyncpa %s13, 0
    %15 = vsyncpa [#allocation5], 0
    %s16 = scalar_lea.sflag [#allocation5], 1
    %17 = vsyncpa %s16, 0
    loop: start=0, step=1, limit=4
    $region2: #{attention_forward.1} parent=1 // loop_pre_header
      _
    $region3: #{attention_forward.1} parent=1 // loop_header
      %s19 = sphi 0, %s23
      %p20 = scmp.ge.s32.totalorder %s19, 4
      %s29 = sphi 0, %s31
      %s32 = sphi 0, %s29
      %s33 = sphi 0, %s32
      %s49 = sphi 0, %s33
      %s55 = sphi 0, %s57
      %s58 = sphi 0, %s55
      %s59 = sphi 0, %s58
      %s75 = sphi 0, %s59
      %s79 = sphi 0, %s79
      %s81 = sphi 0, %s79
      %s82 = sphi 0, %s81
      %s96 = sphi 0, %s82
      %s100 = sphi 0, %s100
      %s102 = sphi 0, %s100
      %s103 = sphi 0, %s102
      %s117 = sphi 0, %s103
      %s121 = sphi 0, %s121
      %s123 = sphi 0, %s121
      %s124 = sphi 0, %s123
      %s138 = sphi 0, %s124
      %s144 = sphi 0, %s146
      %s147 = sphi 0, %s144
      %s148 = sphi 0, %s147
      %s164 = sphi 0, %s148
      %s170 = sphi 0, %s172
      %s173 = sphi 0, %s170
      %s174 = sphi 0, %s173
      %s190 = sphi 0, %s174
    $region4: #{attention_forward.1} parent=1 // loop_header_branch
      %22 = sbr.rel (%p20) target = $region8
    $region5: #{attention_forward.1} parent=1 // loop_body
      %s24 = ssub.s32 %s19, 1
      %s25 = ssub.s32 %s19, 2
      %s26 = sadd.s32 %s19, 1
      %s27 = ssub.s32 %s19, %s26
      %p28 = scmp.eq.s32.totalorder %s27, 0
      %s30 = sadd.s32 %s29, 1
      %s31 = scalar_select %p28, %s29, %s30
      %p34 = pneg %p28
      %p35 = scmp.eq.s32.totalorder %s19, 1
      %p36 = por %p34, %p35
      %p37 = scmp.ne.s32.totalorder %s29, %s32
      %p38 = scmp.eq.s32.totalorder %s19, 0
      %p39 = por %p37, %p38
      %p40 = scmp.ne.s32.totalorder %s29, %s32
      %p41 = scmp.eq.s32.totalorder %s24, 1
      %p42 = por %p40, %p41
      %p43 = scmp.ne.s32.totalorder %s32, %s33
      %p44 = scmp.eq.s32.totalorder %s24, 0
      %p45 = por %p43, %p44
      %p46 = scmp.ne.s32.totalorder %s32, %s33
      %p47 = scmp.eq.s32.totalorder %s25, 1
      %p48 = por %p46, %p47
      %p50 = scmp.ne.s32.totalorder %s33, %s49
      %p51 = scmp.eq.s32.totalorder %s25, 0
      %p52 = por %p50, %p51
      %s53 = ssub.s32 %s19, %s26
      %p54 = scmp.eq.s32.totalorder %s53, 0
      %s56 = sadd.s32 %s55, 1
      %s57 = scalar_select %p54, %s55, %s56
      %p60 = pneg %p54
      %p61 = scmp.eq.s32.totalorder %s19, 1
      %p62 = por %p60, %p61
      %p63 = scmp.ne.s32.totalorder %s55, %s58
      %p64 = scmp.eq.s32.totalorder %s19, 0
      %p65 = por %p63, %p64
      %p66 = scmp.ne.s32.totalorder %s55, %s58
      %p67 = scmp.eq.s32.totalorder %s24, 1
      %p68 = por %p66, %p67
      %p69 = scmp.ne.s32.totalorder %s58, %s59
      %p70 = scmp.eq.s32.totalorder %s24, 0
      %p71 = por %p69, %p70
      %p72 = scmp.ne.s32.totalorder %s58, %s59
      %p73 = scmp.eq.s32.totalorder %s25, 1
      %p74 = por %p72, %p73
      %p76 = scmp.ne.s32.totalorder %s59, %s75
      %p77 = scmp.eq.s32.totalorder %s25, 0
      %p78 = por %p76, %p77
      %s80 = sadd.s32 %s79, 1
      %p83 = scmp.eq.s32.totalorder %s19, 1
      %p84 = scmp.ne.s32.totalorder %s79, %s81
      %p85 = scmp.eq.s32.totalorder %s19, 0
      %p86 = por %p84, %p85
      %p87 = scmp.ne.s32.totalorder %s79, %s81
      %p88 = scmp.eq.s32.totalorder %s24, 1
      %p89 = por %p87, %p88
      %p90 = scmp.ne.s32.totalorder %s81, %s82
      %p91 = scmp.eq.s32.totalorder %s24, 0
      %p92 = por %p90, %p91
      %p93 = scmp.ne.s32.totalorder %s81, %s82
      %p94 = scmp.eq.s32.totalorder %s25, 1
      %p95 = por %p93, %p94
      %p97 = scmp.ne.s32.totalorder %s82, %s96
      %p98 = scmp.eq.s32.totalorder %s25, 0
      %p99 = por %p97, %p98
      %s101 = sadd.s32 %s100, 1
      %p104 = scmp.eq.s32.totalorder %s19, 1
      %p105 = scmp.ne.s32.totalorder %s100, %s102
      %p106 = scmp.eq.s32.totalorder %s19, 0
      %p107 = por %p105, %p106
      %p108 = scmp.ne.s32.totalorder %s100, %s102
      %p109 = scmp.eq.s32.totalorder %s24, 1
      %p110 = por %p108, %p109
      %p111 = scmp.ne.s32.totalorder %s102, %s103
      %p112 = scmp.eq.s32.totalorder %s24, 0
      %p113 = por %p111, %p112
      %p114 = scmp.ne.s32.totalorder %s102, %s103
      %p115 = scmp.eq.s32.totalorder %s25, 1
      %p116 = por %p114, %p115
      %p118 = scmp.ne.s32.totalorder %s103, %s117
      %p119 = scmp.eq.s32.totalorder %s25, 0
      %p120 = por %p118, %p119
      %s122 = sadd.s32 %s121, 1
      %p125 = scmp.eq.s32.totalorder %s19, 1
      %p126 = scmp.ne.s32.totalorder %s121, %s123
      %p127 = scmp.eq.s32.totalorder %s19, 0
      %p128 = por %p126, %p127
      %p129 = scmp.ne.s32.totalorder %s121, %s123
      %p130 = scmp.eq.s32.totalorder %s24, 1
      %p131 = por %p129, %p130
      %p132 = scmp.ne.s32.totalorder %s123, %s124
      %p133 = scmp.eq.s32.totalorder %s24, 0
      %p134 = por %p132, %p133
      %p135 = scmp.ne.s32.totalorder %s123, %s124
      %p136 = scmp.eq.s32.totalorder %s25, 1
      %p137 = por %p135, %p136
      %p139 = scmp.ne.s32.totalorder %s124, %s138
      %p140 = scmp.eq.s32.totalorder %s25, 0
      %p141 = por %p139, %p140
      %s142 = ssub.s32 %s19, %s26
      %p143 = scmp.eq.s32.totalorder %s142, 0
      %s145 = sadd.s32 %s144, 1
      %s146 = scalar_select %p143, %s144, %s145
      %p149 = pneg %p143
      %p150 = scmp.eq.s32.totalorder %s19, 1
      %p151 = por %p149, %p150
      %p152 = scmp.ne.s32.totalorder %s144, %s147
      %p153 = scmp.eq.s32.totalorder %s19, 0
      %p154 = por %p152, %p153
      %p155 = scmp.ne.s32.totalorder %s144, %s147
      %p156 = scmp.eq.s32.totalorder %s24, 1
      %p157 = por %p155, %p156
      %p158 = scmp.ne.s32.totalorder %s147, %s148
      %p159 = scmp.eq.s32.totalorder %s24, 0
      %p160 = por %p158, %p159
      %p161 = scmp.ne.s32.totalorder %s147, %s148
      %p162 = scmp.eq.s32.totalorder %s25, 1
      %p163 = por %p161, %p162
      %p165 = scmp.ne.s32.totalorder %s148, %s164
      %p166 = scmp.eq.s32.totalorder %s25, 0
      %p167 = por %p165, %p166
      %s168 = ssub.s32 %s19, %s26
      %p169 = scmp.eq.s32.totalorder %s168, 0
      %s171 = sadd.s32 %s170, 1
      %s172 = scalar_select %p169, %s170, %s171
      %p175 = pneg %p169
      %p176 = scmp.eq.s32.totalorder %s19, 1
      %p177 = por %p175, %p176
      %p178 = scmp.ne.s32.totalorder %s170, %s173
      %p179 = scmp.eq.s32.totalorder %s19, 0
      %p180 = por %p178, %p179
      %p181 = scmp.ne.s32.totalorder %s170, %s173
      %p182 = scmp.eq.s32.totalorder %s24, 1
      %p183 = por %p181, %p182
      %p184 = scmp.ne.s32.totalorder %s173, %s174
      %p185 = scmp.eq.s32.totalorder %s24, 0
      %p186 = por %p184, %p185
      %p187 = scmp.ne.s32.totalorder %s173, %s174
      %p188 = scmp.eq.s32.totalorder %s25, 1
      %p189 = por %p187, %p188
      %p191 = scmp.ne.s32.totalorder %s174, %s190
      %p192 = scmp.eq.s32.totalorder %s25, 0
      %p193 = por %p191, %p192
      %p194 = scmp.le.s32.totalorder 1, %s19
      %p195 = scmp.lt.s32.totalorder %s19, 3
      %p196 = pnand %p194, %p195
      %p197 = pneg %p196
      // Predicated region
      $region9: #{attention_forward.1} parent=5 // pred_check
        _
      $region10: #{attention_forward.1} parent=5 // pred_check_branch
        %199 = sbr.rel (%p196) target = $region12
      $region11: #{attention_forward.1} parent=5 // pred_region
        %s200 = ssub.s32 %s19, 1
        // Predicated region
        $region13: #{attention_forward.1} parent=11 // pred_check
          %p201 = pneg %p92
        $region14: #{attention_forward.1} parent=11 // pred_check_branch
          %203 = sbr.rel (%p201) target = $region16
        $region15: #{attention_forward.1} parent=11 // pred_region
          _
        $region16: #{attention_forward.1} parent=11 // pred_fallthru
          _
        // Predicated region
        $region17: #{attention_forward.1} parent=11 // pred_check
          %p204 = pneg %p113
        $region18: #{attention_forward.1} parent=11 // pred_check_branch
          %206 = sbr.rel (%p204) target = $region20
        $region19: #{attention_forward.1} parent=11 // pred_region
          _
        $region20: #{attention_forward.1} parent=11 // pred_fallthru
          _
        // Predicated region
        $region21: #{attention_forward.1} parent=11 // pred_check
          %p207 = pneg %p134
        $region22: #{attention_forward.1} parent=11 // pred_check_branch
          %209 = sbr.rel (%p207) target = $region24
        $region23: #{attention_forward.1} parent=11 // pred_region
          _
        $region24: #{attention_forward.1} parent=11 // pred_fallthru
          _
      $region12: #{attention_forward.1} parent=5 // pred_fallthru
        _
      %p210 = scmp.lt.s32.totalorder %s19, 2
      // Predicated region
      $region25: #{attention_forward.1} parent=5 // pred_check
        %p211 = pneg %p210
      $region26: #{attention_forward.1} parent=5 // pred_check_branch
        %213 = sbr.rel (%p211) target = $region28
      $region27: #{attention_forward.1} parent=5 // pred_region
        // Predicated region
        $region29: #{attention_forward.1} parent=27 // pred_check
          %p214 = pneg %p39
        $region30: #{attention_forward.1} parent=27 // pred_check_branch
          %216 = sbr.rel (%p214) target = $region32
        $region31: #{attention_forward.1} parent=27 // pred_region
          %s217 = smul.u32 2, %s19
          %p218 = scmp.lt.s32.totalorder %s217, 3
          %s219 = scalar_select %p218, %s217, 3
          %s220 = smul.addr %s219, 8
          %s221 = scalar_lea.vmem %s0, %s220
          %s222 = smul.u32 2, %s19
        $region32: #{attention_forward.1} parent=27 // pred_fallthru
          _
        // Predicated region
        $region33: #{attention_forward.1} parent=27 // pred_check
          %p223 = pneg %p65
        $region34: #{attention_forward.1} parent=27 // pred_check_branch
          %225 = sbr.rel (%p223) target = $region36
        $region35: #{attention_forward.1} parent=27 // pred_region
          %s226 = smul.u32 2, %s19
          %p227 = scmp.lt.s32.totalorder %s226, 3
          %s228 = scalar_select %p227, %s226, 3
          %s229 = smul.addr %s228, 16
          %s230 = smul.addr %s229, 8
          %s231 = scalar_lea.vmem %s1, %s230
          %s232 = smul.u32 2, %s19
        $region36: #{attention_forward.1} parent=27 // pred_fallthru
          _
      $region28: #{attention_forward.1} parent=5 // pred_fallthru
        _
      %p233 = scmp.le.s32.totalorder 1, %s19
      %p234 = scmp.lt.s32.totalorder %s19, 3
      %p235 = pnand %p233, %p234
      %p236 = pneg %p235
      // Predicated region
      $region37: #{attention_forward.1} parent=5 // pred_check
        _
      $region38: #{attention_forward.1} parent=5 // pred_check_branch
        %238 = sbr.rel (%p235) target = $region40
      $region39: #{attention_forward.1} parent=5 // pred_region
        %s239 = ssub.s32 %s19, 1
        %s240 = smul.u32 2, %s24
        %p241 = scmp.lt.s32.totalorder %s240, 3
        %s242 = scalar_select %p241, %s240, 3
        %s243 = smul.addr %s242, 8
        %s244 = scalar_lea.vmem %s0, %s243
        %p245 = pneg %p45
        %p246 = pneg %p42
        %s247 = smul.u32 2, %s24
        %p248 = scmp.lt.s32.totalorder %s247, 3
        %s249 = scalar_select %p248, %s247, 3
        %s250 = smul.addr %s249, 16
        %s251 = smul.addr %s250, 8
        %s252 = scalar_lea.vmem %s1, %s251
        %p253 = pneg %p71
        %p254 = pneg %p68
        %p255 = pneg %p92
        %p256 = pneg %p89
        %p257 = pneg %p113
        %p258 = pneg %p110
        %p259 = pneg %p134
        %p260 = pneg %p131
        %p261 = pneg %p160
        %p262 = pneg %p157
        %s263 = sand.u32 %s147, 1
        %s264 = scalar_lea.sflag [#allocation3], %s263
        %s265 = sand.u32 %s147, 1
        %s266 = smul.addr %s265, 16
        %s267 = scalar_lea.vmem [#allocation2], %s266
        %p268 = pneg %p186
        %p269 = pneg %p183
        %s270 = sand.u32 %s173, 1
        %s271 = scalar_lea.sflag [#allocation5], %s270
        %s272 = sand.u32 %s173, 1
        %s273 = smul.addr %s272, 16
        %s274 = scalar_lea.vmem [#allocation4], %s273
        %s275 = smul.u32 2, %s24
        %p276 = scmp.lt.s32.totalorder %s275, 3
        %s277 = scalar_select %p276, %s275, 3
        %s278 = smul.addr %s277, 8
        %s279 = scalar_lea.vmem %s0, %s278
        %s280 = smul.u32 2, %s24
        %s281 = smul.u32 2, %s24
        %p282 = scmp.lt.s32.totalorder %s281, 3
        %s283 = scalar_select %p282, %s281, 3
        %s284 = smul.addr %s283, 16
        %s285 = smul.addr %s284, 8
        %s286 = scalar_lea.vmem %s1, %s285
        %s287 = smul.u32 2, %s24
        %s288 = smul.u32 2, %s24
        %s289 = smul.u32 2, %s24
        %v290 = vld [vmem:[%s279] sm:$0xff]
        %v291 = vld [vmem:[%s279 + $0x8] sm:$0xff]
        %v292 = vld [vmem:[%s2] sm:$0xff]
        %v293 = vld [vmem:[%s2 + $0x8] sm:$0xff]
        %v294 = vld [vmem:[%s2 + $0x10] sm:$0xff]
        %v295 = vld [vmem:[%s2 + $0x18] sm:$0xff]
        %v296 = vld [vmem:[%s2 + $0x20] sm:$0xff]
        %v297 = vld [vmem:[%s2 + $0x28] sm:$0xff]
        %v298 = vld [vmem:[%s2 + $0x30] sm:$0xff]
        %v299 = vld [vmem:[%s2 + $0x38] sm:$0xff]
        %v300 = vld [vmem:[%s2 + $0x40] sm:$0xff]
        %v301 = vld [vmem:[%s2 + $0x48] sm:$0xff]
        %v302 = vld [vmem:[%s2 + $0x50] sm:$0xff]
        %v303 = vld [vmem:[%s2 + $0x58] sm:$0xff]
        %v304 = vld [vmem:[%s2 + $0x60] sm:$0xff]
        %v305 = vld [vmem:[%s2 + $0x68] sm:$0xff]
        %v306 = vld [vmem:[%s2 + $0x70] sm:$0xff]
        %v307 = vld [vmem:[%s2 + $0x78] sm:$0xff]
        %308 = vmatprep.subr.mxu0 0.0
        %v309 = vand.u32 %v307, 4294901760
        %310 = vmatpush1.msra.mxu0 %v309
        %311 = vmatprep.subr.mxu0 0.0
        %v312 = vand.u32 %v306, 4294901760
        %313 = vmatpush1.msra.mxu0 %v312
        %314 = vmatprep.subr.mxu0 0.0
        %v315 = vand.u32 %v305, 4294901760
        %316 = vmatpush1.msra.mxu0 %v315
        %317 = vmatprep.subr.mxu0 0.0
        %v318 = vand.u32 %v304, 4294901760
        %319 = vmatpush1.msra.mxu0 %v318
        %320 = vmatprep.subr.mxu0 0.0
        %v321 = vand.u32 %v303, 4294901760
        %322 = vmatpush1.msra.mxu0 %v321
        %323 = vmatprep.subr.mxu0 0.0
        %v324 = vand.u32 %v302, 4294901760
        %325 = vmatpush1.msra.mxu0 %v324
        %326 = vmatprep.subr.mxu0 0.0
        %v327 = vand.u32 %v301, 4294901760
        %328 = vmatpush1.msra.mxu0 %v327
        %329 = vmatprep.subr.mxu0 0.0
        %v330 = vand.u32 %v300, 4294901760
        %331 = vmatpush1.msra.mxu0 %v330
        %332 = vmatprep.subr.mxu0 0.0
        %v333 = vand.u32 %v299, 4294901760
        %334 = vmatpush1.msra.mxu0 %v333
        %335 = vmatprep.subr.mxu0 0.0
        %v336 = vand.u32 %v298, 4294901760
        %337 = vmatpush1.msra.mxu0 %v336
        %338 = vmatprep.subr.mxu0 0.0
        %v339 = vand.u32 %v297, 4294901760
        %340 = vmatpush1.msra.mxu0 %v339
        %341 = vmatprep.subr.mxu0 0.0
        %v342 = vand.u32 %v296, 4294901760
        %343 = vmatpush1.msra.mxu0 %v342
        %344 = vmatprep.subr.mxu0 0.0
        %v345 = vand.u32 %v295, 4294901760
        %346 = vmatpush1.msra.mxu0 %v345
        %347 = vmatprep.subr.mxu0 0.0
        %v348 = vand.u32 %v294, 4294901760
        %349 = vmatpush1.msra.mxu0 %v348
        %350 = vmatprep.subr.mxu0 0.0
        %v351 = vand.u32 %v293, 4294901760
        %352 = vmatpush1.msra.mxu0 %v351
        %353 = vmatprep.subr.mxu0 0.0
        %v354 = vand.u32 %v292, 4294901760
        %355 = vmatpush1.msra.mxu0 %v354
        %356 = vmatprep.subr.mxu0 0.0
        %357 = vmatpush2.msra.mxu0 0.0
        %358 = vmatprep.subr.mxu0 0.0
        %359 = vmatpush2.msra.mxu0 0.0
        %360 = vmatprep.subr.mxu0 0.0
        %361 = vmatpush2.msra.mxu0 0.0
        %362 = vmatprep.subr.mxu0 0.0
        %363 = vmatpush2.msra.mxu0 0.0
        %364 = vmatprep.subr.mxu0 0.0
        %365 = vmatpush2.msra.mxu0 0.0
        %366 = vmatprep.subr.mxu0 0.0
        %367 = vmatpush2.msra.mxu0 0.0
        %368 = vmatprep.subr.mxu0 0.0
        %369 = vmatpush2.msra.mxu0 0.0
        %370 = vmatprep.subr.mxu0 0.0
        %371 = vmatpush2.msra.mxu0 0.0
        %372 = vmatprep.subr.mxu0 0.0
        %373 = vmatpush2.msra.mxu0 0.0
        %374 = vmatprep.subr.mxu0 0.0
        %375 = vmatpush2.msra.mxu0 0.0
        %376 = vmatprep.subr.mxu0 0.0
        %377 = vmatpush2.msra.mxu0 0.0
        %378 = vmatprep.subr.mxu0 0.0
        %379 = vmatpush2.msra.mxu0 0.0
        %380 = vmatprep.subr.mxu0 0.0
        %381 = vmatpush2.msra.mxu0 0.0
        %382 = vmatprep.subr.mxu0 0.0
        %383 = vmatpush2.msra.mxu0 0.0
        %384 = vmatprep.subr.mxu0 0.0
        %385 = vmatpush2.msra.mxu0 0.0
        %386 = vmatprep.subr.mxu0 0.0
        %387 = vmatpush2.msra.mxu0 0.0
        %388 = vmatprep.mubr.f32.mxu0 0.0
        %v389 = vand.u32 %v290, 4294901760
        %v390 = vsub.f32 %v290, %v389
        %v391 = vand.u32 %v390, 4294901760
        %v392 = vsub.f32 %v390, %v391
        %v393 = vand.u32 %v392, 4294901760
        %394 = vmatmul.mubr.f32.gmra.mxu0 %v393
        %v395 = vpop.f32.mrf.mxu0
        %v396 = vadd.f32 0.0, %v395
        %v397 = vpop.f32.mrf.mxu0
        %398 = vmatprep.mubr.f32.mxu0 0.0
        %v399 = vand.u32 %v291, 4294901760
        %v400 = vsub.f32 %v291, %v399
        %v401 = vand.u32 %v400, 4294901760
        %v402 = vsub.f32 %v400, %v401
        %v403 = vand.u32 %v402, 4294901760
        %404 = vmatmul.mubr.f32.gmra.mxu0 %v403
        %v405 = vpop.f32.mrf.mxu0
        %v406 = vadd.f32 0.0, %v405
        %v407 = vpop.f32.mrf.mxu0
        %408 = vdwg.mxu0
        %409 = vmatprep.subr.mxu0 0.0
        %v410 = vand.u32 %v307, 4294901760
        %v411 = vsub.f32 %v307, %v410
        %v412 = vand.u32 %v411, 4294901760
        %v413 = vsub.f32 %v411, %v412
        %v414 = vand.u32 %v413, 4294901760
        %415 = vmatpush1.msra.mxu0 %v414
        %416 = vmatprep.subr.mxu0 0.0
        %v417 = vand.u32 %v306, 4294901760
        %v418 = vsub.f32 %v306, %v417
        %v419 = vand.u32 %v418, 4294901760
        %v420 = vsub.f32 %v418, %v419
        %v421 = vand.u32 %v420, 4294901760
        %422 = vmatpush1.msra.mxu0 %v421
        %423 = vmatprep.subr.mxu0 0.0
        %v424 = vand.u32 %v305, 4294901760
        %v425 = vsub.f32 %v305, %v424
        %v426 = vand.u32 %v425, 4294901760
        %v427 = vsub.f32 %v425, %v426
        %v428 = vand.u32 %v427, 4294901760
        %429 = vmatpush1.msra.mxu0 %v428
        %430 = vmatprep.subr.mxu0 0.0
        %v431 = vand.u32 %v304, 4294901760
        %v432 = vsub.f32 %v304, %v431
        %v433 = vand.u32 %v432, 4294901760
        %v434 = vsub.f32 %v432, %v433
        %v435 = vand.u32 %v434, 4294901760
        %436 = vmatpush1.msra.mxu0 %v435
        %437 = vmatprep.subr.mxu0 0.0
        %v438 = vand.u32 %v303, 4294901760
        %v439 = vsub.f32 %v303, %v438
        %v440 = vand.u32 %v439, 4294901760
        %v441 = vsub.f32 %v439, %v440
        %v442 = vand.u32 %v441, 4294901760
        %443 = vmatpush1.msra.mxu0 %v442
        %444 = vmatprep.subr.mxu0 0.0
        %v445 = vand.u32 %v302, 4294901760
        %v446 = vsub.f32 %v302, %v445
        %v447 = vand.u32 %v446, 4294901760
        %v448 = vsub.f32 %v446, %v447
        %v449 = vand.u32 %v448, 4294901760
        %450 = vmatpush1.msra.mxu0 %v449
        %451 = vmatprep.subr.mxu0 0.0
        %v452 = vand.u32 %v301, 4294901760
        %v453 = vsub.f32 %v301, %v452
        %v454 = vand.u32 %v453, 4294901760
        %v455 = vsub.f32 %v453, %v454
        %v456 = vand.u32 %v455, 4294901760
        %457 = vmatpush1.msra.mxu0 %v456
        %458 = vmatprep.subr.mxu0 0.0
        %v459 = vand.u32 %v300, 4294901760
        %v460 = vsub.f32 %v300, %v459
        %v461 = vand.u32 %v460, 4294901760
        %v462 = vsub.f32 %v460, %v461
        %v463 = vand.u32 %v462, 4294901760
        %464 = vmatpush1.msra.mxu0 %v463
        %465 = vmatprep.subr.mxu0 0.0
        %v466 = vand.u32 %v299, 4294901760
        %v467 = vsub.f32 %v299, %v466
        %v468 = vand.u32 %v467, 4294901760
        %v469 = vsub.f32 %v467, %v468
        %v470 = vand.u32 %v469, 4294901760
        %471 = vmatpush1.msra.mxu0 %v470
        %472 = vmatprep.subr.mxu0 0.0
        %v473 = vand.u32 %v298, 4294901760
        %v474 = vsub.f32 %v298, %v473
        %v475 = vand.u32 %v474, 4294901760
        %v476 = vsub.f32 %v474, %v475
        %v477 = vand.u32 %v476, 4294901760
        %478 = vmatpush1.msra.mxu0 %v477
        %479 = vmatprep.subr.mxu0 0.0
        %v480 = vand.u32 %v297, 4294901760
        %v481 = vsub.f32 %v297, %v480
        %v482 = vand.u32 %v481, 4294901760
        %v483 = vsub.f32 %v481, %v482
        %v484 = vand.u32 %v483, 4294901760
        %485 = vmatpush1.msra.mxu0 %v484
        %486 = vmatprep.subr.mxu0 0.0
        %v487 = vand.u32 %v296, 4294901760
        %v488 = vsub.f32 %v296, %v487
        %v489 = vand.u32 %v488, 4294901760
        %v490 = vsub.f32 %v488, %v489
        %v491 = vand.u32 %v490, 4294901760
        %492 = vmatpush1.msra.mxu0 %v491
        %493 = vmatprep.subr.mxu0 0.0
        %v494 = vand.u32 %v295, 4294901760
        %v495 = vsub.f32 %v295, %v494
        %v496 = vand.u32 %v495, 4294901760
        %v497 = vsub.f32 %v495, %v496
        %v498 = vand.u32 %v497, 4294901760
        %499 = vmatpush1.msra.mxu0 %v498
        %500 = vmatprep.subr.mxu0 0.0
        %v501 = vand.u32 %v294, 4294901760
        %v502 = vsub.f32 %v294, %v501
        %v503 = vand.u32 %v502, 4294901760
        %v504 = vsub.f32 %v502, %v503
        %v505 = vand.u32 %v504, 4294901760
        %506 = vmatpush1.msra.mxu0 %v505
        %507 = vmatprep.subr.mxu0 0.0
        %v508 = vand.u32 %v293, 4294901760
        %v509 = vsub.f32 %v293, %v508
        %v510 = vand.u32 %v509, 4294901760
        %v511 = vsub.f32 %v509, %v510
        %v512 = vand.u32 %v511, 4294901760
        %513 = vmatpush1.msra.mxu0 %v512
        %514 = vmatprep.subr.mxu0 0.0
        %v515 = vand.u32 %v292, 4294901760
        %v516 = vsub.f32 %v292, %v515
        %v517 = vand.u32 %v516, 4294901760
        %v518 = vsub.f32 %v516, %v517
        %v519 = vand.u32 %v518, 4294901760
        %520 = vmatpush1.msra.mxu0 %v519
        %521 = vmatprep.subr.mxu0 0.0
        %522 = vmatpush2.msra.mxu0 0.0
        %523 = vmatprep.subr.mxu0 0.0
        %524 = vmatpush2.msra.mxu0 0.0
        %525 = vmatprep.subr.mxu0 0.0
        %526 = vmatpush2.msra.mxu0 0.0
        %527 = vmatprep.subr.mxu0 0.0
        %528 = vmatpush2.msra.mxu0 0.0
        %529 = vmatprep.subr.mxu0 0.0
        %530 = vmatpush2.msra.mxu0 0.0
        %531 = vmatprep.subr.mxu0 0.0
        %532 = vmatpush2.msra.mxu0 0.0
        %533 = vmatprep.subr.mxu0 0.0
        %534 = vmatpush2.msra.mxu0 0.0
        %535 = vmatprep.subr.mxu0 0.0
        %536 = vmatpush2.msra.mxu0 0.0
        %537 = vmatprep.subr.mxu0 0.0
        %538 = vmatpush2.msra.mxu0 0.0
        %539 = vmatprep.subr.mxu0 0.0
        %540 = vmatpush2.msra.mxu0 0.0
        %541 = vmatprep.subr.mxu0 0.0
        %542 = vmatpush2.msra.mxu0 0.0
        %543 = vmatprep.subr.mxu0 0.0
        %544 = vmatpush2.msra.mxu0 0.0
        %545 = vmatprep.subr.mxu0 0.0
        %546 = vmatpush2.msra.mxu0 0.0
        %547 = vmatprep.subr.mxu0 0.0
        %548 = vmatpush2.msra.mxu0 0.0
        %549 = vmatprep.subr.mxu0 0.0
        %550 = vmatpush2.msra.mxu0 0.0
        %551 = vmatprep.subr.mxu0 0.0
        %552 = vmatpush2.msra.mxu0 0.0
        %553 = vmatprep.mubr.f32.mxu0 0.0
        %v554 = vand.u32 %v290, 4294901760
        %555 = vmatmul.mubr.f32.gmra.mxu0 %v554
        %v556 = vpop.f32.mrf.mxu0
        %v557 = vadd.f32 %v396, %v556
        %v558 = vpop.f32.mrf.mxu0
        %559 = vmatprep.mubr.f32.mxu0 0.0
        %v560 = vand.u32 %v291, 4294901760
        %561 = vmatmul.mubr.f32.gmra.mxu0 %v560
        %v562 = vpop.f32.mrf.mxu0
        %v563 = vadd.f32 %v406, %v562
        %v564 = vpop.f32.mrf.mxu0
        %565 = vdwg.mxu0
        %566 = vmatprep.subr.mxu0 0.0
        %v567 = vand.u32 %v307, 4294901760
        %v568 = vsub.f32 %v307, %v567
        %569 = vmatpush1.msra.mxu0 %v568
        %570 = vmatprep.subr.mxu0 0.0
        %v571 = vand.u32 %v306, 4294901760
        %v572 = vsub.f32 %v306, %v571
        %573 = vmatpush1.msra.mxu0 %v572
        %574 = vmatprep.subr.mxu0 0.0
        %v575 = vand.u32 %v305, 4294901760
        %v576 = vsub.f32 %v305, %v575
        %577 = vmatpush1.msra.mxu0 %v576
        %578 = vmatprep.subr.mxu0 0.0
        %v579 = vand.u32 %v304, 4294901760
        %v580 = vsub.f32 %v304, %v579
        %581 = vmatpush1.msra.mxu0 %v580
        %582 = vmatprep.subr.mxu0 0.0
        %v583 = vand.u32 %v303, 4294901760
        %v584 = vsub.f32 %v303, %v583
        %585 = vmatpush1.msra.mxu0 %v584
        %586 = vmatprep.subr.mxu0 0.0
        %v587 = vand.u32 %v302, 4294901760
        %v588 = vsub.f32 %v302, %v587
        %589 = vmatpush1.msra.mxu0 %v588
        %590 = vmatprep.subr.mxu0 0.0
        %v591 = vand.u32 %v301, 4294901760
        %v592 = vsub.f32 %v301, %v591
        %593 = vmatpush1.msra.mxu0 %v592
        %594 = vmatprep.subr.mxu0 0.0
        %v595 = vand.u32 %v300, 4294901760
        %v596 = vsub.f32 %v300, %v595
        %597 = vmatpush1.msra.mxu0 %v596
        %598 = vmatprep.subr.mxu0 0.0
        %v599 = vand.u32 %v299, 4294901760
        %v600 = vsub.f32 %v299, %v599
        %601 = vmatpush1.msra.mxu0 %v600
        %602 = vmatprep.subr.mxu0 0.0
        %v603 = vand.u32 %v298, 4294901760
        %v604 = vsub.f32 %v298, %v603
        %605 = vmatpush1.msra.mxu0 %v604
        %606 = vmatprep.subr.mxu0 0.0
        %v607 = vand.u32 %v297, 4294901760
        %v608 = vsub.f32 %v297, %v607
        %609 = vmatpush1.msra.mxu0 %v608
        %610 = vmatprep.subr.mxu0 0.0
        %v611 = vand.u32 %v296, 4294901760
        %v612 = vsub.f32 %v296, %v611
        %613 = vmatpush1.msra.mxu0 %v612
        %614 = vmatprep.subr.mxu0 0.0
        %v615 = vand.u32 %v295, 4294901760
        %v616 = vsub.f32 %v295, %v615
        %617 = vmatpush1.msra.mxu0 %v616
        %618 = vmatprep.subr.mxu0 0.0
        %v619 = vand.u32 %v294, 4294901760
        %v620 = vsub.f32 %v294, %v619
        %621 = vmatpush1.msra.mxu0 %v620
        %622 = vmatprep.subr.mxu0 0.0
        %v623 = vand.u32 %v293, 4294901760
        %v624 = vsub.f32 %v293, %v623
        %625 = vmatpush1.msra.mxu0 %v624
        %626 = vmatprep.subr.mxu0 0.0
        %v627 = vand.u32 %v292, 4294901760
        %v628 = vsub.f32 %v292, %v627
        %629 = vmatpush1.msra.mxu0 %v628
        %630 = vmatprep.subr.mxu0 0.0
        %631 = vmatpush2.msra.mxu0 0.0
        %632 = vmatprep.subr.mxu0 0.0
        %633 = vmatpush2.msra.mxu0 0.0
        %634 = vmatprep.subr.mxu0 0.0
        %635 = vmatpush2.msra.mxu0 0.0
        %636 = vmatprep.subr.mxu0 0.0
        %637 = vmatpush2.msra.mxu0 0.0
        %638 = vmatprep.subr.mxu0 0.0
        %639 = vmatpush2.msra.mxu0 0.0
        %640 = vmatprep.subr.mxu0 0.0
        %641 = vmatpush2.msra.mxu0 0.0
        %642 = vmatprep.subr.mxu0 0.0
        %643 = vmatpush2.msra.mxu0 0.0
        %644 = vmatprep.subr.mxu0 0.0
        %645 = vmatpush2.msra.mxu0 0.0
        %646 = vmatprep.subr.mxu0 0.0
        %647 = vmatpush2.msra.mxu0 0.0
        %648 = vmatprep.subr.mxu0 0.0
        %649 = vmatpush2.msra.mxu0 0.0
        %650 = vmatprep.subr.mxu0 0.0
        %651 = vmatpush2.msra.mxu0 0.0
        %652 = vmatprep.subr.mxu0 0.0
        %653 = vmatpush2.msra.mxu0 0.0
        %654 = vmatprep.subr.mxu0 0.0
        %655 = vmatpush2.msra.mxu0 0.0
        %656 = vmatprep.subr.mxu0 0.0
        %657 = vmatpush2.msra.mxu0 0.0
        %658 = vmatprep.subr.mxu0 0.0
        %659 = vmatpush2.msra.mxu0 0.0
        %660 = vmatprep.subr.mxu0 0.0
        %661 = vmatpush2.msra.mxu0 0.0
        %662 = vmatprep.mubr.f32.mxu0 0.0
        %v663 = vand.u32 %v290, 4294901760
        %v664 = vsub.f32 %v290, %v663
        %665 = vmatmul.mubr.f32.gmra.mxu0 %v664
        %v666 = vpop.f32.mrf.mxu0
        %v667 = vadd.f32 %v557, %v666
        %v668 = vpop.f32.mrf.mxu0
        %669 = vmatprep.mubr.f32.mxu0 0.0
        %v670 = vand.u32 %v291, 4294901760
        %v671 = vsub.f32 %v291, %v670
        %672 = vmatmul.mubr.f32.gmra.mxu0 %v671
        %v673 = vpop.f32.mrf.mxu0
        %v674 = vadd.f32 %v563, %v673
        %v675 = vpop.f32.mrf.mxu0
        %676 = vdwg.mxu0
        %677 = vmatprep.subr.mxu0 0.0
        %v678 = vand.u32 %v307, 4294901760
        %679 = vmatpush1.msra.mxu0 %v678
        %680 = vmatprep.subr.mxu0 0.0
        %v681 = vand.u32 %v306, 4294901760
        %682 = vmatpush1.msra.mxu0 %v681
        %683 = vmatprep.subr.mxu0 0.0
        %v684 = vand.u32 %v305, 4294901760
        %685 = vmatpush1.msra.mxu0 %v684
        %686 = vmatprep.subr.mxu0 0.0
        %v687 = vand.u32 %v304, 4294901760
        %688 = vmatpush1.msra.mxu0 %v687
        %689 = vmatprep.subr.mxu0 0.0
        %v690 = vand.u32 %v303, 4294901760
        %691 = vmatpush1.msra.mxu0 %v690
        %692 = vmatprep.subr.mxu0 0.0
        %v693 = vand.u32 %v302, 4294901760
        %694 = vmatpush1.msra.mxu0 %v693
        %695 = vmatprep.subr.mxu0 0.0
        %v696 = vand.u32 %v301, 4294901760
        %697 = vmatpush1.msra.mxu0 %v696
        %698 = vmatprep.subr.mxu0 0.0
        %v699 = vand.u32 %v300, 4294901760
        %700 = vmatpush1.msra.mxu0 %v699
        %701 = vmatprep.subr.mxu0 0.0
        %v702 = vand.u32 %v299, 4294901760
        %703 = vmatpush1.msra.mxu0 %v702
        %704 = vmatprep.subr.mxu0 0.0
        %v705 = vand.u32 %v298, 4294901760
        %706 = vmatpush1.msra.mxu0 %v705
        %707 = vmatprep.subr.mxu0 0.0
        %v708 = vand.u32 %v297, 4294901760
        %709 = vmatpush1.msra.mxu0 %v708
        %710 = vmatprep.subr.mxu0 0.0
        %v711 = vand.u32 %v296, 4294901760
        %712 = vmatpush1.msra.mxu0 %v711
        %713 = vmatprep.subr.mxu0 0.0
        %v714 = vand.u32 %v295, 4294901760
        %715 = vmatpush1.msra.mxu0 %v714
        %716 = vmatprep.subr.mxu0 0.0
        %v717 = vand.u32 %v294, 4294901760
        %718 = vmatpush1.msra.mxu0 %v717
        %719 = vmatprep.subr.mxu0 0.0
        %v720 = vand.u32 %v293, 4294901760
        %721 = vmatpush1.msra.mxu0 %v720
        %722 = vmatprep.subr.mxu0 0.0
        %v723 = vand.u32 %v292, 4294901760
        %724 = vmatpush1.msra.mxu0 %v723
        %725 = vmatprep.subr.mxu0 0.0
        %726 = vmatpush2.msra.mxu0 0.0
        %727 = vmatprep.subr.mxu0 0.0
        %728 = vmatpush2.msra.mxu0 0.0
        %729 = vmatprep.subr.mxu0 0.0
        %730 = vmatpush2.msra.mxu0 0.0
        %731 = vmatprep.subr.mxu0 0.0
        %732 = vmatpush2.msra.mxu0 0.0
        %733 = vmatprep.subr.mxu0 0.0
        %734 = vmatpush2.msra.mxu0 0.0
        %735 = vmatprep.subr.mxu0 0.0
        %736 = vmatpush2.msra.mxu0 0.0
        %737 = vmatprep.subr.mxu0 0.0
        %738 = vmatpush2.msra.mxu0 0.0
        %739 = vmatprep.subr.mxu0 0.0
        %740 = vmatpush2.msra.mxu0 0.0
        %741 = vmatprep.subr.mxu0 0.0
        %742 = vmatpush2.msra.mxu0 0.0
        %743 = vmatprep.subr.mxu0 0.0
        %744 = vmatpush2.msra.mxu0 0.0
        %745 = vmatprep.subr.mxu0 0.0
        %746 = vmatpush2.msra.mxu0 0.0
        %747 = vmatprep.subr.mxu0 0.0
        %748 = vmatpush2.msra.mxu0 0.0
        %749 = vmatprep.subr.mxu0 0.0
        %750 = vmatpush2.msra.mxu0 0.0
        %751 = vmatprep.subr.mxu0 0.0
        %752 = vmatpush2.msra.mxu0 0.0
        %753 = vmatprep.subr.mxu0 0.0
        %754 = vmatpush2.msra.mxu0 0.0
        %755 = vmatprep.subr.mxu0 0.0
        %756 = vmatpush2.msra.mxu0 0.0
        %757 = vmatprep.mubr.f32.mxu0 0.0
        %v758 = vand.u32 %v290, 4294901760
        %v759 = vsub.f32 %v290, %v758
        %v760 = vand.u32 %v759, 4294901760
        %761 = vmatmul.mubr.f32.gmra.mxu0 %v760
        %v762 = vpop.f32.mrf.mxu0
        %v763 = vadd.f32 %v667, %v762
        %v764 = vpop.f32.mrf.mxu0
        %765 = vmatprep.mubr.f32.mxu0 0.0
        %v766 = vand.u32 %v291, 4294901760
        %v767 = vsub.f32 %v291, %v766
        %v768 = vand.u32 %v767, 4294901760
        %769 = vmatmul.mubr.f32.gmra.mxu0 %v768
        %v770 = vpop.f32.mrf.mxu0
        %v771 = vadd.f32 %v674, %v770
        %v772 = vpop.f32.mrf.mxu0
        %773 = vdwg.mxu0
        %774 = vmatprep.subr.mxu0 0.0
        %v775 = vand.u32 %v307, 4294901760
        %v776 = vsub.f32 %v307, %v775
        %v777 = vand.u32 %v776, 4294901760
        %778 = vmatpush1.msra.mxu0 %v777
        %779 = vmatprep.subr.mxu0 0.0
        %v780 = vand.u32 %v306, 4294901760
        %v781 = vsub.f32 %v306, %v780
        %v782 = vand.u32 %v781, 4294901760
        %783 = vmatpush1.msra.mxu0 %v782
        %784 = vmatprep.subr.mxu0 0.0
        %v785 = vand.u32 %v305, 4294901760
        %v786 = vsub.f32 %v305, %v785
        %v787 = vand.u32 %v786, 4294901760
        %788 = vmatpush1.msra.mxu0 %v787
        %789 = vmatprep.subr.mxu0 0.0
        %v790 = vand.u32 %v304, 4294901760
        %v791 = vsub.f32 %v304, %v790
        %v792 = vand.u32 %v791, 4294901760
        %793 = vmatpush1.msra.mxu0 %v792
        %794 = vmatprep.subr.mxu0 0.0
        %v795 = vand.u32 %v303, 4294901760
        %v796 = vsub.f32 %v303, %v795
        %v797 = vand.u32 %v796, 4294901760
        %798 = vmatpush1.msra.mxu0 %v797
        %799 = vmatprep.subr.mxu0 0.0
        %v800 = vand.u32 %v302, 4294901760
        %v801 = vsub.f32 %v302, %v800
        %v802 = vand.u32 %v801, 4294901760
        %803 = vmatpush1.msra.mxu0 %v802
        %804 = vmatprep.subr.mxu0 0.0
        %v805 = vand.u32 %v301, 4294901760
        %v806 = vsub.f32 %v301, %v805
        %v807 = vand.u32 %v806, 4294901760
        %808 = vmatpush1.msra.mxu0 %v807
        %809 = vmatprep.subr.mxu0 0.0
        %v810 = vand.u32 %v300, 4294901760
        %v811 = vsub.f32 %v300, %v810
        %v812 = vand.u32 %v811, 4294901760
        %813 = vmatpush1.msra.mxu0 %v812
        %814 = vmatprep.subr.mxu0 0.0
        %v815 = vand.u32 %v299, 4294901760
        %v816 = vsub.f32 %v299, %v815
        %v817 = vand.u32 %v816, 4294901760
        %818 = vmatpush1.msra.mxu0 %v817
        %819 = vmatprep.subr.mxu0 0.0
        %v820 = vand.u32 %v298, 4294901760
        %v821 = vsub.f32 %v298, %v820
        %v822 = vand.u32 %v821, 4294901760
        %823 = vmatpush1.msra.mxu0 %v822
        %824 = vmatprep.subr.mxu0 0.0
        %v825 = vand.u32 %v297, 4294901760
        %v826 = vsub.f32 %v297, %v825
        %v827 = vand.u32 %v826, 4294901760
        %828 = vmatpush1.msra.mxu0 %v827
        %829 = vmatprep.subr.mxu0 0.0
        %v830 = vand.u32 %v296, 4294901760
        %v831 = vsub.f32 %v296, %v830
        %v832 = vand.u32 %v831, 4294901760
        %833 = vmatpush1.msra.mxu0 %v832
        %834 = vmatprep.subr.mxu0 0.0
        %v835 = vand.u32 %v295, 4294901760
        %v836 = vsub.f32 %v295, %v835
        %v837 = vand.u32 %v836, 4294901760
        %838 = vmatpush1.msra.mxu0 %v837
        %839 = vmatprep.subr.mxu0 0.0
        %v840 = vand.u32 %v294, 4294901760
        %v841 = vsub.f32 %v294, %v840
        %v842 = vand.u32 %v841, 4294901760
        %843 = vmatpush1.msra.mxu0 %v842
        %844 = vmatprep.subr.mxu0 0.0
        %v845 = vand.u32 %v293, 4294901760
        %v846 = vsub.f32 %v293, %v845
        %v847 = vand.u32 %v846, 4294901760
        %848 = vmatpush1.msra.mxu0 %v847
        %849 = vmatprep.subr.mxu0 0.0
        %v850 = vand.u32 %v292, 4294901760
        %v851 = vsub.f32 %v292, %v850
        %v852 = vand.u32 %v851, 4294901760
        %853 = vmatpush1.msra.mxu0 %v852
        %854 = vmatprep.subr.mxu0 0.0
        %855 = vmatpush2.msra.mxu0 0.0
        %856 = vmatprep.subr.mxu0 0.0
        %857 = vmatpush2.msra.mxu0 0.0
        %858 = vmatprep.subr.mxu0 0.0
        %859 = vmatpush2.msra.mxu0 0.0
        %860 = vmatprep.subr.mxu0 0.0
        %861 = vmatpush2.msra.mxu0 0.0
        %862 = vmatprep.subr.mxu0 0.0
        %863 = vmatpush2.msra.mxu0 0.0
        %864 = vmatprep.subr.mxu0 0.0
        %865 = vmatpush2.msra.mxu0 0.0
        %866 = vmatprep.subr.mxu0 0.0
        %867 = vmatpush2.msra.mxu0 0.0
        %868 = vmatprep.subr.mxu0 0.0
        %869 = vmatpush2.msra.mxu0 0.0
        %870 = vmatprep.subr.mxu0 0.0
        %871 = vmatpush2.msra.mxu0 0.0
        %872 = vmatprep.subr.mxu0 0.0
        %873 = vmatpush2.msra.mxu0 0.0
        %874 = vmatprep.subr.mxu0 0.0
        %875 = vmatpush2.msra.mxu0 0.0
        %876 = vmatprep.subr.mxu0 0.0
        %877 = vmatpush2.msra.mxu0 0.0
        %878 = vmatprep.subr.mxu0 0.0
        %879 = vmatpush2.msra.mxu0 0.0
        %880 = vmatprep.subr.mxu0 0.0
        %881 = vmatpush2.msra.mxu0 0.0
        %882 = vmatprep.subr.mxu0 0.0
        %883 = vmatpush2.msra.mxu0 0.0
        %884 = vmatprep.subr.mxu0 0.0
        %885 = vmatpush2.msra.mxu0 0.0
        %886 = vmatprep.mubr.f32.mxu0 0.0
        %v887 = vand.u32 %v290, 4294901760
        %888 = vmatmul.mubr.f32.gmra.mxu0 %v887
        %v889 = vpop.f32.mrf.mxu0
        %v890 = vadd.f32 %v763, %v889
        %v891 = vpop.f32.mrf.mxu0
        %892 = vmatprep.mubr.f32.mxu0 0.0
        %v893 = vand.u32 %v291, 4294901760
        %894 = vmatmul.mubr.f32.gmra.mxu0 %v893
        %v895 = vpop.f32.mrf.mxu0
        %v896 = vadd.f32 %v771, %v895
        %v897 = vpop.f32.mrf.mxu0
        %898 = vdwg.mxu0
        %899 = vmatprep.subr.mxu0 0.0
        %v900 = vand.u32 %v307, 4294901760
        %901 = vmatpush1.msra.mxu0 %v900
        %902 = vmatprep.subr.mxu0 0.0
        %v903 = vand.u32 %v306, 4294901760
        %904 = vmatpush1.msra.mxu0 %v903
        %905 = vmatprep.subr.mxu0 0.0
        %v906 = vand.u32 %v305, 4294901760
        %907 = vmatpush1.msra.mxu0 %v906
        %908 = vmatprep.subr.mxu0 0.0
        %v909 = vand.u32 %v304, 4294901760
        %910 = vmatpush1.msra.mxu0 %v909
        %911 = vmatprep.subr.mxu0 0.0
        %v912 = vand.u32 %v303, 4294901760
        %913 = vmatpush1.msra.mxu0 %v912
        %914 = vmatprep.subr.mxu0 0.0
        %v915 = vand.u32 %v302, 4294901760
        %916 = vmatpush1.msra.mxu0 %v915
        %917 = vmatprep.subr.mxu0 0.0
        %v918 = vand.u32 %v301, 4294901760
        %919 = vmatpush1.msra.mxu0 %v918
        %920 = vmatprep.subr.mxu0 0.0
        %v921 = vand.u32 %v300, 4294901760
        %922 = vmatpush1.msra.mxu0 %v921
        %923 = vmatprep.subr.mxu0 0.0
        %v924 = vand.u32 %v299, 4294901760
        %925 = vmatpush1.msra.mxu0 %v924
        %926 = vmatprep.subr.mxu0 0.0
        %v927 = vand.u32 %v298, 4294901760
        %928 = vmatpush1.msra.mxu0 %v927
        %929 = vmatprep.subr.mxu0 0.0
        %v930 = vand.u32 %v297, 4294901760
        %931 = vmatpush1.msra.mxu0 %v930
        %932 = vmatprep.subr.mxu0 0.0
        %v933 = vand.u32 %v296, 4294901760
        %934 = vmatpush1.msra.mxu0 %v933
        %935 = vmatprep.subr.mxu0 0.0
        %v936 = vand.u32 %v295, 4294901760
        %937 = vmatpush1.msra.mxu0 %v936
        %938 = vmatprep.subr.mxu0 0.0
        %v939 = vand.u32 %v294, 4294901760
        %940 = vmatpush1.msra.mxu0 %v939
        %941 = vmatprep.subr.mxu0 0.0
        %v942 = vand.u32 %v293, 4294901760
        %943 = vmatpush1.msra.mxu0 %v942
        %944 = vmatprep.subr.mxu0 0.0
        %v945 = vand.u32 %v292, 4294901760
        %946 = vmatpush1.msra.mxu0 %v945
        %947 = vmatprep.subr.mxu0 0.0
        %948 = vmatpush2.msra.mxu0 0.0
        %949 = vmatprep.subr.mxu0 0.0
        %950 = vmatpush2.msra.mxu0 0.0
        %951 = vmatprep.subr.mxu0 0.0
        %952 = vmatpush2.msra.mxu0 0.0
        %953 = vmatprep.subr.mxu0 0.0
        %954 = vmatpush2.msra.mxu0 0.0
        %955 = vmatprep.subr.mxu0 0.0
        %956 = vmatpush2.msra.mxu0 0.0
        %957 = vmatprep.subr.mxu0 0.0
        %958 = vmatpush2.msra.mxu0 0.0
        %959 = vmatprep.subr.mxu0 0.0
        %960 = vmatpush2.msra.mxu0 0.0
        %961 = vmatprep.subr.mxu0 0.0
        %962 = vmatpush2.msra.mxu0 0.0
        %963 = vmatprep.subr.mxu0 0.0
        %964 = vmatpush2.msra.mxu0 0.0
        %965 = vmatprep.subr.mxu0 0.0
        %966 = vmatpush2.msra.mxu0 0.0
        %967 = vmatprep.subr.mxu0 0.0
        %968 = vmatpush2.msra.mxu0 0.0
        %969 = vmatprep.subr.mxu0 0.0
        %970 = vmatpush2.msra.mxu0 0.0
        %971 = vmatprep.subr.mxu0 0.0
        %972 = vmatpush2.msra.mxu0 0.0
        %973 = vmatprep.subr.mxu0 0.0
        %974 = vmatpush2.msra.mxu0 0.0
        %975 = vmatprep.subr.mxu0 0.0
        %976 = vmatpush2.msra.mxu0 0.0
        %977 = vmatprep.subr.mxu0 0.0
        %978 = vmatpush2.msra.mxu0 0.0
        %979 = vmatprep.mubr.f32.mxu0 0.0
        %v980 = vand.u32 %v290, 4294901760
        %981 = vmatmul.mubr.f32.gmra.mxu0 %v980
        %v982 = vpop.f32.mrf.mxu0
        %v983 = vadd.f32 %v890, %v982
        %v984 = vpop.f32.mrf.mxu0
        %985 = vmatprep.mubr.f32.mxu0 0.0
        %v986 = vand.u32 %v291, 4294901760
        %987 = vmatmul.mubr.f32.gmra.mxu0 %v986
        %v988 = vpop.f32.mrf.mxu0
        %v989 = vadd.f32 %v896, %v988
        %v990 = vpop.f32.mrf.mxu0
        %991 = vdwg.mxu0
        %v992 = vld [vmem:[%s4] sm:$0xff]
        %v993 = vld [vmem:[%s4 + $0x8] sm:$0xff]
        %v994 = vld [vmem:[%s4 + $0x10] sm:$0xff]
        %v995 = vld [vmem:[%s4 + $0x18] sm:$0xff]
        %v996 = vld [vmem:[%s4 + $0x20] sm:$0xff]
        %v997 = vld [vmem:[%s4 + $0x28] sm:$0xff]
        %v998 = vld [vmem:[%s4 + $0x30] sm:$0xff]
        %v999 = vld [vmem:[%s4 + $0x38] sm:$0xff]
        %v1000 = vld [vmem:[%s4 + $0x40] sm:$0xff]
        %v1001 = vld [vmem:[%s4 + $0x48] sm:$0xff]
        %v1002 = vld [vmem:[%s4 + $0x50] sm:$0xff]
        %v1003 = vld [vmem:[%s4 + $0x58] sm:$0xff]
        %v1004 = vld [vmem:[%s4 + $0x60] sm:$0xff]
        %v1005 = vld [vmem:[%s4 + $0x68] sm:$0xff]
        %v1006 = vld [vmem:[%s4 + $0x70] sm:$0xff]
        %v1007 = vld [vmem:[%s4 + $0x78] sm:$0xff]
        %1008 = vmatprep.subr.mxu0 0.0
        %v1009 = vand.u32 %v1007, 4294901760
        %1010 = vmatpush1.msra.mxu0 %v1009
        %1011 = vmatprep.subr.mxu0 0.0
        %v1012 = vand.u32 %v1006, 4294901760
        %1013 = vmatpush1.msra.mxu0 %v1012
        %1014 = vmatprep.subr.mxu0 0.0
        %v1015 = vand.u32 %v1005, 4294901760
        %1016 = vmatpush1.msra.mxu0 %v1015
        %1017 = vmatprep.subr.mxu0 0.0
        %v1018 = vand.u32 %v1004, 4294901760
        %1019 = vmatpush1.msra.mxu0 %v1018
        %1020 = vmatprep.subr.mxu0 0.0
        %v1021 = vand.u32 %v1003, 4294901760
        %1022 = vmatpush1.msra.mxu0 %v1021
        %1023 = vmatprep.subr.mxu0 0.0
        %v1024 = vand.u32 %v1002, 4294901760
        %1025 = vmatpush1.msra.mxu0 %v1024
        %1026 = vmatprep.subr.mxu0 0.0
        %v1027 = vand.u32 %v1001, 4294901760
        %1028 = vmatpush1.msra.mxu0 %v1027
        %1029 = vmatprep.subr.mxu0 0.0
        %v1030 = vand.u32 %v1000, 4294901760
        %1031 = vmatpush1.msra.mxu0 %v1030
        %1032 = vmatprep.subr.mxu0 0.0
        %v1033 = vand.u32 %v999, 4294901760
        %1034 = vmatpush1.msra.mxu0 %v1033
        %1035 = vmatprep.subr.mxu0 0.0
        %v1036 = vand.u32 %v998, 4294901760
        %1037 = vmatpush1.msra.mxu0 %v1036
        %1038 = vmatprep.subr.mxu0 0.0
        %v1039 = vand.u32 %v997, 4294901760
        %1040 = vmatpush1.msra.mxu0 %v1039
        %1041 = vmatprep.subr.mxu0 0.0
        %v1042 = vand.u32 %v996, 4294901760
        %1043 = vmatpush1.msra.mxu0 %v1042
        %1044 = vmatprep.subr.mxu0 0.0
        %v1045 = vand.u32 %v995, 4294901760
        %1046 = vmatpush1.msra.mxu0 %v1045
        %1047 = vmatprep.subr.mxu0 0.0
        %v1048 = vand.u32 %v994, 4294901760
        %1049 = vmatpush1.msra.mxu0 %v1048
        %1050 = vmatprep.subr.mxu0 0.0
        %v1051 = vand.u32 %v993, 4294901760
        %1052 = vmatpush1.msra.mxu0 %v1051
        %1053 = vmatprep.subr.mxu0 0.0
        %v1054 = vand.u32 %v992, 4294901760
        %1055 = vmatpush1.msra.mxu0 %v1054
        %1056 = vmatprep.subr.mxu0 0.0
        %1057 = vmatpush2.msra.mxu0 0.0
        %1058 = vmatprep.subr.mxu0 0.0
        %1059 = vmatpush2.msra.mxu0 0.0
        %1060 = vmatprep.subr.mxu0 0.0
        %1061 = vmatpush2.msra.mxu0 0.0
        %1062 = vmatprep.subr.mxu0 0.0
        %1063 = vmatpush2.msra.mxu0 0.0
        %1064 = vmatprep.subr.mxu0 0.0
        %1065 = vmatpush2.msra.mxu0 0.0
        %1066 = vmatprep.subr.mxu0 0.0
        %1067 = vmatpush2.msra.mxu0 0.0
        %1068 = vmatprep.subr.mxu0 0.0
        %1069 = vmatpush2.msra.mxu0 0.0
        %1070 = vmatprep.subr.mxu0 0.0
        %1071 = vmatpush2.msra.mxu0 0.0
        %1072 = vmatprep.subr.mxu0 0.0
        %1073 = vmatpush2.msra.mxu0 0.0
        %1074 = vmatprep.subr.mxu0 0.0
        %1075 = vmatpush2.msra.mxu0 0.0
        %1076 = vmatprep.subr.mxu0 0.0
        %1077 = vmatpush2.msra.mxu0 0.0
        %1078 = vmatprep.subr.mxu0 0.0
        %1079 = vmatpush2.msra.mxu0 0.0
        %1080 = vmatprep.subr.mxu0 0.0
        %1081 = vmatpush2.msra.mxu0 0.0
        %1082 = vmatprep.subr.mxu0 0.0
        %1083 = vmatpush2.msra.mxu0 0.0
        %1084 = vmatprep.subr.mxu0 0.0
        %1085 = vmatpush2.msra.mxu0 0.0
        %1086 = vmatprep.subr.mxu0 0.0
        %1087 = vmatpush2.msra.mxu0 0.0
        %1088 = vmatprep.mubr.f32.mxu0 0.0
        %v1089 = vand.u32 %v983, 4294901760
        %v1090 = vsub.f32 %v983, %v1089
        %v1091 = vand.u32 %v1090, 4294901760
        %v1092 = vsub.f32 %v1090, %v1091
        %v1093 = vand.u32 %v1092, 4294901760
        %1094 = vmatmul.mubr.f32.gmra.mxu0 %v1093
        %v1095 = vpop.f32.mrf.mxu0
        %v1096 = vadd.f32 0.0, %v1095
        %v1097 = vpop.f32.mrf.mxu0
        %1098 = vmatprep.mubr.f32.mxu0 0.0
        %v1099 = vand.u32 %v989, 4294901760
        %v1100 = vsub.f32 %v989, %v1099
        %v1101 = vand.u32 %v1100, 4294901760
        %v1102 = vsub.f32 %v1100, %v1101
        %v1103 = vand.u32 %v1102, 4294901760
        %1104 = vmatmul.mubr.f32.gmra.mxu0 %v1103
        %v1105 = vpop.f32.mrf.mxu0
        %v1106 = vadd.f32 0.0, %v1105
        %v1107 = vpop.f32.mrf.mxu0
        %1108 = vdwg.mxu0
        %1109 = vmatprep.subr.mxu0 0.0
        %v1110 = vand.u32 %v1007, 4294901760
        %v1111 = vsub.f32 %v1007, %v1110
        %v1112 = vand.u32 %v1111, 4294901760
        %v1113 = vsub.f32 %v1111, %v1112
        %v1114 = vand.u32 %v1113, 4294901760
        %1115 = vmatpush1.msra.mxu0 %v1114
        %1116 = vmatprep.subr.mxu0 0.0
        %v1117 = vand.u32 %v1006, 4294901760
        %v1118 = vsub.f32 %v1006, %v1117
        %v1119 = vand.u32 %v1118, 4294901760
        %v1120 = vsub.f32 %v1118, %v1119
        %v1121 = vand.u32 %v1120, 4294901760
        %1122 = vmatpush1.msra.mxu0 %v1121
        %1123 = vmatprep.subr.mxu0 0.0
        %v1124 = vand.u32 %v1005, 4294901760
        %v1125 = vsub.f32 %v1005, %v1124
        %v1126 = vand.u32 %v1125, 4294901760
        %v1127 = vsub.f32 %v1125, %v1126
        %v1128 = vand.u32 %v1127, 4294901760
        %1129 = vmatpush1.msra.mxu0 %v1128
        %1130 = vmatprep.subr.mxu0 0.0
        %v1131 = vand.u32 %v1004, 4294901760
        %v1132 = vsub.f32 %v1004, %v1131
        %v1133 = vand.u32 %v1132, 4294901760
        %v1134 = vsub.f32 %v1132, %v1133
        %v1135 = vand.u32 %v1134, 4294901760
        %1136 = vmatpush1.msra.mxu0 %v1135
        %1137 = vmatprep.subr.mxu0 0.0
        %v1138 = vand.u32 %v1003, 4294901760
        %v1139 = vsub.f32 %v1003, %v1138
        %v1140 = vand.u32 %v1139, 4294901760
        %v1141 = vsub.f32 %v1139, %v1140
        %v1142 = vand.u32 %v1141, 4294901760
        %1143 = vmatpush1.msra.mxu0 %v1142
        %1144 = vmatprep.subr.mxu0 0.0
        %v1145 = vand.u32 %v1002, 4294901760
        %v1146 = vsub.f32 %v1002, %v1145
        %v1147 = vand.u32 %v1146, 4294901760
        %v1148 = vsub.f32 %v1146, %v1147
        %v1149 = vand.u32 %v1148, 4294901760
        %1150 = vmatpush1.msra.mxu0 %v1149
        %1151 = vmatprep.subr.mxu0 0.0
        %v1152 = vand.u32 %v1001, 4294901760
        %v1153 = vsub.f32 %v1001, %v1152
        %v1154 = vand.u32 %v1153, 4294901760
        %v1155 = vsub.f32 %v1153, %v1154
        %v1156 = vand.u32 %v1155, 4294901760
        %1157 = vmatpush1.msra.mxu0 %v1156
        %1158 = vmatprep.subr.mxu0 0.0
        %v1159 = vand.u32 %v1000, 4294901760
        %v1160 = vsub.f32 %v1000, %v1159
        %v1161 = vand.u32 %v1160, 4294901760
        %v1162 = vsub.f32 %v1160, %v1161
        %v1163 = vand.u32 %v1162, 4294901760
        %1164 = vmatpush1.msra.mxu0 %v1163
        %1165 = vmatprep.subr.mxu0 0.0
        %v1166 = vand.u32 %v999, 4294901760
        %v1167 = vsub.f32 %v999, %v1166
        %v1168 = vand.u32 %v1167, 4294901760
        %v1169 = vsub.f32 %v1167, %v1168
        %v1170 = vand.u32 %v1169, 4294901760
        %1171 = vmatpush1.msra.mxu0 %v1170
        %1172 = vmatprep.subr.mxu0 0.0
        %v1173 = vand.u32 %v998, 4294901760
        %v1174 = vsub.f32 %v998, %v1173
        %v1175 = vand.u32 %v1174, 4294901760
        %v1176 = vsub.f32 %v1174, %v1175
        %v1177 = vand.u32 %v1176, 4294901760
        %1178 = vmatpush1.msra.mxu0 %v1177
        %1179 = vmatprep.subr.mxu0 0.0
        %v1180 = vand.u32 %v997, 4294901760
        %v1181 = vsub.f32 %v997, %v1180
        %v1182 = vand.u32 %v1181, 4294901760
        %v1183 = vsub.f32 %v1181, %v1182
        %v1184 = vand.u32 %v1183, 4294901760
        %1185 = vmatpush1.msra.mxu0 %v1184
        %1186 = vmatprep.subr.mxu0 0.0
        %v1187 = vand.u32 %v996, 4294901760
        %v1188 = vsub.f32 %v996, %v1187
        %v1189 = vand.u32 %v1188, 4294901760
        %v1190 = vsub.f32 %v1188, %v1189
        %v1191 = vand.u32 %v1190, 4294901760
        %1192 = vmatpush1.msra.mxu0 %v1191
        %1193 = vmatprep.subr.mxu0 0.0
        %v1194 = vand.u32 %v995, 4294901760
        %v1195 = vsub.f32 %v995, %v1194
        %v1196 = vand.u32 %v1195, 4294901760
        %v1197 = vsub.f32 %v1195, %v1196
        %v1198 = vand.u32 %v1197, 4294901760
        %1199 = vmatpush1.msra.mxu0 %v1198
        %1200 = vmatprep.subr.mxu0 0.0
        %v1201 = vand.u32 %v994, 4294901760
        %v1202 = vsub.f32 %v994, %v1201
        %v1203 = vand.u32 %v1202, 4294901760
        %v1204 = vsub.f32 %v1202, %v1203
        %v1205 = vand.u32 %v1204, 4294901760
        %1206 = vmatpush1.msra.mxu0 %v1205
        %1207 = vmatprep.subr.mxu0 0.0
        %v1208 = vand.u32 %v993, 4294901760
        %v1209 = vsub.f32 %v993, %v1208
        %v1210 = vand.u32 %v1209, 4294901760
        %v1211 = vsub.f32 %v1209, %v1210
        %v1212 = vand.u32 %v1211, 4294901760
        %1213 = vmatpush1.msra.mxu0 %v1212
        %1214 = vmatprep.subr.mxu0 0.0
        %v1215 = vand.u32 %v992, 4294901760
        %v1216 = vsub.f32 %v992, %v1215
        %v1217 = vand.u32 %v1216, 4294901760
        %v1218 = vsub.f32 %v1216, %v1217
        %v1219 = vand.u32 %v1218, 4294901760
        %1220 = vmatpush1.msra.mxu0 %v1219
        %1221 = vmatprep.subr.mxu0 0.0
        %1222 = vmatpush2.msra.mxu0 0.0
        %1223 = vmatprep.subr.mxu0 0.0
        %1224 = vmatpush2.msra.mxu0 0.0
        %1225 = vmatprep.subr.mxu0 0.0
        %1226 = vmatpush2.msra.mxu0 0.0
        %1227 = vmatprep.subr.mxu0 0.0
        %1228 = vmatpush2.msra.mxu0 0.0
        %1229 = vmatprep.subr.mxu0 0.0
        %1230 = vmatpush2.msra.mxu0 0.0
        %1231 = vmatprep.subr.mxu0 0.0
        %1232 = vmatpush2.msra.mxu0 0.0
        %1233 = vmatprep.subr.mxu0 0.0
        %1234 = vmatpush2.msra.mxu0 0.0
        %1235 = vmatprep.subr.mxu0 0.0
        %1236 = vmatpush2.msra.mxu0 0.0
        %1237 = vmatprep.subr.mxu0 0.0
        %1238 = vmatpush2.msra.mxu0 0.0
        %1239 = vmatprep.subr.mxu0 0.0
        %1240 = vmatpush2.msra.mxu0 0.0
        %1241 = vmatprep.subr.mxu0 0.0
        %1242 = vmatpush2.msra.mxu0 0.0
        %1243 = vmatprep.subr.mxu0 0.0
        %1244 = vmatpush2.msra.mxu0 0.0
        %1245 = vmatprep.subr.mxu0 0.0
        %1246 = vmatpush2.msra.mxu0 0.0
        %1247 = vmatprep.subr.mxu0 0.0
        %1248 = vmatpush2.msra.mxu0 0.0
        %1249 = vmatprep.subr.mxu0 0.0
        %1250 = vmatpush2.msra.mxu0 0.0
        %1251 = vmatprep.subr.mxu0 0.0
        %1252 = vmatpush2.msra.mxu0 0.0
        %1253 = vmatprep.mubr.f32.mxu0 0.0
        %v1254 = vand.u32 %v983, 4294901760
        %1255 = vmatmul.mubr.f32.gmra.mxu0 %v1254
        %v1256 = vpop.f32.mrf.mxu0
        %v1257 = vadd.f32 %v1096, %v1256
        %v1258 = vpop.f32.mrf.mxu0
        %1259 = vmatprep.mubr.f32.mxu0 0.0
        %v1260 = vand.u32 %v989, 4294901760
        %1261 = vmatmul.mubr.f32.gmra.mxu0 %v1260
        %v1262 = vpop.f32.mrf.mxu0
        %v1263 = vadd.f32 %v1106, %v1262
        %v1264 = vpop.f32.mrf.mxu0
        %1265 = vdwg.mxu0
        %1266 = vmatprep.subr.mxu0 0.0
        %v1267 = vand.u32 %v1007, 4294901760
        %v1268 = vsub.f32 %v1007, %v1267
        %1269 = vmatpush1.msra.mxu0 %v1268
        %1270 = vmatprep.subr.mxu0 0.0
        %v1271 = vand.u32 %v1006, 4294901760
        %v1272 = vsub.f32 %v1006, %v1271
        %1273 = vmatpush1.msra.mxu0 %v1272
        %1274 = vmatprep.subr.mxu0 0.0
        %v1275 = vand.u32 %v1005, 4294901760
        %v1276 = vsub.f32 %v1005, %v1275
        %1277 = vmatpush1.msra.mxu0 %v1276
        %1278 = vmatprep.subr.mxu0 0.0
        %v1279 = vand.u32 %v1004, 4294901760
        %v1280 = vsub.f32 %v1004, %v1279
        %1281 = vmatpush1.msra.mxu0 %v1280
        %1282 = vmatprep.subr.mxu0 0.0
        %v1283 = vand.u32 %v1003, 4294901760
        %v1284 = vsub.f32 %v1003, %v1283
        %1285 = vmatpush1.msra.mxu0 %v1284
        %1286 = vmatprep.subr.mxu0 0.0
        %v1287 = vand.u32 %v1002, 4294901760
        %v1288 = vsub.f32 %v1002, %v1287
        %1289 = vmatpush1.msra.mxu0 %v1288
        %1290 = vmatprep.subr.mxu0 0.0
        %v1291 = vand.u32 %v1001, 4294901760
        %v1292 = vsub.f32 %v1001, %v1291
        %1293 = vmatpush1.msra.mxu0 %v1292
        %1294 = vmatprep.subr.mxu0 0.0
        %v1295 = vand.u32 %v1000, 4294901760
        %v1296 = vsub.f32 %v1000, %v1295
        %1297 = vmatpush1.msra.mxu0 %v1296
        %1298 = vmatprep.subr.mxu0 0.0
        %v1299 = vand.u32 %v999, 4294901760
        %v1300 = vsub.f32 %v999, %v1299
        %1301 = vmatpush1.msra.mxu0 %v1300
        %1302 = vmatprep.subr.mxu0 0.0
        %v1303 = vand.u32 %v998, 4294901760
        %v1304 = vsub.f32 %v998, %v1303
        %1305 = vmatpush1.msra.mxu0 %v1304
        %1306 = vmatprep.subr.mxu0 0.0
        %v1307 = vand.u32 %v997, 4294901760
        %v1308 = vsub.f32 %v997, %v1307
        %1309 = vmatpush1.msra.mxu0 %v1308
        %1310 = vmatprep.subr.mxu0 0.0
        %v1311 = vand.u32 %v996, 4294901760
        %v1312 = vsub.f32 %v996, %v1311
        %1313 = vmatpush1.msra.mxu0 %v1312
        %1314 = vmatprep.subr.mxu0 0.0
        %v1315 = vand.u32 %v995, 4294901760
        %v1316 = vsub.f32 %v995, %v1315
        %1317 = vmatpush1.msra.mxu0 %v1316
        %1318 = vmatprep.subr.mxu0 0.0
        %v1319 = vand.u32 %v994, 4294901760
        %v1320 = vsub.f32 %v994, %v1319
        %1321 = vmatpush1.msra.mxu0 %v1320
        %1322 = vmatprep.subr.mxu0 0.0
        %v1323 = vand.u32 %v993, 4294901760
        %v1324 = vsub.f32 %v993, %v1323
        %1325 = vmatpush1.msra.mxu0 %v1324
        %1326 = vmatprep.subr.mxu0 0.0
        %v1327 = vand.u32 %v992, 4294901760
        %v1328 = vsub.f32 %v992, %v1327
        %1329 = vmatpush1.msra.mxu0 %v1328
        %1330 = vmatprep.subr.mxu0 0.0
        %1331 = vmatpush2.msra.mxu0 0.0
        %1332 = vmatprep.subr.mxu0 0.0
        %1333 = vmatpush2.msra.mxu0 0.0
        %1334 = vmatprep.subr.mxu0 0.0
        %1335 = vmatpush2.msra.mxu0 0.0
        %1336 = vmatprep.subr.mxu0 0.0
        %1337 = vmatpush2.msra.mxu0 0.0
        %1338 = vmatprep.subr.mxu0 0.0
        %1339 = vmatpush2.msra.mxu0 0.0
        %1340 = vmatprep.subr.mxu0 0.0
        %1341 = vmatpush2.msra.mxu0 0.0
        %1342 = vmatprep.subr.mxu0 0.0
        %1343 = vmatpush2.msra.mxu0 0.0
        %1344 = vmatprep.subr.mxu0 0.0
        %1345 = vmatpush2.msra.mxu0 0.0
        %1346 = vmatprep.subr.mxu0 0.0
        %1347 = vmatpush2.msra.mxu0 0.0
        %1348 = vmatprep.subr.mxu0 0.0
        %1349 = vmatpush2.msra.mxu0 0.0
        %1350 = vmatprep.subr.mxu0 0.0
        %1351 = vmatpush2.msra.mxu0 0.0
        %1352 = vmatprep.subr.mxu0 0.0
        %1353 = vmatpush2.msra.mxu0 0.0
        %1354 = vmatprep.subr.mxu0 0.0
        %1355 = vmatpush2.msra.mxu0 0.0
        %1356 = vmatprep.subr.mxu0 0.0
        %1357 = vmatpush2.msra.mxu0 0.0
        %1358 = vmatprep.subr.mxu0 0.0
        %1359 = vmatpush2.msra.mxu0 0.0
        %1360 = vmatprep.subr.mxu0 0.0
        %1361 = vmatpush2.msra.mxu0 0.0
        %1362 = vmatprep.mubr.f32.mxu0 0.0
        %v1363 = vand.u32 %v983, 4294901760
        %v1364 = vsub.f32 %v983, %v1363
        %1365 = vmatmul.mubr.f32.gmra.mxu0 %v1364
        %v1366 = vpop.f32.mrf.mxu0
        %v1367 = vadd.f32 %v1257, %v1366
        %v1368 = vpop.f32.mrf.mxu0
        %1369 = vmatprep.mubr.f32.mxu0 0.0
        %v1370 = vand.u32 %v989, 4294901760
        %v1371 = vsub.f32 %v989, %v1370
        %1372 = vmatmul.mubr.f32.gmra.mxu0 %v1371
        %v1373 = vpop.f32.mrf.mxu0
        %v1374 = vadd.f32 %v1263, %v1373
        %v1375 = vpop.f32.mrf.mxu0
        %1376 = vdwg.mxu0
        %1377 = vmatprep.subr.mxu0 0.0
        %v1378 = vand.u32 %v1007, 4294901760
        %1379 = vmatpush1.msra.mxu0 %v1378
        %1380 = vmatprep.subr.mxu0 0.0
        %v1381 = vand.u32 %v1006, 4294901760
        %1382 = vmatpush1.msra.mxu0 %v1381
        %1383 = vmatprep.subr.mxu0 0.0
        %v1384 = vand.u32 %v1005, 4294901760
        %1385 = vmatpush1.msra.mxu0 %v1384
        %1386 = vmatprep.subr.mxu0 0.0
        %v1387 = vand.u32 %v1004, 4294901760
        %1388 = vmatpush1.msra.mxu0 %v1387
        %1389 = vmatprep.subr.mxu0 0.0
        %v1390 = vand.u32 %v1003, 4294901760
        %1391 = vmatpush1.msra.mxu0 %v1390
        %1392 = vmatprep.subr.mxu0 0.0
        %v1393 = vand.u32 %v1002, 4294901760
        %1394 = vmatpush1.msra.mxu0 %v1393
        %1395 = vmatprep.subr.mxu0 0.0
        %v1396 = vand.u32 %v1001, 4294901760
        %1397 = vmatpush1.msra.mxu0 %v1396
        %1398 = vmatprep.subr.mxu0 0.0
        %v1399 = vand.u32 %v1000, 4294901760
        %1400 = vmatpush1.msra.mxu0 %v1399
        %1401 = vmatprep.subr.mxu0 0.0
        %v1402 = vand.u32 %v999, 4294901760
        %1403 = vmatpush1.msra.mxu0 %v1402
        %1404 = vmatprep.subr.mxu0 0.0
        %v1405 = vand.u32 %v998, 4294901760
        %1406 = vmatpush1.msra.mxu0 %v1405
        %1407 = vmatprep.subr.mxu0 0.0
        %v1408 = vand.u32 %v997, 4294901760
        %1409 = vmatpush1.msra.mxu0 %v1408
        %1410 = vmatprep.subr.mxu0 0.0
        %v1411 = vand.u32 %v996, 4294901760
        %1412 = vmatpush1.msra.mxu0 %v1411
        %1413 = vmatprep.subr.mxu0 0.0
        %v1414 = vand.u32 %v995, 4294901760
        %1415 = vmatpush1.msra.mxu0 %v1414
        %1416 = vmatprep.subr.mxu0 0.0
        %v1417 = vand.u32 %v994, 4294901760
        %1418 = vmatpush1.msra.mxu0 %v1417
        %1419 = vmatprep.subr.mxu0 0.0
        %v1420 = vand.u32 %v993, 4294901760
        %1421 = vmatpush1.msra.mxu0 %v1420
        %1422 = vmatprep.subr.mxu0 0.0
        %v1423 = vand.u32 %v992, 4294901760
        %1424 = vmatpush1.msra.mxu0 %v1423
        %1425 = vmatprep.subr.mxu0 0.0
        %1426 = vmatpush2.msra.mxu0 0.0
        %1427 = vmatprep.subr.mxu0 0.0
        %1428 = vmatpush2.msra.mxu0 0.0
        %1429 = vmatprep.subr.mxu0 0.0
        %1430 = vmatpush2.msra.mxu0 0.0
        %1431 = vmatprep.subr.mxu0 0.0
        %1432 = vmatpush2.msra.mxu0 0.0
        %1433 = vmatprep.subr.mxu0 0.0
        %1434 = vmatpush2.msra.mxu0 0.0
        %1435 = vmatprep.subr.mxu0 0.0
        %1436 = vmatpush2.msra.mxu0 0.0
        %1437 = vmatprep.subr.mxu0 0.0
        %1438 = vmatpush2.msra.mxu0 0.0
        %1439 = vmatprep.subr.mxu0 0.0
        %1440 = vmatpush2.msra.mxu0 0.0
        %1441 = vmatprep.subr.mxu0 0.0
        %1442 = vmatpush2.msra.mxu0 0.0
        %1443 = vmatprep.subr.mxu0 0.0
        %1444 = vmatpush2.msra.mxu0 0.0
        %1445 = vmatprep.subr.mxu0 0.0
        %1446 = vmatpush2.msra.mxu0 0.0
        %1447 = vmatprep.subr.mxu0 0.0
        %1448 = vmatpush2.msra.mxu0 0.0
        %1449 = vmatprep.subr.mxu0 0.0
        %1450 = vmatpush2.msra.mxu0 0.0
        %1451 = vmatprep.subr.mxu0 0.0
        %1452 = vmatpush2.msra.mxu0 0.0
        %1453 = vmatprep.subr.mxu0 0.0
        %1454 = vmatpush2.msra.mxu0 0.0
        %1455 = vmatprep.subr.mxu0 0.0
        %1456 = vmatpush2.msra.mxu0 0.0
        %1457 = vmatprep.mubr.f32.mxu0 0.0
        %v1458 = vand.u32 %v983, 4294901760
        %v1459 = vsub.f32 %v983, %v1458
        %v1460 = vand.u32 %v1459, 4294901760
        %1461 = vmatmul.mubr.f32.gmra.mxu0 %v1460
        %v1462 = vpop.f32.mrf.mxu0
        %v1463 = vadd.f32 %v1367, %v1462
        %v1464 = vpop.f32.mrf.mxu0
        %1465 = vmatprep.mubr.f32.mxu0 0.0
        %v1466 = vand.u32 %v989, 4294901760
        %v1467 = vsub.f32 %v989, %v1466
        %v1468 = vand.u32 %v1467, 4294901760
        %1469 = vmatmul.mubr.f32.gmra.mxu0 %v1468
        %v1470 = vpop.f32.mrf.mxu0
        %v1471 = vadd.f32 %v1374, %v1470
        %v1472 = vpop.f32.mrf.mxu0
        %1473 = vdwg.mxu0
        %1474 = vmatprep.subr.mxu0 0.0
        %v1475 = vand.u32 %v1007, 4294901760
        %v1476 = vsub.f32 %v1007, %v1475
        %v1477 = vand.u32 %v1476, 4294901760
        %1478 = vmatpush1.msra.mxu0 %v1477
        %1479 = vmatprep.subr.mxu0 0.0
        %v1480 = vand.u32 %v1006, 4294901760
        %v1481 = vsub.f32 %v1006, %v1480
        %v1482 = vand.u32 %v1481, 4294901760
        %1483 = vmatpush1.msra.mxu0 %v1482
        %1484 = vmatprep.subr.mxu0 0.0
        %v1485 = vand.u32 %v1005, 4294901760
        %v1486 = vsub.f32 %v1005, %v1485
        %v1487 = vand.u32 %v1486, 4294901760
        %1488 = vmatpush1.msra.mxu0 %v1487
        %1489 = vmatprep.subr.mxu0 0.0
        %v1490 = vand.u32 %v1004, 4294901760
        %v1491 = vsub.f32 %v1004, %v1490
        %v1492 = vand.u32 %v1491, 4294901760
        %1493 = vmatpush1.msra.mxu0 %v1492
        %1494 = vmatprep.subr.mxu0 0.0
        %v1495 = vand.u32 %v1003, 4294901760
        %v1496 = vsub.f32 %v1003, %v1495
        %v1497 = vand.u32 %v1496, 4294901760
        %1498 = vmatpush1.msra.mxu0 %v1497
        %1499 = vmatprep.subr.mxu0 0.0
        %v1500 = vand.u32 %v1002, 4294901760
        %v1501 = vsub.f32 %v1002, %v1500
        %v1502 = vand.u32 %v1501, 4294901760
        %1503 = vmatpush1.msra.mxu0 %v1502
        %1504 = vmatprep.subr.mxu0 0.0
        %v1505 = vand.u32 %v1001, 4294901760
        %v1506 = vsub.f32 %v1001, %v1505
        %v1507 = vand.u32 %v1506, 4294901760
        %1508 = vmatpush1.msra.mxu0 %v1507
        %1509 = vmatprep.subr.mxu0 0.0
        %v1510 = vand.u32 %v1000, 4294901760
        %v1511 = vsub.f32 %v1000, %v1510
        %v1512 = vand.u32 %v1511, 4294901760
        %1513 = vmatpush1.msra.mxu0 %v1512
        %1514 = vmatprep.subr.mxu0 0.0
        %v1515 = vand.u32 %v999, 4294901760
        %v1516 = vsub.f32 %v999, %v1515
        %v1517 = vand.u32 %v1516, 4294901760
        %1518 = vmatpush1.msra.mxu0 %v1517
        %1519 = vmatprep.subr.mxu0 0.0
        %v1520 = vand.u32 %v998, 4294901760
        %v1521 = vsub.f32 %v998, %v1520
        %v1522 = vand.u32 %v1521, 4294901760
        %1523 = vmatpush1.msra.mxu0 %v1522
        %1524 = vmatprep.subr.mxu0 0.0
        %v1525 = vand.u32 %v997, 4294901760
        %v1526 = vsub.f32 %v997, %v1525
        %v1527 = vand.u32 %v1526, 4294901760
        %1528 = vmatpush1.msra.mxu0 %v1527
        %1529 = vmatprep.subr.mxu0 0.0
        %v1530 = vand.u32 %v996, 4294901760
        %v1531 = vsub.f32 %v996, %v1530
        %v1532 = vand.u32 %v1531, 4294901760
        %1533 = vmatpush1.msra.mxu0 %v1532
        %1534 = vmatprep.subr.mxu0 0.0
        %v1535 = vand.u32 %v995, 4294901760
        %v1536 = vsub.f32 %v995, %v1535
        %v1537 = vand.u32 %v1536, 4294901760
        %1538 = vmatpush1.msra.mxu0 %v1537
        %1539 = vmatprep.subr.mxu0 0.0
        %v1540 = vand.u32 %v994, 4294901760
        %v1541 = vsub.f32 %v994, %v1540
        %v1542 = vand.u32 %v1541, 4294901760
        %1543 = vmatpush1.msra.mxu0 %v1542
        %1544 = vmatprep.subr.mxu0 0.0
        %v1545 = vand.u32 %v993, 4294901760
        %v1546 = vsub.f32 %v993, %v1545
        %v1547 = vand.u32 %v1546, 4294901760
        %1548 = vmatpush1.msra.mxu0 %v1547
        %1549 = vmatprep.subr.mxu0 0.0
        %v1550 = vand.u32 %v992, 4294901760
        %v1551 = vsub.f32 %v992, %v1550
        %v1552 = vand.u32 %v1551, 4294901760
        %1553 = vmatpush1.msra.mxu0 %v1552
        %1554 = vmatprep.subr.mxu0 0.0
        %1555 = vmatpush2.msra.mxu0 0.0
        %1556 = vmatprep.subr.mxu0 0.0
        %1557 = vmatpush2.msra.mxu0 0.0
        %1558 = vmatprep.subr.mxu0 0.0
        %1559 = vmatpush2.msra.mxu0 0.0
        %1560 = vmatprep.subr.mxu0 0.0
        %1561 = vmatpush2.msra.mxu0 0.0
        %1562 = vmatprep.subr.mxu0 0.0
        %1563 = vmatpush2.msra.mxu0 0.0
        %1564 = vmatprep.subr.mxu0 0.0
        %1565 = vmatpush2.msra.mxu0 0.0
        %1566 = vmatprep.subr.mxu0 0.0
        %1567 = vmatpush2.msra.mxu0 0.0
        %1568 = vmatprep.subr.mxu0 0.0
        %1569 = vmatpush2.msra.mxu0 0.0
        %1570 = vmatprep.subr.mxu0 0.0
        %1571 = vmatpush2.msra.mxu0 0.0
        %1572 = vmatprep.subr.mxu0 0.0
        %1573 = vmatpush2.msra.mxu0 0.0
        %1574 = vmatprep.subr.mxu0 0.0
        %1575 = vmatpush2.msra.mxu0 0.0
        %1576 = vmatprep.subr.mxu0 0.0
        %1577 = vmatpush2.msra.mxu0 0.0
        %1578 = vmatprep.subr.mxu0 0.0
        %1579 = vmatpush2.msra.mxu0 0.0
        %1580 = vmatprep.subr.mxu0 0.0
        %1581 = vmatpush2.msra.mxu0 0.0
        %1582 = vmatprep.subr.mxu0 0.0
        %1583 = vmatpush2.msra.mxu0 0.0
        %1584 = vmatprep.subr.mxu0 0.0
        %1585 = vmatpush2.msra.mxu0 0.0
        %1586 = vmatprep.mubr.f32.mxu0 0.0
        %v1587 = vand.u32 %v983, 4294901760
        %1588 = vmatmul.mubr.f32.gmra.mxu0 %v1587
        %v1589 = vpop.f32.mrf.mxu0
        %v1590 = vadd.f32 %v1463, %v1589
        %v1591 = vpop.f32.mrf.mxu0
        %1592 = vmatprep.mubr.f32.mxu0 0.0
        %v1593 = vand.u32 %v989, 4294901760
        %1594 = vmatmul.mubr.f32.gmra.mxu0 %v1593
        %v1595 = vpop.f32.mrf.mxu0
        %v1596 = vadd.f32 %v1471, %v1595
        %v1597 = vpop.f32.mrf.mxu0
        %1598 = vdwg.mxu0
        %1599 = vmatprep.subr.mxu0 0.0
        %v1600 = vand.u32 %v1007, 4294901760
        %1601 = vmatpush1.msra.mxu0 %v1600
        %1602 = vmatprep.subr.mxu0 0.0
        %v1603 = vand.u32 %v1006, 4294901760
        %1604 = vmatpush1.msra.mxu0 %v1603
        %1605 = vmatprep.subr.mxu0 0.0
        %v1606 = vand.u32 %v1005, 4294901760
        %1607 = vmatpush1.msra.mxu0 %v1606
        %1608 = vmatprep.subr.mxu0 0.0
        %v1609 = vand.u32 %v1004, 4294901760
        %1610 = vmatpush1.msra.mxu0 %v1609
        %1611 = vmatprep.subr.mxu0 0.0
        %v1612 = vand.u32 %v1003, 4294901760
        %1613 = vmatpush1.msra.mxu0 %v1612
        %1614 = vmatprep.subr.mxu0 0.0
        %v1615 = vand.u32 %v1002, 4294901760
        %1616 = vmatpush1.msra.mxu0 %v1615
        %1617 = vmatprep.subr.mxu0 0.0
        %v1618 = vand.u32 %v1001, 4294901760
        %1619 = vmatpush1.msra.mxu0 %v1618
        %1620 = vmatprep.subr.mxu0 0.0
        %v1621 = vand.u32 %v1000, 4294901760
        %1622 = vmatpush1.msra.mxu0 %v1621
        %1623 = vmatprep.subr.mxu0 0.0
        %v1624 = vand.u32 %v999, 4294901760
        %1625 = vmatpush1.msra.mxu0 %v1624
        %1626 = vmatprep.subr.mxu0 0.0
        %v1627 = vand.u32 %v998, 4294901760
        %1628 = vmatpush1.msra.mxu0 %v1627
        %1629 = vmatprep.subr.mxu0 0.0
        %v1630 = vand.u32 %v997, 4294901760
        %1631 = vmatpush1.msra.mxu0 %v1630
        %1632 = vmatprep.subr.mxu0 0.0
        %v1633 = vand.u32 %v996, 4294901760
        %1634 = vmatpush1.msra.mxu0 %v1633
        %1635 = vmatprep.subr.mxu0 0.0
        %v1636 = vand.u32 %v995, 4294901760
        %1637 = vmatpush1.msra.mxu0 %v1636
        %1638 = vmatprep.subr.mxu0 0.0
        %v1639 = vand.u32 %v994, 4294901760
        %1640 = vmatpush1.msra.mxu0 %v1639
        %1641 = vmatprep.subr.mxu0 0.0
        %v1642 = vand.u32 %v993, 4294901760
        %1643 = vmatpush1.msra.mxu0 %v1642
        %1644 = vmatprep.subr.mxu0 0.0
        %v1645 = vand.u32 %v992, 4294901760
        %1646 = vmatpush1.msra.mxu0 %v1645
        %1647 = vmatprep.subr.mxu0 0.0
        %1648 = vmatpush2.msra.mxu0 0.0
        %1649 = vmatprep.subr.mxu0 0.0
        %1650 = vmatpush2.msra.mxu0 0.0
        %1651 = vmatprep.subr.mxu0 0.0
        %1652 = vmatpush2.msra.mxu0 0.0
        %1653 = vmatprep.subr.mxu0 0.0
        %1654 = vmatpush2.msra.mxu0 0.0
        %1655 = vmatprep.subr.mxu0 0.0
        %1656 = vmatpush2.msra.mxu0 0.0
        %1657 = vmatprep.subr.mxu0 0.0
        %1658 = vmatpush2.msra.mxu0 0.0
        %1659 = vmatprep.subr.mxu0 0.0
        %1660 = vmatpush2.msra.mxu0 0.0
        %1661 = vmatprep.subr.mxu0 0.0
        %1662 = vmatpush2.msra.mxu0 0.0
        %1663 = vmatprep.subr.mxu0 0.0
        %1664 = vmatpush2.msra.mxu0 0.0
        %1665 = vmatprep.subr.mxu0 0.0
        %1666 = vmatpush2.msra.mxu0 0.0
        %1667 = vmatprep.subr.mxu0 0.0
        %1668 = vmatpush2.msra.mxu0 0.0
        %1669 = vmatprep.subr.mxu0 0.0
        %1670 = vmatpush2.msra.mxu0 0.0
        %1671 = vmatprep.subr.mxu0 0.0
        %1672 = vmatpush2.msra.mxu0 0.0
        %1673 = vmatprep.subr.mxu0 0.0
        %1674 = vmatpush2.msra.mxu0 0.0
        %1675 = vmatprep.subr.mxu0 0.0
        %1676 = vmatpush2.msra.mxu0 0.0
        %1677 = vmatprep.subr.mxu0 0.0
        %1678 = vmatpush2.msra.mxu0 0.0
        %1679 = vmatprep.mubr.f32.mxu0 0.0
        %v1680 = vand.u32 %v983, 4294901760
        %1681 = vmatmul.mubr.f32.gmra.mxu0 %v1680
        %v1682 = vpop.f32.mrf.mxu0
        %v1683 = vadd.f32 %v1590, %v1682
        %v1684 = vpop.f32.mrf.mxu0
        %1685 = vmatprep.mubr.f32.mxu0 0.0
        %v1686 = vand.u32 %v989, 4294901760
        %1687 = vmatmul.mubr.f32.gmra.mxu0 %v1686
        %v1688 = vpop.f32.mrf.mxu0
        %v1689 = vadd.f32 %v1596, %v1688
        %v1690 = vpop.f32.mrf.mxu0
        %1691 = vdwg.mxu0
        %v1692 = vld [vmem:[%s286] sm:$0xff]
        %v1693 = vld [vmem:[%s286 + $0x8] sm:$0xff]
        %v1694 = vld [vmem:[%s286 + $0x10] sm:$0xff]
        %v1695 = vld [vmem:[%s286 + $0x18] sm:$0xff]
        %v1696 = vld [vmem:[%s286 + $0x20] sm:$0xff]
        %v1697 = vld [vmem:[%s286 + $0x28] sm:$0xff]
        %v1698 = vld [vmem:[%s286 + $0x30] sm:$0xff]
        %v1699 = vld [vmem:[%s286 + $0x38] sm:$0xff]
        %v1700 = vld [vmem:[%s286 + $0x40] sm:$0xff]
        %v1701 = vld [vmem:[%s286 + $0x48] sm:$0xff]
        %v1702 = vld [vmem:[%s286 + $0x50] sm:$0xff]
        %v1703 = vld [vmem:[%s286 + $0x58] sm:$0xff]
        %v1704 = vld [vmem:[%s286 + $0x60] sm:$0xff]
        %v1705 = vld [vmem:[%s286 + $0x68] sm:$0xff]
        %v1706 = vld [vmem:[%s286 + $0x70] sm:$0xff]
        %v1707 = vld [vmem:[%s286 + $0x78] sm:$0xff]
        %v1708 = vld [vmem:[%s286 + $0x80] sm:$0xff]
        %v1709 = vld [vmem:[%s286 + $0x88] sm:$0xff]
        %v1710 = vld [vmem:[%s286 + $0x90] sm:$0xff]
        %v1711 = vld [vmem:[%s286 + $0x98] sm:$0xff]
        %v1712 = vld [vmem:[%s286 + $0xa0] sm:$0xff]
        %v1713 = vld [vmem:[%s286 + $0xa8] sm:$0xff]
        %v1714 = vld [vmem:[%s286 + $0xb0] sm:$0xff]
        %v1715 = vld [vmem:[%s286 + $0xb8] sm:$0xff]
        %v1716 = vld [vmem:[%s286 + $0xc0] sm:$0xff]
        %v1717 = vld [vmem:[%s286 + $0xc8] sm:$0xff]
        %v1718 = vld [vmem:[%s286 + $0xd0] sm:$0xff]
        %v1719 = vld [vmem:[%s286 + $0xd8] sm:$0xff]
        %v1720 = vld [vmem:[%s286 + $0xe0] sm:$0xff]
        %v1721 = vld [vmem:[%s286 + $0xe8] sm:$0xff]
        %v1722 = vld [vmem:[%s286 + $0xf0] sm:$0xff]
        %v1723 = vld [vmem:[%s286 + $0xf8] sm:$0xff]
        %1724 = vmatprep.subr.mxu0 0.0
        %v1725 = vand.u32 %v1707, 4294901760
        %1726 = vmatpush1.xpose.msra.mxu0 %v1725
        %1727 = vmatprep.subr.mxu0 0.0
        %v1728 = vand.u32 %v1706, 4294901760
        %1729 = vmatpush1.xpose.msra.mxu0 %v1728
        %1730 = vmatprep.subr.mxu0 0.0
        %v1731 = vand.u32 %v1705, 4294901760
        %1732 = vmatpush1.xpose.msra.mxu0 %v1731
        %1733 = vmatprep.subr.mxu0 0.0
        %v1734 = vand.u32 %v1704, 4294901760
        %1735 = vmatpush1.xpose.msra.mxu0 %v1734
        %1736 = vmatprep.subr.mxu0 0.0
        %v1737 = vand.u32 %v1703, 4294901760
        %1738 = vmatpush1.xpose.msra.mxu0 %v1737
        %1739 = vmatprep.subr.mxu0 0.0
        %v1740 = vand.u32 %v1702, 4294901760
        %1741 = vmatpush1.xpose.msra.mxu0 %v1740
        %1742 = vmatprep.subr.mxu0 0.0
        %v1743 = vand.u32 %v1701, 4294901760
        %1744 = vmatpush1.xpose.msra.mxu0 %v1743
        %1745 = vmatprep.subr.mxu0 0.0
        %v1746 = vand.u32 %v1700, 4294901760
        %1747 = vmatpush1.xpose.msra.mxu0 %v1746
        %1748 = vmatprep.subr.mxu0 0.0
        %v1749 = vand.u32 %v1699, 4294901760
        %1750 = vmatpush1.xpose.msra.mxu0 %v1749
        %1751 = vmatprep.subr.mxu0 0.0
        %v1752 = vand.u32 %v1698, 4294901760
        %1753 = vmatpush1.xpose.msra.mxu0 %v1752
        %1754 = vmatprep.subr.mxu0 0.0
        %v1755 = vand.u32 %v1697, 4294901760
        %1756 = vmatpush1.xpose.msra.mxu0 %v1755
        %1757 = vmatprep.subr.mxu0 0.0
        %v1758 = vand.u32 %v1696, 4294901760
        %1759 = vmatpush1.xpose.msra.mxu0 %v1758
        %1760 = vmatprep.subr.mxu0 0.0
        %v1761 = vand.u32 %v1695, 4294901760
        %1762 = vmatpush1.xpose.msra.mxu0 %v1761
        %1763 = vmatprep.subr.mxu0 0.0
        %v1764 = vand.u32 %v1694, 4294901760
        %1765 = vmatpush1.xpose.msra.mxu0 %v1764
        %1766 = vmatprep.subr.mxu0 0.0
        %v1767 = vand.u32 %v1693, 4294901760
        %1768 = vmatpush1.xpose.msra.mxu0 %v1767
        %1769 = vmatprep.subr.mxu0 0.0
        %v1770 = vand.u32 %v1692, 4294901760
        %1771 = vmatpush1.xpose.msra.mxu0 %v1770
        %1772 = vmatprep.subr.mxu0 0.0
        %1773 = vmatpush2.xpose.msra.mxu0 0.0
        %1774 = vmatprep.subr.mxu0 0.0
        %1775 = vmatpush2.xpose.msra.mxu0 0.0
        %1776 = vmatprep.subr.mxu0 0.0
        %1777 = vmatpush2.xpose.msra.mxu0 0.0
        %1778 = vmatprep.subr.mxu0 0.0
        %1779 = vmatpush2.xpose.msra.mxu0 0.0
        %1780 = vmatprep.subr.mxu0 0.0
        %1781 = vmatpush2.xpose.msra.mxu0 0.0
        %1782 = vmatprep.subr.mxu0 0.0
        %1783 = vmatpush2.xpose.msra.mxu0 0.0
        %1784 = vmatprep.subr.mxu0 0.0
        %1785 = vmatpush2.xpose.msra.mxu0 0.0
        %1786 = vmatprep.subr.mxu0 0.0
        %1787 = vmatpush2.xpose.msra.mxu0 0.0
        %1788 = vmatprep.subr.mxu0 0.0
        %1789 = vmatpush2.xpose.msra.mxu0 0.0
        %1790 = vmatprep.subr.mxu0 0.0
        %1791 = vmatpush2.xpose.msra.mxu0 0.0
        %1792 = vmatprep.subr.mxu0 0.0
        %1793 = vmatpush2.xpose.msra.mxu0 0.0
        %1794 = vmatprep.subr.mxu0 0.0
        %1795 = vmatpush2.xpose.msra.mxu0 0.0
        %1796 = vmatprep.subr.mxu0 0.0
        %1797 = vmatpush2.xpose.msra.mxu0 0.0
        %1798 = vmatprep.subr.mxu0 0.0
        %1799 = vmatpush2.xpose.msra.mxu0 0.0
        %1800 = vmatprep.subr.mxu0 0.0
        %1801 = vmatpush2.xpose.msra.mxu0 0.0
        %1802 = vmatprep.subr.mxu0 0.0
        %1803 = vmatpush2.xpose.msra.mxu0 0.0
        %1804 = vmatprep.mubr.f32.mxu0 0.0
        %v1805 = vand.u32 %v983, 4294901760
        %v1806 = vsub.f32 %v983, %v1805
        %v1807 = vand.u32 %v1806, 4294901760
        %v1808 = vsub.f32 %v1806, %v1807
        %v1809 = vand.u32 %v1808, 4294901760
        %1810 = vmatmul.mubr.f32.gmra.mxu0 %v1809
        %v1811 = vpop.f32.mrf.mxu0
        %v1812 = vadd.f32 0.0, %v1811
        %v1813 = vpop.f32.mrf.mxu0
        %1814 = vdwg.mxu0
        %1815 = vmatprep.subr.mxu0 0.0
        %v1816 = vand.u32 %v1707, 4294901760
        %v1817 = vsub.f32 %v1707, %v1816
        %v1818 = vand.u32 %v1817, 4294901760
        %v1819 = vsub.f32 %v1817, %v1818
        %v1820 = vand.u32 %v1819, 4294901760
        %1821 = vmatpush1.xpose.msra.mxu0 %v1820
        %1822 = vmatprep.subr.mxu0 0.0
        %v1823 = vand.u32 %v1706, 4294901760
        %v1824 = vsub.f32 %v1706, %v1823
        %v1825 = vand.u32 %v1824, 4294901760
        %v1826 = vsub.f32 %v1824, %v1825
        %v1827 = vand.u32 %v1826, 4294901760
        %1828 = vmatpush1.xpose.msra.mxu0 %v1827
        %1829 = vmatprep.subr.mxu0 0.0
        %v1830 = vand.u32 %v1705, 4294901760
        %v1831 = vsub.f32 %v1705, %v1830
        %v1832 = vand.u32 %v1831, 4294901760
        %v1833 = vsub.f32 %v1831, %v1832
        %v1834 = vand.u32 %v1833, 4294901760
        %1835 = vmatpush1.xpose.msra.mxu0 %v1834
        %1836 = vmatprep.subr.mxu0 0.0
        %v1837 = vand.u32 %v1704, 4294901760
        %v1838 = vsub.f32 %v1704, %v1837
        %v1839 = vand.u32 %v1838, 4294901760
        %v1840 = vsub.f32 %v1838, %v1839
        %v1841 = vand.u32 %v1840, 4294901760
        %1842 = vmatpush1.xpose.msra.mxu0 %v1841
        %1843 = vmatprep.subr.mxu0 0.0
        %v1844 = vand.u32 %v1703, 4294901760
        %v1845 = vsub.f32 %v1703, %v1844
        %v1846 = vand.u32 %v1845, 4294901760
        %v1847 = vsub.f32 %v1845, %v1846
        %v1848 = vand.u32 %v1847, 4294901760
        %1849 = vmatpush1.xpose.msra.mxu0 %v1848
        %1850 = vmatprep.subr.mxu0 0.0
        %v1851 = vand.u32 %v1702, 4294901760
        %v1852 = vsub.f32 %v1702, %v1851
        %v1853 = vand.u32 %v1852, 4294901760
        %v1854 = vsub.f32 %v1852, %v1853
        %v1855 = vand.u32 %v1854, 4294901760
        %1856 = vmatpush1.xpose.msra.mxu0 %v1855
        %1857 = vmatprep.subr.mxu0 0.0
        %v1858 = vand.u32 %v1701, 4294901760
        %v1859 = vsub.f32 %v1701, %v1858
        %v1860 = vand.u32 %v1859, 4294901760
        %v1861 = vsub.f32 %v1859, %v1860
        %v1862 = vand.u32 %v1861, 4294901760
        %1863 = vmatpush1.xpose.msra.mxu0 %v1862
        %1864 = vmatprep.subr.mxu0 0.0
        %v1865 = vand.u32 %v1700, 4294901760
        %v1866 = vsub.f32 %v1700, %v1865
        %v1867 = vand.u32 %v1866, 4294901760
        %v1868 = vsub.f32 %v1866, %v1867
        %v1869 = vand.u32 %v1868, 4294901760
        %1870 = vmatpush1.xpose.msra.mxu0 %v1869
        %1871 = vmatprep.subr.mxu0 0.0
        %v1872 = vand.u32 %v1699, 4294901760
        %v1873 = vsub.f32 %v1699, %v1872
        %v1874 = vand.u32 %v1873, 4294901760
        %v1875 = vsub.f32 %v1873, %v1874
        %v1876 = vand.u32 %v1875, 4294901760
        %1877 = vmatpush1.xpose.msra.mxu0 %v1876
        %1878 = vmatprep.subr.mxu0 0.0
        %v1879 = vand.u32 %v1698, 4294901760
        %v1880 = vsub.f32 %v1698, %v1879
        %v1881 = vand.u32 %v1880, 4294901760
        %v1882 = vsub.f32 %v1880, %v1881
        %v1883 = vand.u32 %v1882, 4294901760
        %1884 = vmatpush1.xpose.msra.mxu0 %v1883
        %1885 = vmatprep.subr.mxu0 0.0
        %v1886 = vand.u32 %v1697, 4294901760
        %v1887 = vsub.f32 %v1697, %v1886
        %v1888 = vand.u32 %v1887, 4294901760
        %v1889 = vsub.f32 %v1887, %v1888
        %v1890 = vand.u32 %v1889, 4294901760
        %1891 = vmatpush1.xpose.msra.mxu0 %v1890
        %1892 = vmatprep.subr.mxu0 0.0
        %v1893 = vand.u32 %v1696, 4294901760
        %v1894 = vsub.f32 %v1696, %v1893
        %v1895 = vand.u32 %v1894, 4294901760
        %v1896 = vsub.f32 %v1894, %v1895
        %v1897 = vand.u32 %v1896, 4294901760
        %1898 = vmatpush1.xpose.msra.mxu0 %v1897
        %1899 = vmatprep.subr.mxu0 0.0
        %v1900 = vand.u32 %v1695, 4294901760
        %v1901 = vsub.f32 %v1695, %v1900
        %v1902 = vand.u32 %v1901, 4294901760
        %v1903 = vsub.f32 %v1901, %v1902
        %v1904 = vand.u32 %v1903, 4294901760
        %1905 = vmatpush1.xpose.msra.mxu0 %v1904
        %1906 = vmatprep.subr.mxu0 0.0
        %v1907 = vand.u32 %v1694, 4294901760
        %v1908 = vsub.f32 %v1694, %v1907
        %v1909 = vand.u32 %v1908, 4294901760
        %v1910 = vsub.f32 %v1908, %v1909
        %v1911 = vand.u32 %v1910, 4294901760
        %1912 = vmatpush1.xpose.msra.mxu0 %v1911
        %1913 = vmatprep.subr.mxu0 0.0
        %v1914 = vand.u32 %v1693, 4294901760
        %v1915 = vsub.f32 %v1693, %v1914
        %v1916 = vand.u32 %v1915, 4294901760
        %v1917 = vsub.f32 %v1915, %v1916
        %v1918 = vand.u32 %v1917, 4294901760
        %1919 = vmatpush1.xpose.msra.mxu0 %v1918
        %1920 = vmatprep.subr.mxu0 0.0
        %v1921 = vand.u32 %v1692, 4294901760
        %v1922 = vsub.f32 %v1692, %v1921
        %v1923 = vand.u32 %v1922, 4294901760
        %v1924 = vsub.f32 %v1922, %v1923
        %v1925 = vand.u32 %v1924, 4294901760
        %1926 = vmatpush1.xpose.msra.mxu0 %v1925
        %1927 = vmatprep.subr.mxu0 0.0
        %1928 = vmatpush2.xpose.msra.mxu0 0.0
        %1929 = vmatprep.subr.mxu0 0.0
        %1930 = vmatpush2.xpose.msra.mxu0 0.0
        %1931 = vmatprep.subr.mxu0 0.0
        %1932 = vmatpush2.xpose.msra.mxu0 0.0
        %1933 = vmatprep.subr.mxu0 0.0
        %1934 = vmatpush2.xpose.msra.mxu0 0.0
        %1935 = vmatprep.subr.mxu0 0.0
        %1936 = vmatpush2.xpose.msra.mxu0 0.0
        %1937 = vmatprep.subr.mxu0 0.0
        %1938 = vmatpush2.xpose.msra.mxu0 0.0
        %1939 = vmatprep.subr.mxu0 0.0
        %1940 = vmatpush2.xpose.msra.mxu0 0.0
        %1941 = vmatprep.subr.mxu0 0.0
        %1942 = vmatpush2.xpose.msra.mxu0 0.0
        %1943 = vmatprep.subr.mxu0 0.0
        %1944 = vmatpush2.xpose.msra.mxu0 0.0
        %1945 = vmatprep.subr.mxu0 0.0
        %1946 = vmatpush2.xpose.msra.mxu0 0.0
        %1947 = vmatprep.subr.mxu0 0.0
        %1948 = vmatpush2.xpose.msra.mxu0 0.0
        %1949 = vmatprep.subr.mxu0 0.0
        %1950 = vmatpush2.xpose.msra.mxu0 0.0
        %1951 = vmatprep.subr.mxu0 0.0
        %1952 = vmatpush2.xpose.msra.mxu0 0.0
        %1953 = vmatprep.subr.mxu0 0.0
        %1954 = vmatpush2.xpose.msra.mxu0 0.0
        %1955 = vmatprep.subr.mxu0 0.0
        %1956 = vmatpush2.xpose.msra.mxu0 0.0
        %1957 = vmatprep.subr.mxu0 0.0
        %1958 = vmatpush2.xpose.msra.mxu0 0.0
        %1959 = vmatprep.mubr.f32.mxu0 0.0
        %v1960 = vand.u32 %v983, 4294901760
        %1961 = vmatmul.mubr.f32.gmra.mxu0 %v1960
        %v1962 = vpop.f32.mrf.mxu0
        %v1963 = vadd.f32 %v1812, %v1962
        %v1964 = vpop.f32.mrf.mxu0
        %1965 = vdwg.mxu0
        %1966 = vmatprep.subr.mxu0 0.0
        %v1967 = vand.u32 %v1707, 4294901760
        %v1968 = vsub.f32 %v1707, %v1967
        %1969 = vmatpush1.xpose.msra.mxu0 %v1968
        %1970 = vmatprep.subr.mxu0 0.0
        %v1971 = vand.u32 %v1706, 4294901760
        %v1972 = vsub.f32 %v1706, %v1971
        %1973 = vmatpush1.xpose.msra.mxu0 %v1972
        %1974 = vmatprep.subr.mxu0 0.0
        %v1975 = vand.u32 %v1705, 4294901760
        %v1976 = vsub.f32 %v1705, %v1975
        %1977 = vmatpush1.xpose.msra.mxu0 %v1976
        %1978 = vmatprep.subr.mxu0 0.0
        %v1979 = vand.u32 %v1704, 4294901760
        %v1980 = vsub.f32 %v1704, %v1979
        %1981 = vmatpush1.xpose.msra.mxu0 %v1980
        %1982 = vmatprep.subr.mxu0 0.0
        %v1983 = vand.u32 %v1703, 4294901760
        %v1984 = vsub.f32 %v1703, %v1983
        %1985 = vmatpush1.xpose.msra.mxu0 %v1984
        %1986 = vmatprep.subr.mxu0 0.0
        %v1987 = vand.u32 %v1702, 4294901760
        %v1988 = vsub.f32 %v1702, %v1987
        %1989 = vmatpush1.xpose.msra.mxu0 %v1988
        %1990 = vmatprep.subr.mxu0 0.0
        %v1991 = vand.u32 %v1701, 4294901760
        %v1992 = vsub.f32 %v1701, %v1991
        %1993 = vmatpush1.xpose.msra.mxu0 %v1992
        %1994 = vmatprep.subr.mxu0 0.0
        %v1995 = vand.u32 %v1700, 4294901760
        %v1996 = vsub.f32 %v1700, %v1995
        %1997 = vmatpush1.xpose.msra.mxu0 %v1996
        %1998 = vmatprep.subr.mxu0 0.0
        %v1999 = vand.u32 %v1699, 4294901760
        %v2000 = vsub.f32 %v1699, %v1999
        %2001 = vmatpush1.xpose.msra.mxu0 %v2000
        %2002 = vmatprep.subr.mxu0 0.0
        %v2003 = vand.u32 %v1698, 4294901760
        %v2004 = vsub.f32 %v1698, %v2003
        %2005 = vmatpush1.xpose.msra.mxu0 %v2004
        %2006 = vmatprep.subr.mxu0 0.0
        %v2007 = vand.u32 %v1697, 4294901760
        %v2008 = vsub.f32 %v1697, %v2007
        %2009 = vmatpush1.xpose.msra.mxu0 %v2008
        %2010 = vmatprep.subr.mxu0 0.0
        %v2011 = vand.u32 %v1696, 4294901760
        %v2012 = vsub.f32 %v1696, %v2011
        %2013 = vmatpush1.xpose.msra.mxu0 %v2012
        %2014 = vmatprep.subr.mxu0 0.0
        %v2015 = vand.u32 %v1695, 4294901760
        %v2016 = vsub.f32 %v1695, %v2015
        %2017 = vmatpush1.xpose.msra.mxu0 %v2016
        %2018 = vmatprep.subr.mxu0 0.0
        %v2019 = vand.u32 %v1694, 4294901760
        %v2020 = vsub.f32 %v1694, %v2019
        %2021 = vmatpush1.xpose.msra.mxu0 %v2020
        %2022 = vmatprep.subr.mxu0 0.0
        %v2023 = vand.u32 %v1693, 4294901760
        %v2024 = vsub.f32 %v1693, %v2023
        %2025 = vmatpush1.xpose.msra.mxu0 %v2024
        %2026 = vmatprep.subr.mxu0 0.0
        %v2027 = vand.u32 %v1692, 4294901760
        %v2028 = vsub.f32 %v1692, %v2027
        %2029 = vmatpush1.xpose.msra.mxu0 %v2028
        %2030 = vmatprep.subr.mxu0 0.0
        %2031 = vmatpush2.xpose.msra.mxu0 0.0
        %2032 = vmatprep.subr.mxu0 0.0
        %2033 = vmatpush2.xpose.msra.mxu0 0.0
        %2034 = vmatprep.subr.mxu0 0.0
        %2035 = vmatpush2.xpose.msra.mxu0 0.0
        %2036 = vmatprep.subr.mxu0 0.0
        %2037 = vmatpush2.xpose.msra.mxu0 0.0
        %2038 = vmatprep.subr.mxu0 0.0
        %2039 = vmatpush2.xpose.msra.mxu0 0.0
        %2040 = vmatprep.subr.mxu0 0.0
        %2041 = vmatpush2.xpose.msra.mxu0 0.0
        %2042 = vmatprep.subr.mxu0 0.0
        %2043 = vmatpush2.xpose.msra.mxu0 0.0
        %2044 = vmatprep.subr.mxu0 0.0
        %2045 = vmatpush2.xpose.msra.mxu0 0.0
        %2046 = vmatprep.subr.mxu0 0.0
        %2047 = vmatpush2.xpose.msra.mxu0 0.0
        %2048 = vmatprep.subr.mxu0 0.0
        %2049 = vmatpush2.xpose.msra.mxu0 0.0
        %2050 = vmatprep.subr.mxu0 0.0
        %2051 = vmatpush2.xpose.msra.mxu0 0.0
        %2052 = vmatprep.subr.mxu0 0.0
        %2053 = vmatpush2.xpose.msra.mxu0 0.0
        %2054 = vmatprep.subr.mxu0 0.0
        %2055 = vmatpush2.xpose.msra.mxu0 0.0
        %2056 = vmatprep.subr.mxu0 0.0
        %2057 = vmatpush2.xpose.msra.mxu0 0.0
        %2058 = vmatprep.subr.mxu0 0.0
        %2059 = vmatpush2.xpose.msra.mxu0 0.0
        %2060 = vmatprep.subr.mxu0 0.0
        %2061 = vmatpush2.xpose.msra.mxu0 0.0
        %2062 = vmatprep.mubr.f32.mxu0 0.0
        %v2063 = vand.u32 %v983, 4294901760
        %v2064 = vsub.f32 %v983, %v2063
        %2065 = vmatmul.mubr.f32.gmra.mxu0 %v2064
        %v2066 = vpop.f32.mrf.mxu0
        %v2067 = vadd.f32 %v1963, %v2066
        %v2068 = vpop.f32.mrf.mxu0
        %2069 = vdwg.mxu0
        %2070 = vmatprep.subr.mxu0 0.0
        %v2071 = vand.u32 %v1707, 4294901760
        %2072 = vmatpush1.xpose.msra.mxu0 %v2071
        %2073 = vmatprep.subr.mxu0 0.0
        %v2074 = vand.u32 %v1706, 4294901760
        %2075 = vmatpush1.xpose.msra.mxu0 %v2074
        %2076 = vmatprep.subr.mxu0 0.0
        %v2077 = vand.u32 %v1705, 4294901760
        %2078 = vmatpush1.xpose.msra.mxu0 %v2077
        %2079 = vmatprep.subr.mxu0 0.0
        %v2080 = vand.u32 %v1704, 4294901760
        %2081 = vmatpush1.xpose.msra.mxu0 %v2080
        %2082 = vmatprep.subr.mxu0 0.0
        %v2083 = vand.u32 %v1703, 4294901760
        %2084 = vmatpush1.xpose.msra.mxu0 %v2083
        %2085 = vmatprep.subr.mxu0 0.0
        %v2086 = vand.u32 %v1702, 4294901760
        %2087 = vmatpush1.xpose.msra.mxu0 %v2086
        %2088 = vmatprep.subr.mxu0 0.0
        %v2089 = vand.u32 %v1701, 4294901760
        %2090 = vmatpush1.xpose.msra.mxu0 %v2089
        %2091 = vmatprep.subr.mxu0 0.0
        %v2092 = vand.u32 %v1700, 4294901760
        %2093 = vmatpush1.xpose.msra.mxu0 %v2092
        %2094 = vmatprep.subr.mxu0 0.0
        %v2095 = vand.u32 %v1699, 4294901760
        %2096 = vmatpush1.xpose.msra.mxu0 %v2095
        %2097 = vmatprep.subr.mxu0 0.0
        %v2098 = vand.u32 %v1698, 4294901760
        %2099 = vmatpush1.xpose.msra.mxu0 %v2098
        %2100 = vmatprep.subr.mxu0 0.0
        %v2101 = vand.u32 %v1697, 4294901760
        %2102 = vmatpush1.xpose.msra.mxu0 %v2101
        %2103 = vmatprep.subr.mxu0 0.0
        %v2104 = vand.u32 %v1696, 4294901760
        %2105 = vmatpush1.xpose.msra.mxu0 %v2104
        %2106 = vmatprep.subr.mxu0 0.0
        %v2107 = vand.u32 %v1695, 4294901760
        %2108 = vmatpush1.xpose.msra.mxu0 %v2107
        %2109 = vmatprep.subr.mxu0 0.0
        %v2110 = vand.u32 %v1694, 4294901760
        %2111 = vmatpush1.xpose.msra.mxu0 %v2110
        %2112 = vmatprep.subr.mxu0 0.0
        %v2113 = vand.u32 %v1693, 4294901760
        %2114 = vmatpush1.xpose.msra.mxu0 %v2113
        %2115 = vmatprep.subr.mxu0 0.0
        %v2116 = vand.u32 %v1692, 4294901760
        %2117 = vmatpush1.xpose.msra.mxu0 %v2116
        %2118 = vmatprep.subr.mxu0 0.0
        %2119 = vmatpush2.xpose.msra.mxu0 0.0
        %2120 = vmatprep.subr.mxu0 0.0
        %2121 = vmatpush2.xpose.msra.mxu0 0.0
        %2122 = vmatprep.subr.mxu0 0.0
        %2123 = vmatpush2.xpose.msra.mxu0 0.0
        %2124 = vmatprep.subr.mxu0 0.0
        %2125 = vmatpush2.xpose.msra.mxu0 0.0
        %2126 = vmatprep.subr.mxu0 0.0
        %2127 = vmatpush2.xpose.msra.mxu0 0.0
        %2128 = vmatprep.subr.mxu0 0.0
        %2129 = vmatpush2.xpose.msra.mxu0 0.0
        %2130 = vmatprep.subr.mxu0 0.0
        %2131 = vmatpush2.xpose.msra.mxu0 0.0
        %2132 = vmatprep.subr.mxu0 0.0
        %2133 = vmatpush2.xpose.msra.mxu0 0.0
        %2134 = vmatprep.subr.mxu0 0.0
        %2135 = vmatpush2.xpose.msra.mxu0 0.0
        %2136 = vmatprep.subr.mxu0 0.0
        %2137 = vmatpush2.xpose.msra.mxu0 0.0
        %2138 = vmatprep.subr.mxu0 0.0
        %2139 = vmatpush2.xpose.msra.mxu0 0.0
        %2140 = vmatprep.subr.mxu0 0.0
        %2141 = vmatpush2.xpose.msra.mxu0 0.0
        %2142 = vmatprep.subr.mxu0 0.0
        %2143 = vmatpush2.xpose.msra.mxu0 0.0
        %2144 = vmatprep.subr.mxu0 0.0
        %2145 = vmatpush2.xpose.msra.mxu0 0.0
        %2146 = vmatprep.subr.mxu0 0.0
        %2147 = vmatpush2.xpose.msra.mxu0 0.0
        %2148 = vmatprep.subr.mxu0 0.0
        %2149 = vmatpush2.xpose.msra.mxu0 0.0
        %2150 = vmatprep.mubr.f32.mxu0 0.0
        %v2151 = vand.u32 %v983, 4294901760
        %v2152 = vsub.f32 %v983, %v2151
        %v2153 = vand.u32 %v2152, 4294901760
        %2154 = vmatmul.mubr.f32.gmra.mxu0 %v2153
        %v2155 = vpop.f32.mrf.mxu0
        %v2156 = vadd.f32 %v2067, %v2155
        %v2157 = vpop.f32.mrf.mxu0
        %2158 = vdwg.mxu0
        %2159 = vmatprep.subr.mxu0 0.0
        %v2160 = vand.u32 %v1707, 4294901760
        %v2161 = vsub.f32 %v1707, %v2160
        %v2162 = vand.u32 %v2161, 4294901760
        %2163 = vmatpush1.xpose.msra.mxu0 %v2162
        %2164 = vmatprep.subr.mxu0 0.0
        %v2165 = vand.u32 %v1706, 4294901760
        %v2166 = vsub.f32 %v1706, %v2165
        %v2167 = vand.u32 %v2166, 4294901760
        %2168 = vmatpush1.xpose.msra.mxu0 %v2167
        %2169 = vmatprep.subr.mxu0 0.0
        %v2170 = vand.u32 %v1705, 4294901760
        %v2171 = vsub.f32 %v1705, %v2170
        %v2172 = vand.u32 %v2171, 4294901760
        %2173 = vmatpush1.xpose.msra.mxu0 %v2172
        %2174 = vmatprep.subr.mxu0 0.0
        %v2175 = vand.u32 %v1704, 4294901760
        %v2176 = vsub.f32 %v1704, %v2175
        %v2177 = vand.u32 %v2176, 4294901760
        %2178 = vmatpush1.xpose.msra.mxu0 %v2177
        %2179 = vmatprep.subr.mxu0 0.0
        %v2180 = vand.u32 %v1703, 4294901760
        %v2181 = vsub.f32 %v1703, %v2180
        %v2182 = vand.u32 %v2181, 4294901760
        %2183 = vmatpush1.xpose.msra.mxu0 %v2182
        %2184 = vmatprep.subr.mxu0 0.0
        %v2185 = vand.u32 %v1702, 4294901760
        %v2186 = vsub.f32 %v1702, %v2185
        %v2187 = vand.u32 %v2186, 4294901760
        %2188 = vmatpush1.xpose.msra.mxu0 %v2187
        %2189 = vmatprep.subr.mxu0 0.0
        %v2190 = vand.u32 %v1701, 4294901760
        %v2191 = vsub.f32 %v1701, %v2190
        %v2192 = vand.u32 %v2191, 4294901760
        %2193 = vmatpush1.xpose.msra.mxu0 %v2192
        %2194 = vmatprep.subr.mxu0 0.0
        %v2195 = vand.u32 %v1700, 4294901760
        %v2196 = vsub.f32 %v1700, %v2195
        %v2197 = vand.u32 %v2196, 4294901760
        %2198 = vmatpush1.xpose.msra.mxu0 %v2197
        %2199 = vmatprep.subr.mxu0 0.0
        %v2200 = vand.u32 %v1699, 4294901760
        %v2201 = vsub.f32 %v1699, %v2200
        %v2202 = vand.u32 %v2201, 4294901760
        %2203 = vmatpush1.xpose.msra.mxu0 %v2202
        %2204 = vmatprep.subr.mxu0 0.0
        %v2205 = vand.u32 %v1698, 4294901760
        %v2206 = vsub.f32 %v1698, %v2205
        %v2207 = vand.u32 %v2206, 4294901760
        %2208 = vmatpush1.xpose.msra.mxu0 %v2207
        %2209 = vmatprep.subr.mxu0 0.0
        %v2210 = vand.u32 %v1697, 4294901760
        %v2211 = vsub.f32 %v1697, %v2210
        %v2212 = vand.u32 %v2211, 4294901760
        %2213 = vmatpush1.xpose.msra.mxu0 %v2212
        %2214 = vmatprep.subr.mxu0 0.0
        %v2215 = vand.u32 %v1696, 4294901760
        %v2216 = vsub.f32 %v1696, %v2215
        %v2217 = vand.u32 %v2216, 4294901760
        %2218 = vmatpush1.xpose.msra.mxu0 %v2217
        %2219 = vmatprep.subr.mxu0 0.0
        %v2220 = vand.u32 %v1695, 4294901760
        %v2221 = vsub.f32 %v1695, %v2220
        %v2222 = vand.u32 %v2221, 4294901760
        %2223 = vmatpush1.xpose.msra.mxu0 %v2222
        %2224 = vmatprep.subr.mxu0 0.0
        %v2225 = vand.u32 %v1694, 4294901760
        %v2226 = vsub.f32 %v1694, %v2225
        %v2227 = vand.u32 %v2226, 4294901760
        %2228 = vmatpush1.xpose.msra.mxu0 %v2227
        %2229 = vmatprep.subr.mxu0 0.0
        %v2230 = vand.u32 %v1693, 4294901760
        %v2231 = vsub.f32 %v1693, %v2230
        %v2232 = vand.u32 %v2231, 4294901760
        %2233 = vmatpush1.xpose.msra.mxu0 %v2232
        %2234 = vmatprep.subr.mxu0 0.0
        %v2235 = vand.u32 %v1692, 4294901760
        %v2236 = vsub.f32 %v1692, %v2235
        %v2237 = vand.u32 %v2236, 4294901760
        %2238 = vmatpush1.xpose.msra.mxu0 %v2237
        %2239 = vmatprep.subr.mxu0 0.0
        %2240 = vmatpush2.xpose.msra.mxu0 0.0
        %2241 = vmatprep.subr.mxu0 0.0
        %2242 = vmatpush2.xpose.msra.mxu0 0.0
        %2243 = vmatprep.subr.mxu0 0.0
        %2244 = vmatpush2.xpose.msra.mxu0 0.0
        %2245 = vmatprep.subr.mxu0 0.0
        %2246 = vmatpush2.xpose.msra.mxu0 0.0
        %2247 = vmatprep.subr.mxu0 0.0
        %2248 = vmatpush2.xpose.msra.mxu0 0.0
        %2249 = vmatprep.subr.mxu0 0.0
        %2250 = vmatpush2.xpose.msra.mxu0 0.0
        %2251 = vmatprep.subr.mxu0 0.0
        %2252 = vmatpush2.xpose.msra.mxu0 0.0
        %2253 = vmatprep.subr.mxu0 0.0
        %2254 = vmatpush2.xpose.msra.mxu0 0.0
        %2255 = vmatprep.subr.mxu0 0.0
        %2256 = vmatpush2.xpose.msra.mxu0 0.0
        %2257 = vmatprep.subr.mxu0 0.0
        %2258 = vmatpush2.xpose.msra.mxu0 0.0
        %2259 = vmatprep.subr.mxu0 0.0
        %2260 = vmatpush2.xpose.msra.mxu0 0.0
        %2261 = vmatprep.subr.mxu0 0.0
        %2262 = vmatpush2.xpose.msra.mxu0 0.0
        %2263 = vmatprep.subr.mxu0 0.0
        %2264 = vmatpush2.xpose.msra.mxu0 0.0
        %2265 = vmatprep.subr.mxu0 0.0
        %2266 = vmatpush2.xpose.msra.mxu0 0.0
        %2267 = vmatprep.subr.mxu0 0.0
        %2268 = vmatpush2.xpose.msra.mxu0 0.0
        %2269 = vmatprep.subr.mxu0 0.0
        %2270 = vmatpush2.xpose.msra.mxu0 0.0
        %2271 = vmatprep.mubr.f32.mxu0 0.0
        %v2272 = vand.u32 %v983, 4294901760
        %2273 = vmatmul.mubr.f32.gmra.mxu0 %v2272
        %v2274 = vpop.f32.mrf.mxu0
        %v2275 = vadd.f32 %v2156, %v2274
        %v2276 = vpop.f32.mrf.mxu0
        %2277 = vdwg.mxu0
        %2278 = vmatprep.subr.mxu0 0.0
        %v2279 = vand.u32 %v1707, 4294901760
        %2280 = vmatpush1.xpose.msra.mxu0 %v2279
        %2281 = vmatprep.subr.mxu0 0.0
        %v2282 = vand.u32 %v1706, 4294901760
        %2283 = vmatpush1.xpose.msra.mxu0 %v2282
        %2284 = vmatprep.subr.mxu0 0.0
        %v2285 = vand.u32 %v1705, 4294901760
        %2286 = vmatpush1.xpose.msra.mxu0 %v2285
        %2287 = vmatprep.subr.mxu0 0.0
        %v2288 = vand.u32 %v1704, 4294901760
        %2289 = vmatpush1.xpose.msra.mxu0 %v2288
        %2290 = vmatprep.subr.mxu0 0.0
        %v2291 = vand.u32 %v1703, 4294901760
        %2292 = vmatpush1.xpose.msra.mxu0 %v2291
        %2293 = vmatprep.subr.mxu0 0.0
        %v2294 = vand.u32 %v1702, 4294901760
        %2295 = vmatpush1.xpose.msra.mxu0 %v2294
        %2296 = vmatprep.subr.mxu0 0.0
        %v2297 = vand.u32 %v1701, 4294901760
        %2298 = vmatpush1.xpose.msra.mxu0 %v2297
        %2299 = vmatprep.subr.mxu0 0.0
        %v2300 = vand.u32 %v1700, 4294901760
        %2301 = vmatpush1.xpose.msra.mxu0 %v2300
        %2302 = vmatprep.subr.mxu0 0.0
        %v2303 = vand.u32 %v1699, 4294901760
        %2304 = vmatpush1.xpose.msra.mxu0 %v2303
        %2305 = vmatprep.subr.mxu0 0.0
        %v2306 = vand.u32 %v1698, 4294901760
        %2307 = vmatpush1.xpose.msra.mxu0 %v2306
        %2308 = vmatprep.subr.mxu0 0.0
        %v2309 = vand.u32 %v1697, 4294901760
        %2310 = vmatpush1.xpose.msra.mxu0 %v2309
        %2311 = vmatprep.subr.mxu0 0.0
        %v2312 = vand.u32 %v1696, 4294901760
        %2313 = vmatpush1.xpose.msra.mxu0 %v2312
        %2314 = vmatprep.subr.mxu0 0.0
        %v2315 = vand.u32 %v1695, 4294901760
        %2316 = vmatpush1.xpose.msra.mxu0 %v2315
        %2317 = vmatprep.subr.mxu0 0.0
        %v2318 = vand.u32 %v1694, 4294901760
        %2319 = vmatpush1.xpose.msra.mxu0 %v2318
        %2320 = vmatprep.subr.mxu0 0.0
        %v2321 = vand.u32 %v1693, 4294901760
        %2322 = vmatpush1.xpose.msra.mxu0 %v2321
        %2323 = vmatprep.subr.mxu0 0.0
        %v2324 = vand.u32 %v1692, 4294901760
        %2325 = vmatpush1.xpose.msra.mxu0 %v2324
        %2326 = vmatprep.subr.mxu0 0.0
        %2327 = vmatpush2.xpose.msra.mxu0 0.0
        %2328 = vmatprep.subr.mxu0 0.0
        %2329 = vmatpush2.xpose.msra.mxu0 0.0
        %2330 = vmatprep.subr.mxu0 0.0
        %2331 = vmatpush2.xpose.msra.mxu0 0.0
        %2332 = vmatprep.subr.mxu0 0.0
        %2333 = vmatpush2.xpose.msra.mxu0 0.0
        %2334 = vmatprep.subr.mxu0 0.0
        %2335 = vmatpush2.xpose.msra.mxu0 0.0
        %2336 = vmatprep.subr.mxu0 0.0
        %2337 = vmatpush2.xpose.msra.mxu0 0.0
        %2338 = vmatprep.subr.mxu0 0.0
        %2339 = vmatpush2.xpose.msra.mxu0 0.0
        %2340 = vmatprep.subr.mxu0 0.0
        %2341 = vmatpush2.xpose.msra.mxu0 0.0
        %2342 = vmatprep.subr.mxu0 0.0
        %2343 = vmatpush2.xpose.msra.mxu0 0.0
        %2344 = vmatprep.subr.mxu0 0.0
        %2345 = vmatpush2.xpose.msra.mxu0 0.0
        %2346 = vmatprep.subr.mxu0 0.0
        %2347 = vmatpush2.xpose.msra.mxu0 0.0
        %2348 = vmatprep.subr.mxu0 0.0
        %2349 = vmatpush2.xpose.msra.mxu0 0.0
        %2350 = vmatprep.subr.mxu0 0.0
        %2351 = vmatpush2.xpose.msra.mxu0 0.0
        %2352 = vmatprep.subr.mxu0 0.0
        %2353 = vmatpush2.xpose.msra.mxu0 0.0
        %2354 = vmatprep.subr.mxu0 0.0
        %2355 = vmatpush2.xpose.msra.mxu0 0.0
        %2356 = vmatprep.subr.mxu0 0.0
        %2357 = vmatpush2.xpose.msra.mxu0 0.0
        %2358 = vmatprep.mubr.f32.mxu0 0.0
        %v2359 = vand.u32 %v983, 4294901760
        %2360 = vmatmul.mubr.f32.gmra.mxu0 %v2359
        %v2361 = vpop.f32.mrf.mxu0
        %v2362 = vadd.f32 %v2275, %v2361
        %v2363 = vpop.f32.mrf.mxu0
        %2364 = vdwg.mxu0
        %2365 = vmatprep.subr.mxu0 0.0
        %v2366 = vand.u32 %v1723, 4294901760
        %2367 = vmatpush1.xpose.msra.mxu0 %v2366
        %2368 = vmatprep.subr.mxu0 0.0
        %v2369 = vand.u32 %v1722, 4294901760
        %2370 = vmatpush1.xpose.msra.mxu0 %v2369
        %2371 = vmatprep.subr.mxu0 0.0
        %v2372 = vand.u32 %v1721, 4294901760
        %2373 = vmatpush1.xpose.msra.mxu0 %v2372
        %2374 = vmatprep.subr.mxu0 0.0
        %v2375 = vand.u32 %v1720, 4294901760
        %2376 = vmatpush1.xpose.msra.mxu0 %v2375
        %2377 = vmatprep.subr.mxu0 0.0
        %v2378 = vand.u32 %v1719, 4294901760
        %2379 = vmatpush1.xpose.msra.mxu0 %v2378
        %2380 = vmatprep.subr.mxu0 0.0
        %v2381 = vand.u32 %v1718, 4294901760
        %2382 = vmatpush1.xpose.msra.mxu0 %v2381
        %2383 = vmatprep.subr.mxu0 0.0
        %v2384 = vand.u32 %v1717, 4294901760
        %2385 = vmatpush1.xpose.msra.mxu0 %v2384
        %2386 = vmatprep.subr.mxu0 0.0
        %v2387 = vand.u32 %v1716, 4294901760
        %2388 = vmatpush1.xpose.msra.mxu0 %v2387
        %2389 = vmatprep.subr.mxu0 0.0
        %v2390 = vand.u32 %v1715, 4294901760
        %2391 = vmatpush1.xpose.msra.mxu0 %v2390
        %2392 = vmatprep.subr.mxu0 0.0
        %v2393 = vand.u32 %v1714, 4294901760
        %2394 = vmatpush1.xpose.msra.mxu0 %v2393
        %2395 = vmatprep.subr.mxu0 0.0
        %v2396 = vand.u32 %v1713, 4294901760
        %2397 = vmatpush1.xpose.msra.mxu0 %v2396
        %2398 = vmatprep.subr.mxu0 0.0
        %v2399 = vand.u32 %v1712, 4294901760
        %2400 = vmatpush1.xpose.msra.mxu0 %v2399
        %2401 = vmatprep.subr.mxu0 0.0
        %v2402 = vand.u32 %v1711, 4294901760
        %2403 = vmatpush1.xpose.msra.mxu0 %v2402
        %2404 = vmatprep.subr.mxu0 0.0
        %v2405 = vand.u32 %v1710, 4294901760
        %2406 = vmatpush1.xpose.msra.mxu0 %v2405
        %2407 = vmatprep.subr.mxu0 0.0
        %v2408 = vand.u32 %v1709, 4294901760
        %2409 = vmatpush1.xpose.msra.mxu0 %v2408
        %2410 = vmatprep.subr.mxu0 0.0
        %v2411 = vand.u32 %v1708, 4294901760
        %2412 = vmatpush1.xpose.msra.mxu0 %v2411
        %2413 = vmatprep.subr.mxu0 0.0
        %2414 = vmatpush2.xpose.msra.mxu0 0.0
        %2415 = vmatprep.subr.mxu0 0.0
        %2416 = vmatpush2.xpose.msra.mxu0 0.0
        %2417 = vmatprep.subr.mxu0 0.0
        %2418 = vmatpush2.xpose.msra.mxu0 0.0
        %2419 = vmatprep.subr.mxu0 0.0
        %2420 = vmatpush2.xpose.msra.mxu0 0.0
        %2421 = vmatprep.subr.mxu0 0.0
        %2422 = vmatpush2.xpose.msra.mxu0 0.0
        %2423 = vmatprep.subr.mxu0 0.0
        %2424 = vmatpush2.xpose.msra.mxu0 0.0
        %2425 = vmatprep.subr.mxu0 0.0
        %2426 = vmatpush2.xpose.msra.mxu0 0.0
        %2427 = vmatprep.subr.mxu0 0.0
        %2428 = vmatpush2.xpose.msra.mxu0 0.0
        %2429 = vmatprep.subr.mxu0 0.0
        %2430 = vmatpush2.xpose.msra.mxu0 0.0
        %2431 = vmatprep.subr.mxu0 0.0
        %2432 = vmatpush2.xpose.msra.mxu0 0.0
        %2433 = vmatprep.subr.mxu0 0.0
        %2434 = vmatpush2.xpose.msra.mxu0 0.0
        %2435 = vmatprep.subr.mxu0 0.0
        %2436 = vmatpush2.xpose.msra.mxu0 0.0
        %2437 = vmatprep.subr.mxu0 0.0
        %2438 = vmatpush2.xpose.msra.mxu0 0.0
        %2439 = vmatprep.subr.mxu0 0.0
        %2440 = vmatpush2.xpose.msra.mxu0 0.0
        %2441 = vmatprep.subr.mxu0 0.0
        %2442 = vmatpush2.xpose.msra.mxu0 0.0
        %2443 = vmatprep.subr.mxu0 0.0
        %2444 = vmatpush2.xpose.msra.mxu0 0.0
        %2445 = vmatprep.mubr.f32.mxu0 0.0
        %v2446 = vand.u32 %v989, 4294901760
        %v2447 = vsub.f32 %v989, %v2446
        %v2448 = vand.u32 %v2447, 4294901760
        %v2449 = vsub.f32 %v2447, %v2448
        %v2450 = vand.u32 %v2449, 4294901760
        %2451 = vmatmul.mubr.f32.gmra.mxu0 %v2450
        %v2452 = vpop.f32.mrf.mxu0
        %v2453 = vadd.f32 0.0, %v2452
        %v2454 = vpop.f32.mrf.mxu0
        %2455 = vdwg.mxu0
        %2456 = vmatprep.subr.mxu0 0.0
        %v2457 = vand.u32 %v1723, 4294901760
        %v2458 = vsub.f32 %v1723, %v2457
        %v2459 = vand.u32 %v2458, 4294901760
        %v2460 = vsub.f32 %v2458, %v2459
        %v2461 = vand.u32 %v2460, 4294901760
        %2462 = vmatpush1.xpose.msra.mxu0 %v2461
        %2463 = vmatprep.subr.mxu0 0.0
        %v2464 = vand.u32 %v1722, 4294901760
        %v2465 = vsub.f32 %v1722, %v2464
        %v2466 = vand.u32 %v2465, 4294901760
        %v2467 = vsub.f32 %v2465, %v2466
        %v2468 = vand.u32 %v2467, 4294901760
        %2469 = vmatpush1.xpose.msra.mxu0 %v2468
        %2470 = vmatprep.subr.mxu0 0.0
        %v2471 = vand.u32 %v1721, 4294901760
        %v2472 = vsub.f32 %v1721, %v2471
        %v2473 = vand.u32 %v2472, 4294901760
        %v2474 = vsub.f32 %v2472, %v2473
        %v2475 = vand.u32 %v2474, 4294901760
        %2476 = vmatpush1.xpose.msra.mxu0 %v2475
        %2477 = vmatprep.subr.mxu0 0.0
        %v2478 = vand.u32 %v1720, 4294901760
        %v2479 = vsub.f32 %v1720, %v2478
        %v2480 = vand.u32 %v2479, 4294901760
        %v2481 = vsub.f32 %v2479, %v2480
        %v2482 = vand.u32 %v2481, 4294901760
        %2483 = vmatpush1.xpose.msra.mxu0 %v2482
        %2484 = vmatprep.subr.mxu0 0.0
        %v2485 = vand.u32 %v1719, 4294901760
        %v2486 = vsub.f32 %v1719, %v2485
        %v2487 = vand.u32 %v2486, 4294901760
        %v2488 = vsub.f32 %v2486, %v2487
        %v2489 = vand.u32 %v2488, 4294901760
        %2490 = vmatpush1.xpose.msra.mxu0 %v2489
        %2491 = vmatprep.subr.mxu0 0.0
        %v2492 = vand.u32 %v1718, 4294901760
        %v2493 = vsub.f32 %v1718, %v2492
        %v2494 = vand.u32 %v2493, 4294901760
        %v2495 = vsub.f32 %v2493, %v2494
        %v2496 = vand.u32 %v2495, 4294901760
        %2497 = vmatpush1.xpose.msra.mxu0 %v2496
        %2498 = vmatprep.subr.mxu0 0.0
        %v2499 = vand.u32 %v1717, 4294901760
        %v2500 = vsub.f32 %v1717, %v2499
        %v2501 = vand.u32 %v2500, 4294901760
        %v2502 = vsub.f32 %v2500, %v2501
        %v2503 = vand.u32 %v2502, 4294901760
        %2504 = vmatpush1.xpose.msra.mxu0 %v2503
        %2505 = vmatprep.subr.mxu0 0.0
        %v2506 = vand.u32 %v1716, 4294901760
        %v2507 = vsub.f32 %v1716, %v2506
        %v2508 = vand.u32 %v2507, 4294901760
        %v2509 = vsub.f32 %v2507, %v2508
        %v2510 = vand.u32 %v2509, 4294901760
        %2511 = vmatpush1.xpose.msra.mxu0 %v2510
        %2512 = vmatprep.subr.mxu0 0.0
        %v2513 = vand.u32 %v1715, 4294901760
        %v2514 = vsub.f32 %v1715, %v2513
        %v2515 = vand.u32 %v2514, 4294901760
        %v2516 = vsub.f32 %v2514, %v2515
        %v2517 = vand.u32 %v2516, 4294901760
        %2518 = vmatpush1.xpose.msra.mxu0 %v2517
        %2519 = vmatprep.subr.mxu0 0.0
        %v2520 = vand.u32 %v1714, 4294901760
        %v2521 = vsub.f32 %v1714, %v2520
        %v2522 = vand.u32 %v2521, 4294901760
        %v2523 = vsub.f32 %v2521, %v2522
        %v2524 = vand.u32 %v2523, 4294901760
        %2525 = vmatpush1.xpose.msra.mxu0 %v2524
        %2526 = vmatprep.subr.mxu0 0.0
        %v2527 = vand.u32 %v1713, 4294901760
        %v2528 = vsub.f32 %v1713, %v2527
        %v2529 = vand.u32 %v2528, 4294901760
        %v2530 = vsub.f32 %v2528, %v2529
        %v2531 = vand.u32 %v2530, 4294901760
        %2532 = vmatpush1.xpose.msra.mxu0 %v2531
        %2533 = vmatprep.subr.mxu0 0.0
        %v2534 = vand.u32 %v1712, 4294901760
        %v2535 = vsub.f32 %v1712, %v2534
        %v2536 = vand.u32 %v2535, 4294901760
        %v2537 = vsub.f32 %v2535, %v2536
        %v2538 = vand.u32 %v2537, 4294901760
        %2539 = vmatpush1.xpose.msra.mxu0 %v2538
        %2540 = vmatprep.subr.mxu0 0.0
        %v2541 = vand.u32 %v1711, 4294901760
        %v2542 = vsub.f32 %v1711, %v2541
        %v2543 = vand.u32 %v2542, 4294901760
        %v2544 = vsub.f32 %v2542, %v2543
        %v2545 = vand.u32 %v2544, 4294901760
        %2546 = vmatpush1.xpose.msra.mxu0 %v2545
        %2547 = vmatprep.subr.mxu0 0.0
        %v2548 = vand.u32 %v1710, 4294901760
        %v2549 = vsub.f32 %v1710, %v2548
        %v2550 = vand.u32 %v2549, 4294901760
        %v2551 = vsub.f32 %v2549, %v2550
        %v2552 = vand.u32 %v2551, 4294901760
        %2553 = vmatpush1.xpose.msra.mxu0 %v2552
        %2554 = vmatprep.subr.mxu0 0.0
        %v2555 = vand.u32 %v1709, 4294901760
        %v2556 = vsub.f32 %v1709, %v2555
        %v2557 = vand.u32 %v2556, 4294901760
        %v2558 = vsub.f32 %v2556, %v2557
        %v2559 = vand.u32 %v2558, 4294901760
        %2560 = vmatpush1.xpose.msra.mxu0 %v2559
        %2561 = vmatprep.subr.mxu0 0.0
        %v2562 = vand.u32 %v1708, 4294901760
        %v2563 = vsub.f32 %v1708, %v2562
        %v2564 = vand.u32 %v2563, 4294901760
        %v2565 = vsub.f32 %v2563, %v2564
        %v2566 = vand.u32 %v2565, 4294901760
        %2567 = vmatpush1.xpose.msra.mxu0 %v2566
        %2568 = vmatprep.subr.mxu0 0.0
        %2569 = vmatpush2.xpose.msra.mxu0 0.0
        %2570 = vmatprep.subr.mxu0 0.0
        %2571 = vmatpush2.xpose.msra.mxu0 0.0
        %2572 = vmatprep.subr.mxu0 0.0
        %2573 = vmatpush2.xpose.msra.mxu0 0.0
        %2574 = vmatprep.subr.mxu0 0.0
        %2575 = vmatpush2.xpose.msra.mxu0 0.0
        %2576 = vmatprep.subr.mxu0 0.0
        %2577 = vmatpush2.xpose.msra.mxu0 0.0
        %2578 = vmatprep.subr.mxu0 0.0
        %2579 = vmatpush2.xpose.msra.mxu0 0.0
        %2580 = vmatprep.subr.mxu0 0.0
        %2581 = vmatpush2.xpose.msra.mxu0 0.0
        %2582 = vmatprep.subr.mxu0 0.0
        %2583 = vmatpush2.xpose.msra.mxu0 0.0
        %2584 = vmatprep.subr.mxu0 0.0
        %2585 = vmatpush2.xpose.msra.mxu0 0.0
        %2586 = vmatprep.subr.mxu0 0.0
        %2587 = vmatpush2.xpose.msra.mxu0 0.0
        %2588 = vmatprep.subr.mxu0 0.0
        %2589 = vmatpush2.xpose.msra.mxu0 0.0
        %2590 = vmatprep.subr.mxu0 0.0
        %2591 = vmatpush2.xpose.msra.mxu0 0.0
        %2592 = vmatprep.subr.mxu0 0.0
        %2593 = vmatpush2.xpose.msra.mxu0 0.0
        %2594 = vmatprep.subr.mxu0 0.0
        %2595 = vmatpush2.xpose.msra.mxu0 0.0
        %2596 = vmatprep.subr.mxu0 0.0
        %2597 = vmatpush2.xpose.msra.mxu0 0.0
        %2598 = vmatprep.subr.mxu0 0.0
        %2599 = vmatpush2.xpose.msra.mxu0 0.0
        %2600 = vmatprep.mubr.f32.mxu0 0.0
        %v2601 = vand.u32 %v989, 4294901760
        %2602 = vmatmul.mubr.f32.gmra.mxu0 %v2601
        %v2603 = vpop.f32.mrf.mxu0
        %v2604 = vadd.f32 %v2453, %v2603
        %v2605 = vpop.f32.mrf.mxu0
        %2606 = vdwg.mxu0
        %2607 = vmatprep.subr.mxu0 0.0
        %v2608 = vand.u32 %v1723, 4294901760
        %v2609 = vsub.f32 %v1723, %v2608
        %2610 = vmatpush1.xpose.msra.mxu0 %v2609
        %2611 = vmatprep.subr.mxu0 0.0
        %v2612 = vand.u32 %v1722, 4294901760
        %v2613 = vsub.f32 %v1722, %v2612
        %2614 = vmatpush1.xpose.msra.mxu0 %v2613
        %2615 = vmatprep.subr.mxu0 0.0
        %v2616 = vand.u32 %v1721, 4294901760
        %v2617 = vsub.f32 %v1721, %v2616
        %2618 = vmatpush1.xpose.msra.mxu0 %v2617
        %2619 = vmatprep.subr.mxu0 0.0
        %v2620 = vand.u32 %v1720, 4294901760
        %v2621 = vsub.f32 %v1720, %v2620
        %2622 = vmatpush1.xpose.msra.mxu0 %v2621
        %2623 = vmatprep.subr.mxu0 0.0
        %v2624 = vand.u32 %v1719, 4294901760
        %v2625 = vsub.f32 %v1719, %v2624
        %2626 = vmatpush1.xpose.msra.mxu0 %v2625
        %2627 = vmatprep.subr.mxu0 0.0
        %v2628 = vand.u32 %v1718, 4294901760
        %v2629 = vsub.f32 %v1718, %v2628
        %2630 = vmatpush1.xpose.msra.mxu0 %v2629
        %2631 = vmatprep.subr.mxu0 0.0
        %v2632 = vand.u32 %v1717, 4294901760
        %v2633 = vsub.f32 %v1717, %v2632
        %2634 = vmatpush1.xpose.msra.mxu0 %v2633
        %2635 = vmatprep.subr.mxu0 0.0
        %v2636 = vand.u32 %v1716, 4294901760
        %v2637 = vsub.f32 %v1716, %v2636
        %2638 = vmatpush1.xpose.msra.mxu0 %v2637
        %2639 = vmatprep.subr.mxu0 0.0
        %v2640 = vand.u32 %v1715, 4294901760
        %v2641 = vsub.f32 %v1715, %v2640
        %2642 = vmatpush1.xpose.msra.mxu0 %v2641
        %2643 = vmatprep.subr.mxu0 0.0
        %v2644 = vand.u32 %v1714, 4294901760
        %v2645 = vsub.f32 %v1714, %v2644
        %2646 = vmatpush1.xpose.msra.mxu0 %v2645
        %2647 = vmatprep.subr.mxu0 0.0
        %v2648 = vand.u32 %v1713, 4294901760
        %v2649 = vsub.f32 %v1713, %v2648
        %2650 = vmatpush1.xpose.msra.mxu0 %v2649
        %2651 = vmatprep.subr.mxu0 0.0
        %v2652 = vand.u32 %v1712, 4294901760
        %v2653 = vsub.f32 %v1712, %v2652
        %2654 = vmatpush1.xpose.msra.mxu0 %v2653
        %2655 = vmatprep.subr.mxu0 0.0
        %v2656 = vand.u32 %v1711, 4294901760
        %v2657 = vsub.f32 %v1711, %v2656
        %2658 = vmatpush1.xpose.msra.mxu0 %v2657
        %2659 = vmatprep.subr.mxu0 0.0
        %v2660 = vand.u32 %v1710, 4294901760
        %v2661 = vsub.f32 %v1710, %v2660
        %2662 = vmatpush1.xpose.msra.mxu0 %v2661
        %2663 = vmatprep.subr.mxu0 0.0
        %v2664 = vand.u32 %v1709, 4294901760
        %v2665 = vsub.f32 %v1709, %v2664
        %2666 = vmatpush1.xpose.msra.mxu0 %v2665
        %2667 = vmatprep.subr.mxu0 0.0
        %v2668 = vand.u32 %v1708, 4294901760
        %v2669 = vsub.f32 %v1708, %v2668
        %2670 = vmatpush1.xpose.msra.mxu0 %v2669
        %2671 = vmatprep.subr.mxu0 0.0
        %2672 = vmatpush2.xpose.msra.mxu0 0.0
        %2673 = vmatprep.subr.mxu0 0.0
        %2674 = vmatpush2.xpose.msra.mxu0 0.0
        %2675 = vmatprep.subr.mxu0 0.0
        %2676 = vmatpush2.xpose.msra.mxu0 0.0
        %2677 = vmatprep.subr.mxu0 0.0
        %2678 = vmatpush2.xpose.msra.mxu0 0.0
        %2679 = vmatprep.subr.mxu0 0.0
        %2680 = vmatpush2.xpose.msra.mxu0 0.0
        %2681 = vmatprep.subr.mxu0 0.0
        %2682 = vmatpush2.xpose.msra.mxu0 0.0
        %2683 = vmatprep.subr.mxu0 0.0
        %2684 = vmatpush2.xpose.msra.mxu0 0.0
        %2685 = vmatprep.subr.mxu0 0.0
        %2686 = vmatpush2.xpose.msra.mxu0 0.0
        %2687 = vmatprep.subr.mxu0 0.0
        %2688 = vmatpush2.xpose.msra.mxu0 0.0
        %2689 = vmatprep.subr.mxu0 0.0
        %2690 = vmatpush2.xpose.msra.mxu0 0.0
        %2691 = vmatprep.subr.mxu0 0.0
        %2692 = vmatpush2.xpose.msra.mxu0 0.0
        %2693 = vmatprep.subr.mxu0 0.0
        %2694 = vmatpush2.xpose.msra.mxu0 0.0
        %2695 = vmatprep.subr.mxu0 0.0
        %2696 = vmatpush2.xpose.msra.mxu0 0.0
        %2697 = vmatprep.subr.mxu0 0.0
        %2698 = vmatpush2.xpose.msra.mxu0 0.0
        %2699 = vmatprep.subr.mxu0 0.0
        %2700 = vmatpush2.xpose.msra.mxu0 0.0
        %2701 = vmatprep.subr.mxu0 0.0
        %2702 = vmatpush2.xpose.msra.mxu0 0.0
        %2703 = vmatprep.mubr.f32.mxu0 0.0
        %v2704 = vand.u32 %v989, 4294901760
        %v2705 = vsub.f32 %v989, %v2704
        %2706 = vmatmul.mubr.f32.gmra.mxu0 %v2705
        %v2707 = vpop.f32.mrf.mxu0
        %v2708 = vadd.f32 %v2604, %v2707
        %v2709 = vpop.f32.mrf.mxu0
        %2710 = vdwg.mxu0
        %2711 = vmatprep.subr.mxu0 0.0
        %v2712 = vand.u32 %v1723, 4294901760
        %2713 = vmatpush1.xpose.msra.mxu0 %v2712
        %2714 = vmatprep.subr.mxu0 0.0
        %v2715 = vand.u32 %v1722, 4294901760
        %2716 = vmatpush1.xpose.msra.mxu0 %v2715
        %2717 = vmatprep.subr.mxu0 0.0
        %v2718 = vand.u32 %v1721, 4294901760
        %2719 = vmatpush1.xpose.msra.mxu0 %v2718
        %2720 = vmatprep.subr.mxu0 0.0
        %v2721 = vand.u32 %v1720, 4294901760
        %2722 = vmatpush1.xpose.msra.mxu0 %v2721
        %2723 = vmatprep.subr.mxu0 0.0
        %v2724 = vand.u32 %v1719, 4294901760
        %2725 = vmatpush1.xpose.msra.mxu0 %v2724
        %2726 = vmatprep.subr.mxu0 0.0
        %v2727 = vand.u32 %v1718, 4294901760
        %2728 = vmatpush1.xpose.msra.mxu0 %v2727
        %2729 = vmatprep.subr.mxu0 0.0
        %v2730 = vand.u32 %v1717, 4294901760
        %2731 = vmatpush1.xpose.msra.mxu0 %v2730
        %2732 = vmatprep.subr.mxu0 0.0
        %v2733 = vand.u32 %v1716, 4294901760
        %2734 = vmatpush1.xpose.msra.mxu0 %v2733
        %2735 = vmatprep.subr.mxu0 0.0
        %v2736 = vand.u32 %v1715, 4294901760
        %2737 = vmatpush1.xpose.msra.mxu0 %v2736
        %2738 = vmatprep.subr.mxu0 0.0
        %v2739 = vand.u32 %v1714, 4294901760
        %2740 = vmatpush1.xpose.msra.mxu0 %v2739
        %2741 = vmatprep.subr.mxu0 0.0
        %v2742 = vand.u32 %v1713, 4294901760
        %2743 = vmatpush1.xpose.msra.mxu0 %v2742
        %2744 = vmatprep.subr.mxu0 0.0
        %v2745 = vand.u32 %v1712, 4294901760
        %2746 = vmatpush1.xpose.msra.mxu0 %v2745
        %2747 = vmatprep.subr.mxu0 0.0
        %v2748 = vand.u32 %v1711, 4294901760
        %2749 = vmatpush1.xpose.msra.mxu0 %v2748
        %2750 = vmatprep.subr.mxu0 0.0
        %v2751 = vand.u32 %v1710, 4294901760
        %2752 = vmatpush1.xpose.msra.mxu0 %v2751
        %2753 = vmatprep.subr.mxu0 0.0
        %v2754 = vand.u32 %v1709, 4294901760
        %2755 = vmatpush1.xpose.msra.mxu0 %v2754
        %2756 = vmatprep.subr.mxu0 0.0
        %v2757 = vand.u32 %v1708, 4294901760
        %2758 = vmatpush1.xpose.msra.mxu0 %v2757
        %2759 = vmatprep.subr.mxu0 0.0
        %2760 = vmatpush2.xpose.msra.mxu0 0.0
        %2761 = vmatprep.subr.mxu0 0.0
        %2762 = vmatpush2.xpose.msra.mxu0 0.0
        %2763 = vmatprep.subr.mxu0 0.0
        %2764 = vmatpush2.xpose.msra.mxu0 0.0
        %2765 = vmatprep.subr.mxu0 0.0
        %2766 = vmatpush2.xpose.msra.mxu0 0.0
        %2767 = vmatprep.subr.mxu0 0.0
        %2768 = vmatpush2.xpose.msra.mxu0 0.0
        %2769 = vmatprep.subr.mxu0 0.0
        %2770 = vmatpush2.xpose.msra.mxu0 0.0
        %2771 = vmatprep.subr.mxu0 0.0
        %2772 = vmatpush2.xpose.msra.mxu0 0.0
        %2773 = vmatprep.subr.mxu0 0.0
        %2774 = vmatpush2.xpose.msra.mxu0 0.0
        %2775 = vmatprep.subr.mxu0 0.0
        %2776 = vmatpush2.xpose.msra.mxu0 0.0
        %2777 = vmatprep.subr.mxu0 0.0
        %2778 = vmatpush2.xpose.msra.mxu0 0.0
        %2779 = vmatprep.subr.mxu0 0.0
        %2780 = vmatpush2.xpose.msra.mxu0 0.0
        %2781 = vmatprep.subr.mxu0 0.0
        %2782 = vmatpush2.xpose.msra.mxu0 0.0
        %2783 = vmatprep.subr.mxu0 0.0
        %2784 = vmatpush2.xpose.msra.mxu0 0.0
        %2785 = vmatprep.subr.mxu0 0.0
        %2786 = vmatpush2.xpose.msra.mxu0 0.0
        %2787 = vmatprep.subr.mxu0 0.0
        %2788 = vmatpush2.xpose.msra.mxu0 0.0
        %2789 = vmatprep.subr.mxu0 0.0
        %2790 = vmatpush2.xpose.msra.mxu0 0.0
        %2791 = vmatprep.mubr.f32.mxu0 0.0
        %v2792 = vand.u32 %v989, 4294901760
        %v2793 = vsub.f32 %v989, %v2792
        %v2794 = vand.u32 %v2793, 4294901760
        %2795 = vmatmul.mubr.f32.gmra.mxu0 %v2794
        %v2796 = vpop.f32.mrf.mxu0
        %v2797 = vadd.f32 %v2708, %v2796
        %v2798 = vpop.f32.mrf.mxu0
        %2799 = vdwg.mxu0
        %2800 = vmatprep.subr.mxu0 0.0
        %v2801 = vand.u32 %v1723, 4294901760
        %v2802 = vsub.f32 %v1723, %v2801
        %v2803 = vand.u32 %v2802, 4294901760
        %2804 = vmatpush1.xpose.msra.mxu0 %v2803
        %2805 = vmatprep.subr.mxu0 0.0
        %v2806 = vand.u32 %v1722, 4294901760
        %v2807 = vsub.f32 %v1722, %v2806
        %v2808 = vand.u32 %v2807, 4294901760
        %2809 = vmatpush1.xpose.msra.mxu0 %v2808
        %2810 = vmatprep.subr.mxu0 0.0
        %v2811 = vand.u32 %v1721, 4294901760
        %v2812 = vsub.f32 %v1721, %v2811
        %v2813 = vand.u32 %v2812, 4294901760
        %2814 = vmatpush1.xpose.msra.mxu0 %v2813
        %2815 = vmatprep.subr.mxu0 0.0
        %v2816 = vand.u32 %v1720, 4294901760
        %v2817 = vsub.f32 %v1720, %v2816
        %v2818 = vand.u32 %v2817, 4294901760
        %2819 = vmatpush1.xpose.msra.mxu0 %v2818
        %2820 = vmatprep.subr.mxu0 0.0
        %v2821 = vand.u32 %v1719, 4294901760
        %v2822 = vsub.f32 %v1719, %v2821
        %v2823 = vand.u32 %v2822, 4294901760
        %2824 = vmatpush1.xpose.msra.mxu0 %v2823
        %2825 = vmatprep.subr.mxu0 0.0
        %v2826 = vand.u32 %v1718, 4294901760
        %v2827 = vsub.f32 %v1718, %v2826
        %v2828 = vand.u32 %v2827, 4294901760
        %2829 = vmatpush1.xpose.msra.mxu0 %v2828
        %2830 = vmatprep.subr.mxu0 0.0
        %v2831 = vand.u32 %v1717, 4294901760
        %v2832 = vsub.f32 %v1717, %v2831
        %v2833 = vand.u32 %v2832, 4294901760
        %2834 = vmatpush1.xpose.msra.mxu0 %v2833
        %2835 = vmatprep.subr.mxu0 0.0
        %v2836 = vand.u32 %v1716, 4294901760
        %v2837 = vsub.f32 %v1716, %v2836
        %v2838 = vand.u32 %v2837, 4294901760
        %2839 = vmatpush1.xpose.msra.mxu0 %v2838
        %2840 = vmatprep.subr.mxu0 0.0
        %v2841 = vand.u32 %v1715, 4294901760
        %v2842 = vsub.f32 %v1715, %v2841
        %v2843 = vand.u32 %v2842, 4294901760
        %2844 = vmatpush1.xpose.msra.mxu0 %v2843
        %2845 = vmatprep.subr.mxu0 0.0
        %v2846 = vand.u32 %v1714, 4294901760
        %v2847 = vsub.f32 %v1714, %v2846
        %v2848 = vand.u32 %v2847, 4294901760
        %2849 = vmatpush1.xpose.msra.mxu0 %v2848
        %2850 = vmatprep.subr.mxu0 0.0
        %v2851 = vand.u32 %v1713, 4294901760
        %v2852 = vsub.f32 %v1713, %v2851
        %v2853 = vand.u32 %v2852, 4294901760
        %2854 = vmatpush1.xpose.msra.mxu0 %v2853
        %2855 = vmatprep.subr.mxu0 0.0
        %v2856 = vand.u32 %v1712, 4294901760
        %v2857 = vsub.f32 %v1712, %v2856
        %v2858 = vand.u32 %v2857, 4294901760
        %2859 = vmatpush1.xpose.msra.mxu0 %v2858
        %2860 = vmatprep.subr.mxu0 0.0
        %v2861 = vand.u32 %v1711, 4294901760
        %v2862 = vsub.f32 %v1711, %v2861
        %v2863 = vand.u32 %v2862, 4294901760
        %2864 = vmatpush1.xpose.msra.mxu0 %v2863
        %2865 = vmatprep.subr.mxu0 0.0
        %v2866 = vand.u32 %v1710, 4294901760
        %v2867 = vsub.f32 %v1710, %v2866
        %v2868 = vand.u32 %v2867, 4294901760
        %2869 = vmatpush1.xpose.msra.mxu0 %v2868
        %2870 = vmatprep.subr.mxu0 0.0
        %v2871 = vand.u32 %v1709, 4294901760
        %v2872 = vsub.f32 %v1709, %v2871
        %v2873 = vand.u32 %v2872, 4294901760
        %2874 = vmatpush1.xpose.msra.mxu0 %v2873
        %2875 = vmatprep.subr.mxu0 0.0
        %v2876 = vand.u32 %v1708, 4294901760
        %v2877 = vsub.f32 %v1708, %v2876
        %v2878 = vand.u32 %v2877, 4294901760
        %2879 = vmatpush1.xpose.msra.mxu0 %v2878
        %2880 = vmatprep.subr.mxu0 0.0
        %2881 = vmatpush2.xpose.msra.mxu0 0.0
        %2882 = vmatprep.subr.mxu0 0.0
        %2883 = vmatpush2.xpose.msra.mxu0 0.0
        %2884 = vmatprep.subr.mxu0 0.0
        %2885 = vmatpush2.xpose.msra.mxu0 0.0
        %2886 = vmatprep.subr.mxu0 0.0
        %2887 = vmatpush2.xpose.msra.mxu0 0.0
        %2888 = vmatprep.subr.mxu0 0.0
        %2889 = vmatpush2.xpose.msra.mxu0 0.0
        %2890 = vmatprep.subr.mxu0 0.0
        %2891 = vmatpush2.xpose.msra.mxu0 0.0
        %2892 = vmatprep.subr.mxu0 0.0
        %2893 = vmatpush2.xpose.msra.mxu0 0.0
        %2894 = vmatprep.subr.mxu0 0.0
        %2895 = vmatpush2.xpose.msra.mxu0 0.0
        %2896 = vmatprep.subr.mxu0 0.0
        %2897 = vmatpush2.xpose.msra.mxu0 0.0
        %2898 = vmatprep.subr.mxu0 0.0
        %2899 = vmatpush2.xpose.msra.mxu0 0.0
        %2900 = vmatprep.subr.mxu0 0.0
        %2901 = vmatpush2.xpose.msra.mxu0 0.0
        %2902 = vmatprep.subr.mxu0 0.0
        %2903 = vmatpush2.xpose.msra.mxu0 0.0
        %2904 = vmatprep.subr.mxu0 0.0
        %2905 = vmatpush2.xpose.msra.mxu0 0.0
        %2906 = vmatprep.subr.mxu0 0.0
        %2907 = vmatpush2.xpose.msra.mxu0 0.0
        %2908 = vmatprep.subr.mxu0 0.0
        %2909 = vmatpush2.xpose.msra.mxu0 0.0
        %2910 = vmatprep.subr.mxu0 0.0
        %2911 = vmatpush2.xpose.msra.mxu0 0.0
        %2912 = vmatprep.mubr.f32.mxu0 0.0
        %v2913 = vand.u32 %v989, 4294901760
        %2914 = vmatmul.mubr.f32.gmra.mxu0 %v2913
        %v2915 = vpop.f32.mrf.mxu0
        %v2916 = vadd.f32 %v2797, %v2915
        %v2917 = vpop.f32.mrf.mxu0
        %2918 = vdwg.mxu0
        %2919 = vmatprep.subr.mxu0 0.0
        %v2920 = vand.u32 %v1723, 4294901760
        %2921 = vmatpush1.xpose.msra.mxu0 %v2920
        %2922 = vmatprep.subr.mxu0 0.0
        %v2923 = vand.u32 %v1722, 4294901760
        %2924 = vmatpush1.xpose.msra.mxu0 %v2923
        %2925 = vmatprep.subr.mxu0 0.0
        %v2926 = vand.u32 %v1721, 4294901760
        %2927 = vmatpush1.xpose.msra.mxu0 %v2926
        %2928 = vmatprep.subr.mxu0 0.0
        %v2929 = vand.u32 %v1720, 4294901760
        %2930 = vmatpush1.xpose.msra.mxu0 %v2929
        %2931 = vmatprep.subr.mxu0 0.0
        %v2932 = vand.u32 %v1719, 4294901760
        %2933 = vmatpush1.xpose.msra.mxu0 %v2932
        %2934 = vmatprep.subr.mxu0 0.0
        %v2935 = vand.u32 %v1718, 4294901760
        %2936 = vmatpush1.xpose.msra.mxu0 %v2935
        %2937 = vmatprep.subr.mxu0 0.0
        %v2938 = vand.u32 %v1717, 4294901760
        %2939 = vmatpush1.xpose.msra.mxu0 %v2938
        %2940 = vmatprep.subr.mxu0 0.0
        %v2941 = vand.u32 %v1716, 4294901760
        %2942 = vmatpush1.xpose.msra.mxu0 %v2941
        %2943 = vmatprep.subr.mxu0 0.0
        %v2944 = vand.u32 %v1715, 4294901760
        %2945 = vmatpush1.xpose.msra.mxu0 %v2944
        %2946 = vmatprep.subr.mxu0 0.0
        %v2947 = vand.u32 %v1714, 4294901760
        %2948 = vmatpush1.xpose.msra.mxu0 %v2947
        %2949 = vmatprep.subr.mxu0 0.0
        %v2950 = vand.u32 %v1713, 4294901760
        %2951 = vmatpush1.xpose.msra.mxu0 %v2950
        %2952 = vmatprep.subr.mxu0 0.0
        %v2953 = vand.u32 %v1712, 4294901760
        %2954 = vmatpush1.xpose.msra.mxu0 %v2953
        %2955 = vmatprep.subr.mxu0 0.0
        %v2956 = vand.u32 %v1711, 4294901760
        %2957 = vmatpush1.xpose.msra.mxu0 %v2956
        %2958 = vmatprep.subr.mxu0 0.0
        %v2959 = vand.u32 %v1710, 4294901760
        %2960 = vmatpush1.xpose.msra.mxu0 %v2959
        %2961 = vmatprep.subr.mxu0 0.0
        %v2962 = vand.u32 %v1709, 4294901760
        %2963 = vmatpush1.xpose.msra.mxu0 %v2962
        %2964 = vmatprep.subr.mxu0 0.0
        %v2965 = vand.u32 %v1708, 4294901760
        %2966 = vmatpush1.xpose.msra.mxu0 %v2965
        %2967 = vmatprep.subr.mxu0 0.0
        %2968 = vmatpush2.xpose.msra.mxu0 0.0
        %2969 = vmatprep.subr.mxu0 0.0
        %2970 = vmatpush2.xpose.msra.mxu0 0.0
        %2971 = vmatprep.subr.mxu0 0.0
        %2972 = vmatpush2.xpose.msra.mxu0 0.0
        %2973 = vmatprep.subr.mxu0 0.0
        %2974 = vmatpush2.xpose.msra.mxu0 0.0
        %2975 = vmatprep.subr.mxu0 0.0
        %2976 = vmatpush2.xpose.msra.mxu0 0.0
        %2977 = vmatprep.subr.mxu0 0.0
        %2978 = vmatpush2.xpose.msra.mxu0 0.0
        %2979 = vmatprep.subr.mxu0 0.0
        %2980 = vmatpush2.xpose.msra.mxu0 0.0
        %2981 = vmatprep.subr.mxu0 0.0
        %2982 = vmatpush2.xpose.msra.mxu0 0.0
        %2983 = vmatprep.subr.mxu0 0.0
        %2984 = vmatpush2.xpose.msra.mxu0 0.0
        %2985 = vmatprep.subr.mxu0 0.0
        %2986 = vmatpush2.xpose.msra.mxu0 0.0
        %2987 = vmatprep.subr.mxu0 0.0
        %2988 = vmatpush2.xpose.msra.mxu0 0.0
        %2989 = vmatprep.subr.mxu0 0.0
        %2990 = vmatpush2.xpose.msra.mxu0 0.0
        %2991 = vmatprep.subr.mxu0 0.0
        %2992 = vmatpush2.xpose.msra.mxu0 0.0
        %2993 = vmatprep.subr.mxu0 0.0
        %2994 = vmatpush2.xpose.msra.mxu0 0.0
        %2995 = vmatprep.subr.mxu0 0.0
        %2996 = vmatpush2.xpose.msra.mxu0 0.0
        %2997 = vmatprep.subr.mxu0 0.0
        %2998 = vmatpush2.xpose.msra.mxu0 0.0
        %2999 = vmatprep.mubr.f32.mxu0 0.0
        %v3000 = vand.u32 %v989, 4294901760
        %3001 = vmatmul.mubr.f32.gmra.mxu0 %v3000
        %v3002 = vpop.f32.mrf.mxu0
        %v3003 = vadd.f32 %v2916, %v3002
        %v3004 = vpop.f32.mrf.mxu0
        %3005 = vdwg.mxu0
        %3006 = vmax.xlane.f32.xlu0 %v2362
        %v3007 = vpop.xlane.xlu0 %3006
        %3008 = vmax.xlane.f32.xlu0 %v3003
        %v3009 = vpop.xlane.xlu0 %3008
        %v3010 = vsub.f32 %v2362, %v3007
        %v3011 = vsub.f32 %v3003, %v3009
        %v3012 = vmul.f32 %v3010, 1.442695
        %v3013 = vpow.pop %v3012
        %v3014 = vmul.f32 %v3011, 1.442695
        %v3015 = vpow.pop %v3014
        %3016 = vadd.xlane.f32.xlu0 %v3013
        %v3017 = vpop.xlane.xlu0 %3016
        %3018 = vadd.xlane.f32.xlu0 %v3015
        %v3019 = vpop.xlane.xlu0 %3018
        %v3020 = vrcp.pop %v3017
        %v3021 = vmul.f32 %v3013, %v3020
        %v3022 = vrcp.pop %v3019
        %v3023 = vmul.f32 %v3015, %v3022
        %3024 = vmatprep.subr.mxu0 0.0
        %v3025 = vand.u32 %v1707, 4294901760
        %3026 = vmatpush1.msra.mxu0 %v3025
        %3027 = vmatprep.subr.mxu0 0.0
        %v3028 = vand.u32 %v1706, 4294901760
        %3029 = vmatpush1.msra.mxu0 %v3028
        %3030 = vmatprep.subr.mxu0 0.0
        %v3031 = vand.u32 %v1705, 4294901760
        %3032 = vmatpush1.msra.mxu0 %v3031
        %3033 = vmatprep.subr.mxu0 0.0
        %v3034 = vand.u32 %v1704, 4294901760
        %3035 = vmatpush1.msra.mxu0 %v3034
        %3036 = vmatprep.subr.mxu0 0.0
        %v3037 = vand.u32 %v1703, 4294901760
        %3038 = vmatpush1.msra.mxu0 %v3037
        %3039 = vmatprep.subr.mxu0 0.0
        %v3040 = vand.u32 %v1702, 4294901760
        %3041 = vmatpush1.msra.mxu0 %v3040
        %3042 = vmatprep.subr.mxu0 0.0
        %v3043 = vand.u32 %v1701, 4294901760
        %3044 = vmatpush1.msra.mxu0 %v3043
        %3045 = vmatprep.subr.mxu0 0.0
        %v3046 = vand.u32 %v1700, 4294901760
        %3047 = vmatpush1.msra.mxu0 %v3046
        %3048 = vmatprep.subr.mxu0 0.0
        %v3049 = vand.u32 %v1699, 4294901760
        %3050 = vmatpush1.msra.mxu0 %v3049
        %3051 = vmatprep.subr.mxu0 0.0
        %v3052 = vand.u32 %v1698, 4294901760
        %3053 = vmatpush1.msra.mxu0 %v3052
        %3054 = vmatprep.subr.mxu0 0.0
        %v3055 = vand.u32 %v1697, 4294901760
        %3056 = vmatpush1.msra.mxu0 %v3055
        %3057 = vmatprep.subr.mxu0 0.0
        %v3058 = vand.u32 %v1696, 4294901760
        %3059 = vmatpush1.msra.mxu0 %v3058
        %3060 = vmatprep.subr.mxu0 0.0
        %v3061 = vand.u32 %v1695, 4294901760
        %3062 = vmatpush1.msra.mxu0 %v3061
        %3063 = vmatprep.subr.mxu0 0.0
        %v3064 = vand.u32 %v1694, 4294901760
        %3065 = vmatpush1.msra.mxu0 %v3064
        %3066 = vmatprep.subr.mxu0 0.0
        %v3067 = vand.u32 %v1693, 4294901760
        %3068 = vmatpush1.msra.mxu0 %v3067
        %3069 = vmatprep.subr.mxu0 0.0
        %v3070 = vand.u32 %v1692, 4294901760
        %3071 = vmatpush1.msra.mxu0 %v3070
        %3072 = vmatprep.subr.mxu0 0.0
        %3073 = vmatpush2.msra.mxu0 0.0
        %3074 = vmatprep.subr.mxu0 0.0
        %3075 = vmatpush2.msra.mxu0 0.0
        %3076 = vmatprep.subr.mxu0 0.0
        %3077 = vmatpush2.msra.mxu0 0.0
        %3078 = vmatprep.subr.mxu0 0.0
        %3079 = vmatpush2.msra.mxu0 0.0
        %3080 = vmatprep.subr.mxu0 0.0
        %3081 = vmatpush2.msra.mxu0 0.0
        %3082 = vmatprep.subr.mxu0 0.0
        %3083 = vmatpush2.msra.mxu0 0.0
        %3084 = vmatprep.subr.mxu0 0.0
        %3085 = vmatpush2.msra.mxu0 0.0
        %3086 = vmatprep.subr.mxu0 0.0
        %3087 = vmatpush2.msra.mxu0 0.0
        %3088 = vmatprep.subr.mxu0 0.0
        %3089 = vmatpush2.msra.mxu0 0.0
        %3090 = vmatprep.subr.mxu0 0.0
        %3091 = vmatpush2.msra.mxu0 0.0
        %3092 = vmatprep.subr.mxu0 0.0
        %3093 = vmatpush2.msra.mxu0 0.0
        %3094 = vmatprep.subr.mxu0 0.0
        %3095 = vmatpush2.msra.mxu0 0.0
        %3096 = vmatprep.subr.mxu0 0.0
        %3097 = vmatpush2.msra.mxu0 0.0
        %3098 = vmatprep.subr.mxu0 0.0
        %3099 = vmatpush2.msra.mxu0 0.0
        %3100 = vmatprep.subr.mxu0 0.0
        %3101 = vmatpush2.msra.mxu0 0.0
        %3102 = vmatprep.subr.mxu0 0.0
        %3103 = vmatpush2.msra.mxu0 0.0
        %3104 = vmatprep.mubr.f32.mxu0 0.0
        %v3105 = vand.u32 %v3021, 4294901760
        %v3106 = vsub.f32 %v3021, %v3105
        %v3107 = vand.u32 %v3106, 4294901760
        %v3108 = vsub.f32 %v3106, %v3107
        %v3109 = vand.u32 %v3108, 4294901760
        %3110 = vmatmul.mubr.f32.gmra.mxu0 %v3109
        %v3111 = vpop.f32.mrf.mxu0
        %v3112 = vadd.f32 0.0, %v3111
        %v3113 = vpop.f32.mrf.mxu0
        %3114 = vdwg.mxu0
        %3115 = vmatprep.subr.mxu0 0.0
        %v3116 = vand.u32 %v1707, 4294901760
        %v3117 = vsub.f32 %v1707, %v3116
        %v3118 = vand.u32 %v3117, 4294901760
        %v3119 = vsub.f32 %v3117, %v3118
        %v3120 = vand.u32 %v3119, 4294901760
        %3121 = vmatpush1.msra.mxu0 %v3120
        %3122 = vmatprep.subr.mxu0 0.0
        %v3123 = vand.u32 %v1706, 4294901760
        %v3124 = vsub.f32 %v1706, %v3123
        %v3125 = vand.u32 %v3124, 4294901760
        %v3126 = vsub.f32 %v3124, %v3125
        %v3127 = vand.u32 %v3126, 4294901760
        %3128 = vmatpush1.msra.mxu0 %v3127
        %3129 = vmatprep.subr.mxu0 0.0
        %v3130 = vand.u32 %v1705, 4294901760
        %v3131 = vsub.f32 %v1705, %v3130
        %v3132 = vand.u32 %v3131, 4294901760
        %v3133 = vsub.f32 %v3131, %v3132
        %v3134 = vand.u32 %v3133, 4294901760
        %3135 = vmatpush1.msra.mxu0 %v3134
        %3136 = vmatprep.subr.mxu0 0.0
        %v3137 = vand.u32 %v1704, 4294901760
        %v3138 = vsub.f32 %v1704, %v3137
        %v3139 = vand.u32 %v3138, 4294901760
        %v3140 = vsub.f32 %v3138, %v3139
        %v3141 = vand.u32 %v3140, 4294901760
        %3142 = vmatpush1.msra.mxu0 %v3141
        %3143 = vmatprep.subr.mxu0 0.0
        %v3144 = vand.u32 %v1703, 4294901760
        %v3145 = vsub.f32 %v1703, %v3144
        %v3146 = vand.u32 %v3145, 4294901760
        %v3147 = vsub.f32 %v3145, %v3146
        %v3148 = vand.u32 %v3147, 4294901760
        %3149 = vmatpush1.msra.mxu0 %v3148
        %3150 = vmatprep.subr.mxu0 0.0
        %v3151 = vand.u32 %v1702, 4294901760
        %v3152 = vsub.f32 %v1702, %v3151
        %v3153 = vand.u32 %v3152, 4294901760
        %v3154 = vsub.f32 %v3152, %v3153
        %v3155 = vand.u32 %v3154, 4294901760
        %3156 = vmatpush1.msra.mxu0 %v3155
        %3157 = vmatprep.subr.mxu0 0.0
        %v3158 = vand.u32 %v1701, 4294901760
        %v3159 = vsub.f32 %v1701, %v3158
        %v3160 = vand.u32 %v3159, 4294901760
        %v3161 = vsub.f32 %v3159, %v3160
        %v3162 = vand.u32 %v3161, 4294901760
        %3163 = vmatpush1.msra.mxu0 %v3162
        %3164 = vmatprep.subr.mxu0 0.0
        %v3165 = vand.u32 %v1700, 4294901760
        %v3166 = vsub.f32 %v1700, %v3165
        %v3167 = vand.u32 %v3166, 4294901760
        %v3168 = vsub.f32 %v3166, %v3167
        %v3169 = vand.u32 %v3168, 4294901760
        %3170 = vmatpush1.msra.mxu0 %v3169
        %3171 = vmatprep.subr.mxu0 0.0
        %v3172 = vand.u32 %v1699, 4294901760
        %v3173 = vsub.f32 %v1699, %v3172
        %v3174 = vand.u32 %v3173, 4294901760
        %v3175 = vsub.f32 %v3173, %v3174
        %v3176 = vand.u32 %v3175, 4294901760
        %3177 = vmatpush1.msra.mxu0 %v3176
        %3178 = vmatprep.subr.mxu0 0.0
        %v3179 = vand.u32 %v1698, 4294901760
        %v3180 = vsub.f32 %v1698, %v3179
        %v3181 = vand.u32 %v3180, 4294901760
        %v3182 = vsub.f32 %v3180, %v3181
        %v3183 = vand.u32 %v3182, 4294901760
        %3184 = vmatpush1.msra.mxu0 %v3183
        %3185 = vmatprep.subr.mxu0 0.0
        %v3186 = vand.u32 %v1697, 4294901760
        %v3187 = vsub.f32 %v1697, %v3186
        %v3188 = vand.u32 %v3187, 4294901760
        %v3189 = vsub.f32 %v3187, %v3188
        %v3190 = vand.u32 %v3189, 4294901760
        %3191 = vmatpush1.msra.mxu0 %v3190
        %3192 = vmatprep.subr.mxu0 0.0
        %v3193 = vand.u32 %v1696, 4294901760
        %v3194 = vsub.f32 %v1696, %v3193
        %v3195 = vand.u32 %v3194, 4294901760
        %v3196 = vsub.f32 %v3194, %v3195
        %v3197 = vand.u32 %v3196, 4294901760
        %3198 = vmatpush1.msra.mxu0 %v3197
        %3199 = vmatprep.subr.mxu0 0.0
        %v3200 = vand.u32 %v1695, 4294901760
        %v3201 = vsub.f32 %v1695, %v3200
        %v3202 = vand.u32 %v3201, 4294901760
        %v3203 = vsub.f32 %v3201, %v3202
        %v3204 = vand.u32 %v3203, 4294901760
        %3205 = vmatpush1.msra.mxu0 %v3204
        %3206 = vmatprep.subr.mxu0 0.0
        %v3207 = vand.u32 %v1694, 4294901760
        %v3208 = vsub.f32 %v1694, %v3207
        %v3209 = vand.u32 %v3208, 4294901760
        %v3210 = vsub.f32 %v3208, %v3209
        %v3211 = vand.u32 %v3210, 4294901760
        %3212 = vmatpush1.msra.mxu0 %v3211
        %3213 = vmatprep.subr.mxu0 0.0
        %v3214 = vand.u32 %v1693, 4294901760
        %v3215 = vsub.f32 %v1693, %v3214
        %v3216 = vand.u32 %v3215, 4294901760
        %v3217 = vsub.f32 %v3215, %v3216
        %v3218 = vand.u32 %v3217, 4294901760
        %3219 = vmatpush1.msra.mxu0 %v3218
        %3220 = vmatprep.subr.mxu0 0.0
        %v3221 = vand.u32 %v1692, 4294901760
        %v3222 = vsub.f32 %v1692, %v3221
        %v3223 = vand.u32 %v3222, 4294901760
        %v3224 = vsub.f32 %v3222, %v3223
        %v3225 = vand.u32 %v3224, 4294901760
        %3226 = vmatpush1.msra.mxu0 %v3225
        %3227 = vmatprep.subr.mxu0 0.0
        %3228 = vmatpush2.msra.mxu0 0.0
        %3229 = vmatprep.subr.mxu0 0.0
        %3230 = vmatpush2.msra.mxu0 0.0
        %3231 = vmatprep.subr.mxu0 0.0
        %3232 = vmatpush2.msra.mxu0 0.0
        %3233 = vmatprep.subr.mxu0 0.0
        %3234 = vmatpush2.msra.mxu0 0.0
        %3235 = vmatprep.subr.mxu0 0.0
        %3236 = vmatpush2.msra.mxu0 0.0
        %3237 = vmatprep.subr.mxu0 0.0
        %3238 = vmatpush2.msra.mxu0 0.0
        %3239 = vmatprep.subr.mxu0 0.0
        %3240 = vmatpush2.msra.mxu0 0.0
        %3241 = vmatprep.subr.mxu0 0.0
        %3242 = vmatpush2.msra.mxu0 0.0
        %3243 = vmatprep.subr.mxu0 0.0
        %3244 = vmatpush2.msra.mxu0 0.0
        %3245 = vmatprep.subr.mxu0 0.0
        %3246 = vmatpush2.msra.mxu0 0.0
        %3247 = vmatprep.subr.mxu0 0.0
        %3248 = vmatpush2.msra.mxu0 0.0
        %3249 = vmatprep.subr.mxu0 0.0
        %3250 = vmatpush2.msra.mxu0 0.0
        %3251 = vmatprep.subr.mxu0 0.0
        %3252 = vmatpush2.msra.mxu0 0.0
        %3253 = vmatprep.subr.mxu0 0.0
        %3254 = vmatpush2.msra.mxu0 0.0
        %3255 = vmatprep.subr.mxu0 0.0
        %3256 = vmatpush2.msra.mxu0 0.0
        %3257 = vmatprep.subr.mxu0 0.0
        %3258 = vmatpush2.msra.mxu0 0.0
        %3259 = vmatprep.mubr.f32.mxu0 0.0
        %v3260 = vand.u32 %v3021, 4294901760
        %3261 = vmatmul.mubr.f32.gmra.mxu0 %v3260
        %v3262 = vpop.f32.mrf.mxu0
        %v3263 = vadd.f32 %v3112, %v3262
        %v3264 = vpop.f32.mrf.mxu0
        %3265 = vdwg.mxu0
        %3266 = vmatprep.subr.mxu0 0.0
        %v3267 = vand.u32 %v1707, 4294901760
        %v3268 = vsub.f32 %v1707, %v3267
        %3269 = vmatpush1.msra.mxu0 %v3268
        %3270 = vmatprep.subr.mxu0 0.0
        %v3271 = vand.u32 %v1706, 4294901760
        %v3272 = vsub.f32 %v1706, %v3271
        %3273 = vmatpush1.msra.mxu0 %v3272
        %3274 = vmatprep.subr.mxu0 0.0
        %v3275 = vand.u32 %v1705, 4294901760
        %v3276 = vsub.f32 %v1705, %v3275
        %3277 = vmatpush1.msra.mxu0 %v3276
        %3278 = vmatprep.subr.mxu0 0.0
        %v3279 = vand.u32 %v1704, 4294901760
        %v3280 = vsub.f32 %v1704, %v3279
        %3281 = vmatpush1.msra.mxu0 %v3280
        %3282 = vmatprep.subr.mxu0 0.0
        %v3283 = vand.u32 %v1703, 4294901760
        %v3284 = vsub.f32 %v1703, %v3283
        %3285 = vmatpush1.msra.mxu0 %v3284
        %3286 = vmatprep.subr.mxu0 0.0
        %v3287 = vand.u32 %v1702, 4294901760
        %v3288 = vsub.f32 %v1702, %v3287
        %3289 = vmatpush1.msra.mxu0 %v3288
        %3290 = vmatprep.subr.mxu0 0.0
        %v3291 = vand.u32 %v1701, 4294901760
        %v3292 = vsub.f32 %v1701, %v3291
        %3293 = vmatpush1.msra.mxu0 %v3292
        %3294 = vmatprep.subr.mxu0 0.0
        %v3295 = vand.u32 %v1700, 4294901760
        %v3296 = vsub.f32 %v1700, %v3295
        %3297 = vmatpush1.msra.mxu0 %v3296
        %3298 = vmatprep.subr.mxu0 0.0
        %v3299 = vand.u32 %v1699, 4294901760
        %v3300 = vsub.f32 %v1699, %v3299
        %3301 = vmatpush1.msra.mxu0 %v3300
        %3302 = vmatprep.subr.mxu0 0.0
        %v3303 = vand.u32 %v1698, 4294901760
        %v3304 = vsub.f32 %v1698, %v3303
        %3305 = vmatpush1.msra.mxu0 %v3304
        %3306 = vmatprep.subr.mxu0 0.0
        %v3307 = vand.u32 %v1697, 4294901760
        %v3308 = vsub.f32 %v1697, %v3307
        %3309 = vmatpush1.msra.mxu0 %v3308
        %3310 = vmatprep.subr.mxu0 0.0
        %v3311 = vand.u32 %v1696, 4294901760
        %v3312 = vsub.f32 %v1696, %v3311
        %3313 = vmatpush1.msra.mxu0 %v3312
        %3314 = vmatprep.subr.mxu0 0.0
        %v3315 = vand.u32 %v1695, 4294901760
        %v3316 = vsub.f32 %v1695, %v3315
        %3317 = vmatpush1.msra.mxu0 %v3316
        %3318 = vmatprep.subr.mxu0 0.0
        %v3319 = vand.u32 %v1694, 4294901760
        %v3320 = vsub.f32 %v1694, %v3319
        %3321 = vmatpush1.msra.mxu0 %v3320
        %3322 = vmatprep.subr.mxu0 0.0
        %v3323 = vand.u32 %v1693, 4294901760
        %v3324 = vsub.f32 %v1693, %v3323
        %3325 = vmatpush1.msra.mxu0 %v3324
        %3326 = vmatprep.subr.mxu0 0.0
        %v3327 = vand.u32 %v1692, 4294901760
        %v3328 = vsub.f32 %v1692, %v3327
        %3329 = vmatpush1.msra.mxu0 %v3328
        %3330 = vmatprep.subr.mxu0 0.0
        %3331 = vmatpush2.msra.mxu0 0.0
        %3332 = vmatprep.subr.mxu0 0.0
        %3333 = vmatpush2.msra.mxu0 0.0
        %3334 = vmatprep.subr.mxu0 0.0
        %3335 = vmatpush2.msra.mxu0 0.0
        %3336 = vmatprep.subr.mxu0 0.0
        %3337 = vmatpush2.msra.mxu0 0.0
        %3338 = vmatprep.subr.mxu0 0.0
        %3339 = vmatpush2.msra.mxu0 0.0
        %3340 = vmatprep.subr.mxu0 0.0
        %3341 = vmatpush2.msra.mxu0 0.0
        %3342 = vmatprep.subr.mxu0 0.0
        %3343 = vmatpush2.msra.mxu0 0.0
        %3344 = vmatprep.subr.mxu0 0.0
        %3345 = vmatpush2.msra.mxu0 0.0
        %3346 = vmatprep.subr.mxu0 0.0
        %3347 = vmatpush2.msra.mxu0 0.0
        %3348 = vmatprep.subr.mxu0 0.0
        %3349 = vmatpush2.msra.mxu0 0.0
        %3350 = vmatprep.subr.mxu0 0.0
        %3351 = vmatpush2.msra.mxu0 0.0
        %3352 = vmatprep.subr.mxu0 0.0
        %3353 = vmatpush2.msra.mxu0 0.0
        %3354 = vmatprep.subr.mxu0 0.0
        %3355 = vmatpush2.msra.mxu0 0.0
        %3356 = vmatprep.subr.mxu0 0.0
        %3357 = vmatpush2.msra.mxu0 0.0
        %3358 = vmatprep.subr.mxu0 0.0
        %3359 = vmatpush2.msra.mxu0 0.0
        %3360 = vmatprep.subr.mxu0 0.0
        %3361 = vmatpush2.msra.mxu0 0.0
        %3362 = vmatprep.mubr.f32.mxu0 0.0
        %v3363 = vand.u32 %v3021, 4294901760
        %v3364 = vsub.f32 %v3021, %v3363
        %3365 = vmatmul.mubr.f32.gmra.mxu0 %v3364
        %v3366 = vpop.f32.mrf.mxu0
        %v3367 = vadd.f32 %v3263, %v3366
        %v3368 = vpop.f32.mrf.mxu0
        %3369 = vdwg.mxu0
        %3370 = vmatprep.subr.mxu0 0.0
        %v3371 = vand.u32 %v1707, 4294901760
        %3372 = vmatpush1.msra.mxu0 %v3371
        %3373 = vmatprep.subr.mxu0 0.0
        %v3374 = vand.u32 %v1706, 4294901760
        %3375 = vmatpush1.msra.mxu0 %v3374
        %3376 = vmatprep.subr.mxu0 0.0
        %v3377 = vand.u32 %v1705, 4294901760
        %3378 = vmatpush1.msra.mxu0 %v3377
        %3379 = vmatprep.subr.mxu0 0.0
        %v3380 = vand.u32 %v1704, 4294901760
        %3381 = vmatpush1.msra.mxu0 %v3380
        %3382 = vmatprep.subr.mxu0 0.0
        %v3383 = vand.u32 %v1703, 4294901760
        %3384 = vmatpush1.msra.mxu0 %v3383
        %3385 = vmatprep.subr.mxu0 0.0
        %v3386 = vand.u32 %v1702, 4294901760
        %3387 = vmatpush1.msra.mxu0 %v3386
        %3388 = vmatprep.subr.mxu0 0.0
        %v3389 = vand.u32 %v1701, 4294901760
        %3390 = vmatpush1.msra.mxu0 %v3389
        %3391 = vmatprep.subr.mxu0 0.0
        %v3392 = vand.u32 %v1700, 4294901760
        %3393 = vmatpush1.msra.mxu0 %v3392
        %3394 = vmatprep.subr.mxu0 0.0
        %v3395 = vand.u32 %v1699, 4294901760
        %3396 = vmatpush1.msra.mxu0 %v3395
        %3397 = vmatprep.subr.mxu0 0.0
        %v3398 = vand.u32 %v1698, 4294901760
        %3399 = vmatpush1.msra.mxu0 %v3398
        %3400 = vmatprep.subr.mxu0 0.0
        %v3401 = vand.u32 %v1697, 4294901760
        %3402 = vmatpush1.msra.mxu0 %v3401
        %3403 = vmatprep.subr.mxu0 0.0
        %v3404 = vand.u32 %v1696, 4294901760
        %3405 = vmatpush1.msra.mxu0 %v3404
        %3406 = vmatprep.subr.mxu0 0.0
        %v3407 = vand.u32 %v1695, 4294901760
        %3408 = vmatpush1.msra.mxu0 %v3407
        %3409 = vmatprep.subr.mxu0 0.0
        %v3410 = vand.u32 %v1694, 4294901760
        %3411 = vmatpush1.msra.mxu0 %v3410
        %3412 = vmatprep.subr.mxu0 0.0
        %v3413 = vand.u32 %v1693, 4294901760
        %3414 = vmatpush1.msra.mxu0 %v3413
        %3415 = vmatprep.subr.mxu0 0.0
        %v3416 = vand.u32 %v1692, 4294901760
        %3417 = vmatpush1.msra.mxu0 %v3416
        %3418 = vmatprep.subr.mxu0 0.0
        %3419 = vmatpush2.msra.mxu0 0.0
        %3420 = vmatprep.subr.mxu0 0.0
        %3421 = vmatpush2.msra.mxu0 0.0
        %3422 = vmatprep.subr.mxu0 0.0
        %3423 = vmatpush2.msra.mxu0 0.0
        %3424 = vmatprep.subr.mxu0 0.0
        %3425 = vmatpush2.msra.mxu0 0.0
        %3426 = vmatprep.subr.mxu0 0.0
        %3427 = vmatpush2.msra.mxu0 0.0
        %3428 = vmatprep.subr.mxu0 0.0
        %3429 = vmatpush2.msra.mxu0 0.0
        %3430 = vmatprep.subr.mxu0 0.0
        %3431 = vmatpush2.msra.mxu0 0.0
        %3432 = vmatprep.subr.mxu0 0.0
        %3433 = vmatpush2.msra.mxu0 0.0
        %3434 = vmatprep.subr.mxu0 0.0
        %3435 = vmatpush2.msra.mxu0 0.0
        %3436 = vmatprep.subr.mxu0 0.0
        %3437 = vmatpush2.msra.mxu0 0.0
        %3438 = vmatprep.subr.mxu0 0.0
        %3439 = vmatpush2.msra.mxu0 0.0
        %3440 = vmatprep.subr.mxu0 0.0
        %3441 = vmatpush2.msra.mxu0 0.0
        %3442 = vmatprep.subr.mxu0 0.0
        %3443 = vmatpush2.msra.mxu0 0.0
        %3444 = vmatprep.subr.mxu0 0.0
        %3445 = vmatpush2.msra.mxu0 0.0
        %3446 = vmatprep.subr.mxu0 0.0
        %3447 = vmatpush2.msra.mxu0 0.0
        %3448 = vmatprep.subr.mxu0 0.0
        %3449 = vmatpush2.msra.mxu0 0.0
        %3450 = vmatprep.mubr.f32.mxu0 0.0
        %v3451 = vand.u32 %v3021, 4294901760
        %v3452 = vsub.f32 %v3021, %v3451
        %v3453 = vand.u32 %v3452, 4294901760
        %3454 = vmatmul.mubr.f32.gmra.mxu0 %v3453
        %v3455 = vpop.f32.mrf.mxu0
        %v3456 = vadd.f32 %v3367, %v3455
        %v3457 = vpop.f32.mrf.mxu0
        %3458 = vdwg.mxu0
        %3459 = vmatprep.subr.mxu0 0.0
        %v3460 = vand.u32 %v1707, 4294901760
        %v3461 = vsub.f32 %v1707, %v3460
        %v3462 = vand.u32 %v3461, 4294901760
        %3463 = vmatpush1.msra.mxu0 %v3462
        %3464 = vmatprep.subr.mxu0 0.0
        %v3465 = vand.u32 %v1706, 4294901760
        %v3466 = vsub.f32 %v1706, %v3465
        %v3467 = vand.u32 %v3466, 4294901760
        %3468 = vmatpush1.msra.mxu0 %v3467
        %3469 = vmatprep.subr.mxu0 0.0
        %v3470 = vand.u32 %v1705, 4294901760
        %v3471 = vsub.f32 %v1705, %v3470
        %v3472 = vand.u32 %v3471, 4294901760
        %3473 = vmatpush1.msra.mxu0 %v3472
        %3474 = vmatprep.subr.mxu0 0.0
        %v3475 = vand.u32 %v1704, 4294901760
        %v3476 = vsub.f32 %v1704, %v3475
        %v3477 = vand.u32 %v3476, 4294901760
        %3478 = vmatpush1.msra.mxu0 %v3477
        %3479 = vmatprep.subr.mxu0 0.0
        %v3480 = vand.u32 %v1703, 4294901760
        %v3481 = vsub.f32 %v1703, %v3480
        %v3482 = vand.u32 %v3481, 4294901760
        %3483 = vmatpush1.msra.mxu0 %v3482
        %3484 = vmatprep.subr.mxu0 0.0
        %v3485 = vand.u32 %v1702, 4294901760
        %v3486 = vsub.f32 %v1702, %v3485
        %v3487 = vand.u32 %v3486, 4294901760
        %3488 = vmatpush1.msra.mxu0 %v3487
        %3489 = vmatprep.subr.mxu0 0.0
        %v3490 = vand.u32 %v1701, 4294901760
        %v3491 = vsub.f32 %v1701, %v3490
        %v3492 = vand.u32 %v3491, 4294901760
        %3493 = vmatpush1.msra.mxu0 %v3492
        %3494 = vmatprep.subr.mxu0 0.0
        %v3495 = vand.u32 %v1700, 4294901760
        %v3496 = vsub.f32 %v1700, %v3495
        %v3497 = vand.u32 %v3496, 4294901760
        %3498 = vmatpush1.msra.mxu0 %v3497
        %3499 = vmatprep.subr.mxu0 0.0
        %v3500 = vand.u32 %v1699, 4294901760
        %v3501 = vsub.f32 %v1699, %v3500
        %v3502 = vand.u32 %v3501, 4294901760
        %3503 = vmatpush1.msra.mxu0 %v3502
        %3504 = vmatprep.subr.mxu0 0.0
        %v3505 = vand.u32 %v1698, 4294901760
        %v3506 = vsub.f32 %v1698, %v3505
        %v3507 = vand.u32 %v3506, 4294901760
        %3508 = vmatpush1.msra.mxu0 %v3507
        %3509 = vmatprep.subr.mxu0 0.0
        %v3510 = vand.u32 %v1697, 4294901760
        %v3511 = vsub.f32 %v1697, %v3510
        %v3512 = vand.u32 %v3511, 4294901760
        %3513 = vmatpush1.msra.mxu0 %v3512
        %3514 = vmatprep.subr.mxu0 0.0
        %v3515 = vand.u32 %v1696, 4294901760
        %v3516 = vsub.f32 %v1696, %v3515
        %v3517 = vand.u32 %v3516, 4294901760
        %3518 = vmatpush1.msra.mxu0 %v3517
        %3519 = vmatprep.subr.mxu0 0.0
        %v3520 = vand.u32 %v1695, 4294901760
        %v3521 = vsub.f32 %v1695, %v3520
        %v3522 = vand.u32 %v3521, 4294901760
        %3523 = vmatpush1.msra.mxu0 %v3522
        %3524 = vmatprep.subr.mxu0 0.0
        %v3525 = vand.u32 %v1694, 4294901760
        %v3526 = vsub.f32 %v1694, %v3525
        %v3527 = vand.u32 %v3526, 4294901760
        %3528 = vmatpush1.msra.mxu0 %v3527
        %3529 = vmatprep.subr.mxu0 0.0
        %v3530 = vand.u32 %v1693, 4294901760
        %v3531 = vsub.f32 %v1693, %v3530
        %v3532 = vand.u32 %v3531, 4294901760
        %3533 = vmatpush1.msra.mxu0 %v3532
        %3534 = vmatprep.subr.mxu0 0.0
        %v3535 = vand.u32 %v1692, 4294901760
        %v3536 = vsub.f32 %v1692, %v3535
        %v3537 = vand.u32 %v3536, 4294901760
        %3538 = vmatpush1.msra.mxu0 %v3537
        %3539 = vmatprep.subr.mxu0 0.0
        %3540 = vmatpush2.msra.mxu0 0.0
        %3541 = vmatprep.subr.mxu0 0.0
        %3542 = vmatpush2.msra.mxu0 0.0
        %3543 = vmatprep.subr.mxu0 0.0
        %3544 = vmatpush2.msra.mxu0 0.0
        %3545 = vmatprep.subr.mxu0 0.0
        %3546 = vmatpush2.msra.mxu0 0.0
        %3547 = vmatprep.subr.mxu0 0.0
        %3548 = vmatpush2.msra.mxu0 0.0
        %3549 = vmatprep.subr.mxu0 0.0
        %3550 = vmatpush2.msra.mxu0 0.0
        %3551 = vmatprep.subr.mxu0 0.0
        %3552 = vmatpush2.msra.mxu0 0.0
        %3553 = vmatprep.subr.mxu0 0.0
        %3554 = vmatpush2.msra.mxu0 0.0
        %3555 = vmatprep.subr.mxu0 0.0
        %3556 = vmatpush2.msra.mxu0 0.0
        %3557 = vmatprep.subr.mxu0 0.0
        %3558 = vmatpush2.msra.mxu0 0.0
        %3559 = vmatprep.subr.mxu0 0.0
        %3560 = vmatpush2.msra.mxu0 0.0
        %3561 = vmatprep.subr.mxu0 0.0
        %3562 = vmatpush2.msra.mxu0 0.0
        %3563 = vmatprep.subr.mxu0 0.0
        %3564 = vmatpush2.msra.mxu0 0.0
        %3565 = vmatprep.subr.mxu0 0.0
        %3566 = vmatpush2.msra.mxu0 0.0
        %3567 = vmatprep.subr.mxu0 0.0
        %3568 = vmatpush2.msra.mxu0 0.0
        %3569 = vmatprep.subr.mxu0 0.0
        %3570 = vmatpush2.msra.mxu0 0.0
        %3571 = vmatprep.mubr.f32.mxu0 0.0
        %v3572 = vand.u32 %v3021, 4294901760
        %3573 = vmatmul.mubr.f32.gmra.mxu0 %v3572
        %v3574 = vpop.f32.mrf.mxu0
        %v3575 = vadd.f32 %v3456, %v3574
        %v3576 = vpop.f32.mrf.mxu0
        %3577 = vdwg.mxu0
        %3578 = vmatprep.subr.mxu0 0.0
        %v3579 = vand.u32 %v1707, 4294901760
        %3580 = vmatpush1.msra.mxu0 %v3579
        %3581 = vmatprep.subr.mxu0 0.0
        %v3582 = vand.u32 %v1706, 4294901760
        %3583 = vmatpush1.msra.mxu0 %v3582
        %3584 = vmatprep.subr.mxu0 0.0
        %v3585 = vand.u32 %v1705, 4294901760
        %3586 = vmatpush1.msra.mxu0 %v3585
        %3587 = vmatprep.subr.mxu0 0.0
        %v3588 = vand.u32 %v1704, 4294901760
        %3589 = vmatpush1.msra.mxu0 %v3588
        %3590 = vmatprep.subr.mxu0 0.0
        %v3591 = vand.u32 %v1703, 4294901760
        %3592 = vmatpush1.msra.mxu0 %v3591
        %3593 = vmatprep.subr.mxu0 0.0
        %v3594 = vand.u32 %v1702, 4294901760
        %3595 = vmatpush1.msra.mxu0 %v3594
        %3596 = vmatprep.subr.mxu0 0.0
        %v3597 = vand.u32 %v1701, 4294901760
        %3598 = vmatpush1.msra.mxu0 %v3597
        %3599 = vmatprep.subr.mxu0 0.0
        %v3600 = vand.u32 %v1700, 4294901760
        %3601 = vmatpush1.msra.mxu0 %v3600
        %3602 = vmatprep.subr.mxu0 0.0
        %v3603 = vand.u32 %v1699, 4294901760
        %3604 = vmatpush1.msra.mxu0 %v3603
        %3605 = vmatprep.subr.mxu0 0.0
        %v3606 = vand.u32 %v1698, 4294901760
        %3607 = vmatpush1.msra.mxu0 %v3606
        %3608 = vmatprep.subr.mxu0 0.0
        %v3609 = vand.u32 %v1697, 4294901760
        %3610 = vmatpush1.msra.mxu0 %v3609
        %3611 = vmatprep.subr.mxu0 0.0
        %v3612 = vand.u32 %v1696, 4294901760
        %3613 = vmatpush1.msra.mxu0 %v3612
        %3614 = vmatprep.subr.mxu0 0.0
        %v3615 = vand.u32 %v1695, 4294901760
        %3616 = vmatpush1.msra.mxu0 %v3615
        %3617 = vmatprep.subr.mxu0 0.0
        %v3618 = vand.u32 %v1694, 4294901760
        %3619 = vmatpush1.msra.mxu0 %v3618
        %3620 = vmatprep.subr.mxu0 0.0
        %v3621 = vand.u32 %v1693, 4294901760
        %3622 = vmatpush1.msra.mxu0 %v3621
        %3623 = vmatprep.subr.mxu0 0.0
        %v3624 = vand.u32 %v1692, 4294901760
        %3625 = vmatpush1.msra.mxu0 %v3624
        %3626 = vmatprep.subr.mxu0 0.0
        %3627 = vmatpush2.msra.mxu0 0.0
        %3628 = vmatprep.subr.mxu0 0.0
        %3629 = vmatpush2.msra.mxu0 0.0
        %3630 = vmatprep.subr.mxu0 0.0
        %3631 = vmatpush2.msra.mxu0 0.0
        %3632 = vmatprep.subr.mxu0 0.0
        %3633 = vmatpush2.msra.mxu0 0.0
        %3634 = vmatprep.subr.mxu0 0.0
        %3635 = vmatpush2.msra.mxu0 0.0
        %3636 = vmatprep.subr.mxu0 0.0
        %3637 = vmatpush2.msra.mxu0 0.0
        %3638 = vmatprep.subr.mxu0 0.0
        %3639 = vmatpush2.msra.mxu0 0.0
        %3640 = vmatprep.subr.mxu0 0.0
        %3641 = vmatpush2.msra.mxu0 0.0
        %3642 = vmatprep.subr.mxu0 0.0
        %3643 = vmatpush2.msra.mxu0 0.0
        %3644 = vmatprep.subr.mxu0 0.0
        %3645 = vmatpush2.msra.mxu0 0.0
        %3646 = vmatprep.subr.mxu0 0.0
        %3647 = vmatpush2.msra.mxu0 0.0
        %3648 = vmatprep.subr.mxu0 0.0
        %3649 = vmatpush2.msra.mxu0 0.0
        %3650 = vmatprep.subr.mxu0 0.0
        %3651 = vmatpush2.msra.mxu0 0.0
        %3652 = vmatprep.subr.mxu0 0.0
        %3653 = vmatpush2.msra.mxu0 0.0
        %3654 = vmatprep.subr.mxu0 0.0
        %3655 = vmatpush2.msra.mxu0 0.0
        %3656 = vmatprep.subr.mxu0 0.0
        %3657 = vmatpush2.msra.mxu0 0.0
        %3658 = vmatprep.mubr.f32.mxu0 0.0
        %v3659 = vand.u32 %v3021, 4294901760
        %3660 = vmatmul.mubr.f32.gmra.mxu0 %v3659
        %v3661 = vpop.f32.mrf.mxu0
        %v3662 = vadd.f32 %v3575, %v3661
        %v3663 = vpop.f32.mrf.mxu0
        %3664 = vdwg.mxu0
        %3665 = vmatprep.subr.mxu0 0.0
        %v3666 = vand.u32 %v1723, 4294901760
        %3667 = vmatpush1.msra.mxu0 %v3666
        %3668 = vmatprep.subr.mxu0 0.0
        %v3669 = vand.u32 %v1722, 4294901760
        %3670 = vmatpush1.msra.mxu0 %v3669
        %3671 = vmatprep.subr.mxu0 0.0
        %v3672 = vand.u32 %v1721, 4294901760
        %3673 = vmatpush1.msra.mxu0 %v3672
        %3674 = vmatprep.subr.mxu0 0.0
        %v3675 = vand.u32 %v1720, 4294901760
        %3676 = vmatpush1.msra.mxu0 %v3675
        %3677 = vmatprep.subr.mxu0 0.0
        %v3678 = vand.u32 %v1719, 4294901760
        %3679 = vmatpush1.msra.mxu0 %v3678
        %3680 = vmatprep.subr.mxu0 0.0
        %v3681 = vand.u32 %v1718, 4294901760
        %3682 = vmatpush1.msra.mxu0 %v3681
        %3683 = vmatprep.subr.mxu0 0.0
        %v3684 = vand.u32 %v1717, 4294901760
        %3685 = vmatpush1.msra.mxu0 %v3684
        %3686 = vmatprep.subr.mxu0 0.0
        %v3687 = vand.u32 %v1716, 4294901760
        %3688 = vmatpush1.msra.mxu0 %v3687
        %3689 = vmatprep.subr.mxu0 0.0
        %v3690 = vand.u32 %v1715, 4294901760
        %3691 = vmatpush1.msra.mxu0 %v3690
        %3692 = vmatprep.subr.mxu0 0.0
        %v3693 = vand.u32 %v1714, 4294901760
        %3694 = vmatpush1.msra.mxu0 %v3693
        %3695 = vmatprep.subr.mxu0 0.0
        %v3696 = vand.u32 %v1713, 4294901760
        %3697 = vmatpush1.msra.mxu0 %v3696
        %3698 = vmatprep.subr.mxu0 0.0
        %v3699 = vand.u32 %v1712, 4294901760
        %3700 = vmatpush1.msra.mxu0 %v3699
        %3701 = vmatprep.subr.mxu0 0.0
        %v3702 = vand.u32 %v1711, 4294901760
        %3703 = vmatpush1.msra.mxu0 %v3702
        %3704 = vmatprep.subr.mxu0 0.0
        %v3705 = vand.u32 %v1710, 4294901760
        %3706 = vmatpush1.msra.mxu0 %v3705
        %3707 = vmatprep.subr.mxu0 0.0
        %v3708 = vand.u32 %v1709, 4294901760
        %3709 = vmatpush1.msra.mxu0 %v3708
        %3710 = vmatprep.subr.mxu0 0.0
        %v3711 = vand.u32 %v1708, 4294901760
        %3712 = vmatpush1.msra.mxu0 %v3711
        %3713 = vmatprep.subr.mxu0 0.0
        %3714 = vmatpush2.msra.mxu0 0.0
        %3715 = vmatprep.subr.mxu0 0.0
        %3716 = vmatpush2.msra.mxu0 0.0
        %3717 = vmatprep.subr.mxu0 0.0
        %3718 = vmatpush2.msra.mxu0 0.0
        %3719 = vmatprep.subr.mxu0 0.0
        %3720 = vmatpush2.msra.mxu0 0.0
        %3721 = vmatprep.subr.mxu0 0.0
        %3722 = vmatpush2.msra.mxu0 0.0
        %3723 = vmatprep.subr.mxu0 0.0
        %3724 = vmatpush2.msra.mxu0 0.0
        %3725 = vmatprep.subr.mxu0 0.0
        %3726 = vmatpush2.msra.mxu0 0.0
        %3727 = vmatprep.subr.mxu0 0.0
        %3728 = vmatpush2.msra.mxu0 0.0
        %3729 = vmatprep.subr.mxu0 0.0
        %3730 = vmatpush2.msra.mxu0 0.0
        %3731 = vmatprep.subr.mxu0 0.0
        %3732 = vmatpush2.msra.mxu0 0.0
        %3733 = vmatprep.subr.mxu0 0.0
        %3734 = vmatpush2.msra.mxu0 0.0
        %3735 = vmatprep.subr.mxu0 0.0
        %3736 = vmatpush2.msra.mxu0 0.0
        %3737 = vmatprep.subr.mxu0 0.0
        %3738 = vmatpush2.msra.mxu0 0.0
        %3739 = vmatprep.subr.mxu0 0.0
        %3740 = vmatpush2.msra.mxu0 0.0
        %3741 = vmatprep.subr.mxu0 0.0
        %3742 = vmatpush2.msra.mxu0 0.0
        %3743 = vmatprep.subr.mxu0 0.0
        %3744 = vmatpush2.msra.mxu0 0.0
        %3745 = vmatprep.mubr.f32.mxu0 0.0
        %v3746 = vand.u32 %v3023, 4294901760
        %v3747 = vsub.f32 %v3023, %v3746
        %v3748 = vand.u32 %v3747, 4294901760
        %v3749 = vsub.f32 %v3747, %v3748
        %v3750 = vand.u32 %v3749, 4294901760
        %3751 = vmatmul.mubr.f32.gmra.mxu0 %v3750
        %v3752 = vpop.f32.mrf.mxu0
        %v3753 = vadd.f32 0.0, %v3752
        %v3754 = vpop.f32.mrf.mxu0
        %3755 = vdwg.mxu0
        %3756 = vmatprep.subr.mxu0 0.0
        %v3757 = vand.u32 %v1723, 4294901760
        %v3758 = vsub.f32 %v1723, %v3757
        %v3759 = vand.u32 %v3758, 4294901760
        %v3760 = vsub.f32 %v3758, %v3759
        %v3761 = vand.u32 %v3760, 4294901760
        %3762 = vmatpush1.msra.mxu0 %v3761
        %3763 = vmatprep.subr.mxu0 0.0
        %v3764 = vand.u32 %v1722, 4294901760
        %v3765 = vsub.f32 %v1722, %v3764
        %v3766 = vand.u32 %v3765, 4294901760
        %v3767 = vsub.f32 %v3765, %v3766
        %v3768 = vand.u32 %v3767, 4294901760
        %3769 = vmatpush1.msra.mxu0 %v3768
        %3770 = vmatprep.subr.mxu0 0.0
        %v3771 = vand.u32 %v1721, 4294901760
        %v3772 = vsub.f32 %v1721, %v3771
        %v3773 = vand.u32 %v3772, 4294901760
        %v3774 = vsub.f32 %v3772, %v3773
        %v3775 = vand.u32 %v3774, 4294901760
        %3776 = vmatpush1.msra.mxu0 %v3775
        %3777 = vmatprep.subr.mxu0 0.0
        %v3778 = vand.u32 %v1720, 4294901760
        %v3779 = vsub.f32 %v1720, %v3778
        %v3780 = vand.u32 %v3779, 4294901760
        %v3781 = vsub.f32 %v3779, %v3780
        %v3782 = vand.u32 %v3781, 4294901760
        %3783 = vmatpush1.msra.mxu0 %v3782
        %3784 = vmatprep.subr.mxu0 0.0
        %v3785 = vand.u32 %v1719, 4294901760
        %v3786 = vsub.f32 %v1719, %v3785
        %v3787 = vand.u32 %v3786, 4294901760
        %v3788 = vsub.f32 %v3786, %v3787
        %v3789 = vand.u32 %v3788, 4294901760
        %3790 = vmatpush1.msra.mxu0 %v3789
        %3791 = vmatprep.subr.mxu0 0.0
        %v3792 = vand.u32 %v1718, 4294901760
        %v3793 = vsub.f32 %v1718, %v3792
        %v3794 = vand.u32 %v3793, 4294901760
        %v3795 = vsub.f32 %v3793, %v3794
        %v3796 = vand.u32 %v3795, 4294901760
        %3797 = vmatpush1.msra.mxu0 %v3796
        %3798 = vmatprep.subr.mxu0 0.0
        %v3799 = vand.u32 %v1717, 4294901760
        %v3800 = vsub.f32 %v1717, %v3799
        %v3801 = vand.u32 %v3800, 4294901760
        %v3802 = vsub.f32 %v3800, %v3801
        %v3803 = vand.u32 %v3802, 4294901760
        %3804 = vmatpush1.msra.mxu0 %v3803
        %3805 = vmatprep.subr.mxu0 0.0
        %v3806 = vand.u32 %v1716, 4294901760
        %v3807 = vsub.f32 %v1716, %v3806
        %v3808 = vand.u32 %v3807, 4294901760
        %v3809 = vsub.f32 %v3807, %v3808
        %v3810 = vand.u32 %v3809, 4294901760
        %3811 = vmatpush1.msra.mxu0 %v3810
        %3812 = vmatprep.subr.mxu0 0.0
        %v3813 = vand.u32 %v1715, 4294901760
        %v3814 = vsub.f32 %v1715, %v3813
        %v3815 = vand.u32 %v3814, 4294901760
        %v3816 = vsub.f32 %v3814, %v3815
        %v3817 = vand.u32 %v3816, 4294901760
        %3818 = vmatpush1.msra.mxu0 %v3817
        %3819 = vmatprep.subr.mxu0 0.0
        %v3820 = vand.u32 %v1714, 4294901760
        %v3821 = vsub.f32 %v1714, %v3820
        %v3822 = vand.u32 %v3821, 4294901760
        %v3823 = vsub.f32 %v3821, %v3822
        %v3824 = vand.u32 %v3823, 4294901760
        %3825 = vmatpush1.msra.mxu0 %v3824
        %3826 = vmatprep.subr.mxu0 0.0
        %v3827 = vand.u32 %v1713, 4294901760
        %v3828 = vsub.f32 %v1713, %v3827
        %v3829 = vand.u32 %v3828, 4294901760
        %v3830 = vsub.f32 %v3828, %v3829
        %v3831 = vand.u32 %v3830, 4294901760
        %3832 = vmatpush1.msra.mxu0 %v3831
        %3833 = vmatprep.subr.mxu0 0.0
        %v3834 = vand.u32 %v1712, 4294901760
        %v3835 = vsub.f32 %v1712, %v3834
        %v3836 = vand.u32 %v3835, 4294901760
        %v3837 = vsub.f32 %v3835, %v3836
        %v3838 = vand.u32 %v3837, 4294901760
        %3839 = vmatpush1.msra.mxu0 %v3838
        %3840 = vmatprep.subr.mxu0 0.0
        %v3841 = vand.u32 %v1711, 4294901760
        %v3842 = vsub.f32 %v1711, %v3841
        %v3843 = vand.u32 %v3842, 4294901760
        %v3844 = vsub.f32 %v3842, %v3843
        %v3845 = vand.u32 %v3844, 4294901760
        %3846 = vmatpush1.msra.mxu0 %v3845
        %3847 = vmatprep.subr.mxu0 0.0
        %v3848 = vand.u32 %v1710, 4294901760
        %v3849 = vsub.f32 %v1710, %v3848
        %v3850 = vand.u32 %v3849, 4294901760
        %v3851 = vsub.f32 %v3849, %v3850
        %v3852 = vand.u32 %v3851, 4294901760
        %3853 = vmatpush1.msra.mxu0 %v3852
        %3854 = vmatprep.subr.mxu0 0.0
        %v3855 = vand.u32 %v1709, 4294901760
        %v3856 = vsub.f32 %v1709, %v3855
        %v3857 = vand.u32 %v3856, 4294901760
        %v3858 = vsub.f32 %v3856, %v3857
        %v3859 = vand.u32 %v3858, 4294901760
        %3860 = vmatpush1.msra.mxu0 %v3859
        %3861 = vmatprep.subr.mxu0 0.0
        %v3862 = vand.u32 %v1708, 4294901760
        %v3863 = vsub.f32 %v1708, %v3862
        %v3864 = vand.u32 %v3863, 4294901760
        %v3865 = vsub.f32 %v3863, %v3864
        %v3866 = vand.u32 %v3865, 4294901760
        %3867 = vmatpush1.msra.mxu0 %v3866
        %3868 = vmatprep.subr.mxu0 0.0
        %3869 = vmatpush2.msra.mxu0 0.0
        %3870 = vmatprep.subr.mxu0 0.0
        %3871 = vmatpush2.msra.mxu0 0.0
        %3872 = vmatprep.subr.mxu0 0.0
        %3873 = vmatpush2.msra.mxu0 0.0
        %3874 = vmatprep.subr.mxu0 0.0
        %3875 = vmatpush2.msra.mxu0 0.0
        %3876 = vmatprep.subr.mxu0 0.0
        %3877 = vmatpush2.msra.mxu0 0.0
        %3878 = vmatprep.subr.mxu0 0.0
        %3879 = vmatpush2.msra.mxu0 0.0
        %3880 = vmatprep.subr.mxu0 0.0
        %3881 = vmatpush2.msra.mxu0 0.0
        %3882 = vmatprep.subr.mxu0 0.0
        %3883 = vmatpush2.msra.mxu0 0.0
        %3884 = vmatprep.subr.mxu0 0.0
        %3885 = vmatpush2.msra.mxu0 0.0
        %3886 = vmatprep.subr.mxu0 0.0
        %3887 = vmatpush2.msra.mxu0 0.0
        %3888 = vmatprep.subr.mxu0 0.0
        %3889 = vmatpush2.msra.mxu0 0.0
        %3890 = vmatprep.subr.mxu0 0.0
        %3891 = vmatpush2.msra.mxu0 0.0
        %3892 = vmatprep.subr.mxu0 0.0
        %3893 = vmatpush2.msra.mxu0 0.0
        %3894 = vmatprep.subr.mxu0 0.0
        %3895 = vmatpush2.msra.mxu0 0.0
        %3896 = vmatprep.subr.mxu0 0.0
        %3897 = vmatpush2.msra.mxu0 0.0
        %3898 = vmatprep.subr.mxu0 0.0
        %3899 = vmatpush2.msra.mxu0 0.0
        %3900 = vmatprep.mubr.f32.mxu0 0.0
        %v3901 = vand.u32 %v3023, 4294901760
        %3902 = vmatmul.mubr.f32.gmra.mxu0 %v3901
        %v3903 = vpop.f32.mrf.mxu0
        %v3904 = vadd.f32 %v3753, %v3903
        %v3905 = vpop.f32.mrf.mxu0
        %3906 = vdwg.mxu0
        %3907 = vmatprep.subr.mxu0 0.0
        %v3908 = vand.u32 %v1723, 4294901760
        %v3909 = vsub.f32 %v1723, %v3908
        %3910 = vmatpush1.msra.mxu0 %v3909
        %3911 = vmatprep.subr.mxu0 0.0
        %v3912 = vand.u32 %v1722, 4294901760
        %v3913 = vsub.f32 %v1722, %v3912
        %3914 = vmatpush1.msra.mxu0 %v3913
        %3915 = vmatprep.subr.mxu0 0.0
        %v3916 = vand.u32 %v1721, 4294901760
        %v3917 = vsub.f32 %v1721, %v3916
        %3918 = vmatpush1.msra.mxu0 %v3917
        %3919 = vmatprep.subr.mxu0 0.0
        %v3920 = vand.u32 %v1720, 4294901760
        %v3921 = vsub.f32 %v1720, %v3920
        %3922 = vmatpush1.msra.mxu0 %v3921
        %3923 = vmatprep.subr.mxu0 0.0
        %v3924 = vand.u32 %v1719, 4294901760
        %v3925 = vsub.f32 %v1719, %v3924
        %3926 = vmatpush1.msra.mxu0 %v3925
        %3927 = vmatprep.subr.mxu0 0.0
        %v3928 = vand.u32 %v1718, 4294901760
        %v3929 = vsub.f32 %v1718, %v3928
        %3930 = vmatpush1.msra.mxu0 %v3929
        %3931 = vmatprep.subr.mxu0 0.0
        %v3932 = vand.u32 %v1717, 4294901760
        %v3933 = vsub.f32 %v1717, %v3932
        %3934 = vmatpush1.msra.mxu0 %v3933
        %3935 = vmatprep.subr.mxu0 0.0
        %v3936 = vand.u32 %v1716, 4294901760
        %v3937 = vsub.f32 %v1716, %v3936
        %3938 = vmatpush1.msra.mxu0 %v3937
        %3939 = vmatprep.subr.mxu0 0.0
        %v3940 = vand.u32 %v1715, 4294901760
        %v3941 = vsub.f32 %v1715, %v3940
        %3942 = vmatpush1.msra.mxu0 %v3941
        %3943 = vmatprep.subr.mxu0 0.0
        %v3944 = vand.u32 %v1714, 4294901760
        %v3945 = vsub.f32 %v1714, %v3944
        %3946 = vmatpush1.msra.mxu0 %v3945
        %3947 = vmatprep.subr.mxu0 0.0
        %v3948 = vand.u32 %v1713, 4294901760
        %v3949 = vsub.f32 %v1713, %v3948
        %3950 = vmatpush1.msra.mxu0 %v3949
        %3951 = vmatprep.subr.mxu0 0.0
        %v3952 = vand.u32 %v1712, 4294901760
        %v3953 = vsub.f32 %v1712, %v3952
        %3954 = vmatpush1.msra.mxu0 %v3953
        %3955 = vmatprep.subr.mxu0 0.0
        %v3956 = vand.u32 %v1711, 4294901760
        %v3957 = vsub.f32 %v1711, %v3956
        %3958 = vmatpush1.msra.mxu0 %v3957
        %3959 = vmatprep.subr.mxu0 0.0
        %v3960 = vand.u32 %v1710, 4294901760
        %v3961 = vsub.f32 %v1710, %v3960
        %3962 = vmatpush1.msra.mxu0 %v3961
        %3963 = vmatprep.subr.mxu0 0.0
        %v3964 = vand.u32 %v1709, 4294901760
        %v3965 = vsub.f32 %v1709, %v3964
        %3966 = vmatpush1.msra.mxu0 %v3965
        %3967 = vmatprep.subr.mxu0 0.0
        %v3968 = vand.u32 %v1708, 4294901760
        %v3969 = vsub.f32 %v1708, %v3968
        %3970 = vmatpush1.msra.mxu0 %v3969
        %3971 = vmatprep.subr.mxu0 0.0
        %3972 = vmatpush2.msra.mxu0 0.0
        %3973 = vmatprep.subr.mxu0 0.0
        %3974 = vmatpush2.msra.mxu0 0.0
        %3975 = vmatprep.subr.mxu0 0.0
        %3976 = vmatpush2.msra.mxu0 0.0
        %3977 = vmatprep.subr.mxu0 0.0
        %3978 = vmatpush2.msra.mxu0 0.0
        %3979 = vmatprep.subr.mxu0 0.0
        %3980 = vmatpush2.msra.mxu0 0.0
        %3981 = vmatprep.subr.mxu0 0.0
        %3982 = vmatpush2.msra.mxu0 0.0
        %3983 = vmatprep.subr.mxu0 0.0
        %3984 = vmatpush2.msra.mxu0 0.0
        %3985 = vmatprep.subr.mxu0 0.0
        %3986 = vmatpush2.msra.mxu0 0.0
        %3987 = vmatprep.subr.mxu0 0.0
        %3988 = vmatpush2.msra.mxu0 0.0
        %3989 = vmatprep.subr.mxu0 0.0
        %3990 = vmatpush2.msra.mxu0 0.0
        %3991 = vmatprep.subr.mxu0 0.0
        %3992 = vmatpush2.msra.mxu0 0.0
        %3993 = vmatprep.subr.mxu0 0.0
        %3994 = vmatpush2.msra.mxu0 0.0
        %3995 = vmatprep.subr.mxu0 0.0
        %3996 = vmatpush2.msra.mxu0 0.0
        %3997 = vmatprep.subr.mxu0 0.0
        %3998 = vmatpush2.msra.mxu0 0.0
        %3999 = vmatprep.subr.mxu0 0.0
        %4000 = vmatpush2.msra.mxu0 0.0
        %4001 = vmatprep.subr.mxu0 0.0
        %4002 = vmatpush2.msra.mxu0 0.0
        %4003 = vmatprep.mubr.f32.mxu0 0.0
        %v4004 = vand.u32 %v3023, 4294901760
        %v4005 = vsub.f32 %v3023, %v4004
        %4006 = vmatmul.mubr.f32.gmra.mxu0 %v4005
        %v4007 = vpop.f32.mrf.mxu0
        %v4008 = vadd.f32 %v3904, %v4007
        %v4009 = vpop.f32.mrf.mxu0
        %4010 = vdwg.mxu0
        %4011 = vmatprep.subr.mxu0 0.0
        %v4012 = vand.u32 %v1723, 4294901760
        %4013 = vmatpush1.msra.mxu0 %v4012
        %4014 = vmatprep.subr.mxu0 0.0
        %v4015 = vand.u32 %v1722, 4294901760
        %4016 = vmatpush1.msra.mxu0 %v4015
        %4017 = vmatprep.subr.mxu0 0.0
        %v4018 = vand.u32 %v1721, 4294901760
        %4019 = vmatpush1.msra.mxu0 %v4018
        %4020 = vmatprep.subr.mxu0 0.0
        %v4021 = vand.u32 %v1720, 4294901760
        %4022 = vmatpush1.msra.mxu0 %v4021
        %4023 = vmatprep.subr.mxu0 0.0
        %v4024 = vand.u32 %v1719, 4294901760
        %4025 = vmatpush1.msra.mxu0 %v4024
        %4026 = vmatprep.subr.mxu0 0.0
        %v4027 = vand.u32 %v1718, 4294901760
        %4028 = vmatpush1.msra.mxu0 %v4027
        %4029 = vmatprep.subr.mxu0 0.0
        %v4030 = vand.u32 %v1717, 4294901760
        %4031 = vmatpush1.msra.mxu0 %v4030
        %4032 = vmatprep.subr.mxu0 0.0
        %v4033 = vand.u32 %v1716, 4294901760
        %4034 = vmatpush1.msra.mxu0 %v4033
        %4035 = vmatprep.subr.mxu0 0.0
        %v4036 = vand.u32 %v1715, 4294901760
        %4037 = vmatpush1.msra.mxu0 %v4036
        %4038 = vmatprep.subr.mxu0 0.0
        %v4039 = vand.u32 %v1714, 4294901760
        %4040 = vmatpush1.msra.mxu0 %v4039
        %4041 = vmatprep.subr.mxu0 0.0
        %v4042 = vand.u32 %v1713, 4294901760
        %4043 = vmatpush1.msra.mxu0 %v4042
        %4044 = vmatprep.subr.mxu0 0.0
        %v4045 = vand.u32 %v1712, 4294901760
        %4046 = vmatpush1.msra.mxu0 %v4045
        %4047 = vmatprep.subr.mxu0 0.0
        %v4048 = vand.u32 %v1711, 4294901760
        %4049 = vmatpush1.msra.mxu0 %v4048
        %4050 = vmatprep.subr.mxu0 0.0
        %v4051 = vand.u32 %v1710, 4294901760
        %4052 = vmatpush1.msra.mxu0 %v4051
        %4053 = vmatprep.subr.mxu0 0.0
        %v4054 = vand.u32 %v1709, 4294901760
        %4055 = vmatpush1.msra.mxu0 %v4054
        %4056 = vmatprep.subr.mxu0 0.0
        %v4057 = vand.u32 %v1708, 4294901760
        %4058 = vmatpush1.msra.mxu0 %v4057
        %4059 = vmatprep.subr.mxu0 0.0
        %4060 = vmatpush2.msra.mxu0 0.0
        %4061 = vmatprep.subr.mxu0 0.0
        %4062 = vmatpush2.msra.mxu0 0.0
        %4063 = vmatprep.subr.mxu0 0.0
        %4064 = vmatpush2.msra.mxu0 0.0
        %4065 = vmatprep.subr.mxu0 0.0
        %4066 = vmatpush2.msra.mxu0 0.0
        %4067 = vmatprep.subr.mxu0 0.0
        %4068 = vmatpush2.msra.mxu0 0.0
        %4069 = vmatprep.subr.mxu0 0.0
        %4070 = vmatpush2.msra.mxu0 0.0
        %4071 = vmatprep.subr.mxu0 0.0
        %4072 = vmatpush2.msra.mxu0 0.0
        %4073 = vmatprep.subr.mxu0 0.0
        %4074 = vmatpush2.msra.mxu0 0.0
        %4075 = vmatprep.subr.mxu0 0.0
        %4076 = vmatpush2.msra.mxu0 0.0
        %4077 = vmatprep.subr.mxu0 0.0
        %4078 = vmatpush2.msra.mxu0 0.0
        %4079 = vmatprep.subr.mxu0 0.0
        %4080 = vmatpush2.msra.mxu0 0.0
        %4081 = vmatprep.subr.mxu0 0.0
        %4082 = vmatpush2.msra.mxu0 0.0
        %4083 = vmatprep.subr.mxu0 0.0
        %4084 = vmatpush2.msra.mxu0 0.0
        %4085 = vmatprep.subr.mxu0 0.0
        %4086 = vmatpush2.msra.mxu0 0.0
        %4087 = vmatprep.subr.mxu0 0.0
        %4088 = vmatpush2.msra.mxu0 0.0
        %4089 = vmatprep.subr.mxu0 0.0
        %4090 = vmatpush2.msra.mxu0 0.0
        %4091 = vmatprep.mubr.f32.mxu0 0.0
        %v4092 = vand.u32 %v3023, 4294901760
        %v4093 = vsub.f32 %v3023, %v4092
        %v4094 = vand.u32 %v4093, 4294901760
        %4095 = vmatmul.mubr.f32.gmra.mxu0 %v4094
        %v4096 = vpop.f32.mrf.mxu0
        %v4097 = vadd.f32 %v4008, %v4096
        %v4098 = vpop.f32.mrf.mxu0
        %4099 = vdwg.mxu0
        %4100 = vmatprep.subr.mxu0 0.0
        %v4101 = vand.u32 %v1723, 4294901760
        %v4102 = vsub.f32 %v1723, %v4101
        %v4103 = vand.u32 %v4102, 4294901760
        %4104 = vmatpush1.msra.mxu0 %v4103
        %4105 = vmatprep.subr.mxu0 0.0
        %v4106 = vand.u32 %v1722, 4294901760
        %v4107 = vsub.f32 %v1722, %v4106
        %v4108 = vand.u32 %v4107, 4294901760
        %4109 = vmatpush1.msra.mxu0 %v4108
        %4110 = vmatprep.subr.mxu0 0.0
        %v4111 = vand.u32 %v1721, 4294901760
        %v4112 = vsub.f32 %v1721, %v4111
        %v4113 = vand.u32 %v4112, 4294901760
        %4114 = vmatpush1.msra.mxu0 %v4113
        %4115 = vmatprep.subr.mxu0 0.0
        %v4116 = vand.u32 %v1720, 4294901760
        %v4117 = vsub.f32 %v1720, %v4116
        %v4118 = vand.u32 %v4117, 4294901760
        %4119 = vmatpush1.msra.mxu0 %v4118
        %4120 = vmatprep.subr.mxu0 0.0
        %v4121 = vand.u32 %v1719, 4294901760
        %v4122 = vsub.f32 %v1719, %v4121
        %v4123 = vand.u32 %v4122, 4294901760
        %4124 = vmatpush1.msra.mxu0 %v4123
        %4125 = vmatprep.subr.mxu0 0.0
        %v4126 = vand.u32 %v1718, 4294901760
        %v4127 = vsub.f32 %v1718, %v4126
        %v4128 = vand.u32 %v4127, 4294901760
        %4129 = vmatpush1.msra.mxu0 %v4128
        %4130 = vmatprep.subr.mxu0 0.0
        %v4131 = vand.u32 %v1717, 4294901760
        %v4132 = vsub.f32 %v1717, %v4131
        %v4133 = vand.u32 %v4132, 4294901760
        %4134 = vmatpush1.msra.mxu0 %v4133
        %4135 = vmatprep.subr.mxu0 0.0
        %v4136 = vand.u32 %v1716, 4294901760
        %v4137 = vsub.f32 %v1716, %v4136
        %v4138 = vand.u32 %v4137, 4294901760
        %4139 = vmatpush1.msra.mxu0 %v4138
        %4140 = vmatprep.subr.mxu0 0.0
        %v4141 = vand.u32 %v1715, 4294901760
        %v4142 = vsub.f32 %v1715, %v4141
        %v4143 = vand.u32 %v4142, 4294901760
        %4144 = vmatpush1.msra.mxu0 %v4143
        %4145 = vmatprep.subr.mxu0 0.0
        %v4146 = vand.u32 %v1714, 4294901760
        %v4147 = vsub.f32 %v1714, %v4146
        %v4148 = vand.u32 %v4147, 4294901760
        %4149 = vmatpush1.msra.mxu0 %v4148
        %4150 = vmatprep.subr.mxu0 0.0
        %v4151 = vand.u32 %v1713, 4294901760
        %v4152 = vsub.f32 %v1713, %v4151
        %v4153 = vand.u32 %v4152, 4294901760
        %4154 = vmatpush1.msra.mxu0 %v4153
        %4155 = vmatprep.subr.mxu0 0.0
        %v4156 = vand.u32 %v1712, 4294901760
        %v4157 = vsub.f32 %v1712, %v4156
        %v4158 = vand.u32 %v4157, 4294901760
        %4159 = vmatpush1.msra.mxu0 %v4158
        %4160 = vmatprep.subr.mxu0 0.0
        %v4161 = vand.u32 %v1711, 4294901760
        %v4162 = vsub.f32 %v1711, %v4161
        %v4163 = vand.u32 %v4162, 4294901760
        %4164 = vmatpush1.msra.mxu0 %v4163
        %4165 = vmatprep.subr.mxu0 0.0
        %v4166 = vand.u32 %v1710, 4294901760
        %v4167 = vsub.f32 %v1710, %v4166
        %v4168 = vand.u32 %v4167, 4294901760
        %4169 = vmatpush1.msra.mxu0 %v4168
        %4170 = vmatprep.subr.mxu0 0.0
        %v4171 = vand.u32 %v1709, 4294901760
        %v4172 = vsub.f32 %v1709, %v4171
        %v4173 = vand.u32 %v4172, 4294901760
        %4174 = vmatpush1.msra.mxu0 %v4173
        %4175 = vmatprep.subr.mxu0 0.0
        %v4176 = vand.u32 %v1708, 4294901760
        %v4177 = vsub.f32 %v1708, %v4176
        %v4178 = vand.u32 %v4177, 4294901760
        %4179 = vmatpush1.msra.mxu0 %v4178
        %4180 = vmatprep.subr.mxu0 0.0
        %4181 = vmatpush2.msra.mxu0 0.0
        %4182 = vmatprep.subr.mxu0 0.0
        %4183 = vmatpush2.msra.mxu0 0.0
        %4184 = vmatprep.subr.mxu0 0.0
        %4185 = vmatpush2.msra.mxu0 0.0
        %4186 = vmatprep.subr.mxu0 0.0
        %4187 = vmatpush2.msra.mxu0 0.0
        %4188 = vmatprep.subr.mxu0 0.0
        %4189 = vmatpush2.msra.mxu0 0.0
        %4190 = vmatprep.subr.mxu0 0.0
        %4191 = vmatpush2.msra.mxu0 0.0
        %4192 = vmatprep.subr.mxu0 0.0
        %4193 = vmatpush2.msra.mxu0 0.0
        %4194 = vmatprep.subr.mxu0 0.0
        %4195 = vmatpush2.msra.mxu0 0.0
        %4196 = vmatprep.subr.mxu0 0.0
        %4197 = vmatpush2.msra.mxu0 0.0
        %4198 = vmatprep.subr.mxu0 0.0
        %4199 = vmatpush2.msra.mxu0 0.0
        %4200 = vmatprep.subr.mxu0 0.0
        %4201 = vmatpush2.msra.mxu0 0.0
        %4202 = vmatprep.subr.mxu0 0.0
        %4203 = vmatpush2.msra.mxu0 0.0
        %4204 = vmatprep.subr.mxu0 0.0
        %4205 = vmatpush2.msra.mxu0 0.0
        %4206 = vmatprep.subr.mxu0 0.0
        %4207 = vmatpush2.msra.mxu0 0.0
        %4208 = vmatprep.subr.mxu0 0.0
        %4209 = vmatpush2.msra.mxu0 0.0
        %4210 = vmatprep.subr.mxu0 0.0
        %4211 = vmatpush2.msra.mxu0 0.0
        %4212 = vmatprep.mubr.f32.mxu0 0.0
        %v4213 = vand.u32 %v3023, 4294901760
        %4214 = vmatmul.mubr.f32.gmra.mxu0 %v4213
        %v4215 = vpop.f32.mrf.mxu0
        %v4216 = vadd.f32 %v4097, %v4215
        %v4217 = vpop.f32.mrf.mxu0
        %4218 = vdwg.mxu0
        %4219 = vmatprep.subr.mxu0 0.0
        %v4220 = vand.u32 %v1723, 4294901760
        %4221 = vmatpush1.msra.mxu0 %v4220
        %4222 = vmatprep.subr.mxu0 0.0
        %v4223 = vand.u32 %v1722, 4294901760
        %4224 = vmatpush1.msra.mxu0 %v4223
        %4225 = vmatprep.subr.mxu0 0.0
        %v4226 = vand.u32 %v1721, 4294901760
        %4227 = vmatpush1.msra.mxu0 %v4226
        %4228 = vmatprep.subr.mxu0 0.0
        %v4229 = vand.u32 %v1720, 4294901760
        %4230 = vmatpush1.msra.mxu0 %v4229
        %4231 = vmatprep.subr.mxu0 0.0
        %v4232 = vand.u32 %v1719, 4294901760
        %4233 = vmatpush1.msra.mxu0 %v4232
        %4234 = vmatprep.subr.mxu0 0.0
        %v4235 = vand.u32 %v1718, 4294901760
        %4236 = vmatpush1.msra.mxu0 %v4235
        %4237 = vmatprep.subr.mxu0 0.0
        %v4238 = vand.u32 %v1717, 4294901760
        %4239 = vmatpush1.msra.mxu0 %v4238
        %4240 = vmatprep.subr.mxu0 0.0
        %v4241 = vand.u32 %v1716, 4294901760
        %4242 = vmatpush1.msra.mxu0 %v4241
        %4243 = vmatprep.subr.mxu0 0.0
        %v4244 = vand.u32 %v1715, 4294901760
        %4245 = vmatpush1.msra.mxu0 %v4244
        %4246 = vmatprep.subr.mxu0 0.0
        %v4247 = vand.u32 %v1714, 4294901760
        %4248 = vmatpush1.msra.mxu0 %v4247
        %4249 = vmatprep.subr.mxu0 0.0
        %v4250 = vand.u32 %v1713, 4294901760
        %4251 = vmatpush1.msra.mxu0 %v4250
        %4252 = vmatprep.subr.mxu0 0.0
        %v4253 = vand.u32 %v1712, 4294901760
        %4254 = vmatpush1.msra.mxu0 %v4253
        %4255 = vmatprep.subr.mxu0 0.0
        %v4256 = vand.u32 %v1711, 4294901760
        %4257 = vmatpush1.msra.mxu0 %v4256
        %4258 = vmatprep.subr.mxu0 0.0
        %v4259 = vand.u32 %v1710, 4294901760
        %4260 = vmatpush1.msra.mxu0 %v4259
        %4261 = vmatprep.subr.mxu0 0.0
        %v4262 = vand.u32 %v1709, 4294901760
        %4263 = vmatpush1.msra.mxu0 %v4262
        %4264 = vmatprep.subr.mxu0 0.0
        %v4265 = vand.u32 %v1708, 4294901760
        %4266 = vmatpush1.msra.mxu0 %v4265
        %4267 = vmatprep.subr.mxu0 0.0
        %4268 = vmatpush2.msra.mxu0 0.0
        %4269 = vmatprep.subr.mxu0 0.0
        %4270 = vmatpush2.msra.mxu0 0.0
        %4271 = vmatprep.subr.mxu0 0.0
        %4272 = vmatpush2.msra.mxu0 0.0
        %4273 = vmatprep.subr.mxu0 0.0
        %4274 = vmatpush2.msra.mxu0 0.0
        %4275 = vmatprep.subr.mxu0 0.0
        %4276 = vmatpush2.msra.mxu0 0.0
        %4277 = vmatprep.subr.mxu0 0.0
        %4278 = vmatpush2.msra.mxu0 0.0
        %4279 = vmatprep.subr.mxu0 0.0
        %4280 = vmatpush2.msra.mxu0 0.0
        %4281 = vmatprep.subr.mxu0 0.0
        %4282 = vmatpush2.msra.mxu0 0.0
        %4283 = vmatprep.subr.mxu0 0.0
        %4284 = vmatpush2.msra.mxu0 0.0
        %4285 = vmatprep.subr.mxu0 0.0
        %4286 = vmatpush2.msra.mxu0 0.0
        %4287 = vmatprep.subr.mxu0 0.0
        %4288 = vmatpush2.msra.mxu0 0.0
        %4289 = vmatprep.subr.mxu0 0.0
        %4290 = vmatpush2.msra.mxu0 0.0
        %4291 = vmatprep.subr.mxu0 0.0
        %4292 = vmatpush2.msra.mxu0 0.0
        %4293 = vmatprep.subr.mxu0 0.0
        %4294 = vmatpush2.msra.mxu0 0.0
        %4295 = vmatprep.subr.mxu0 0.0
        %4296 = vmatpush2.msra.mxu0 0.0
        %4297 = vmatprep.subr.mxu0 0.0
        %4298 = vmatpush2.msra.mxu0 0.0
        %4299 = vmatprep.mubr.f32.mxu0 0.0
        %v4300 = vand.u32 %v3023, 4294901760
        %4301 = vmatmul.mubr.f32.gmra.mxu0 %v4300
        %v4302 = vpop.f32.mrf.mxu0
        %v4303 = vadd.f32 %v4216, %v4302
        %v4304 = vpop.f32.mrf.mxu0
        %4305 = vdwg.mxu0
        %v4306 = vld [vmem:[%s3] sm:$0xff]
        %v4307 = vld [vmem:[%s3 + $0x8] sm:$0xff]
        %v4308 = vld [vmem:[%s3 + $0x10] sm:$0xff]
        %v4309 = vld [vmem:[%s3 + $0x18] sm:$0xff]
        %v4310 = vld [vmem:[%s3 + $0x20] sm:$0xff]
        %v4311 = vld [vmem:[%s3 + $0x28] sm:$0xff]
        %v4312 = vld [vmem:[%s3 + $0x30] sm:$0xff]
        %v4313 = vld [vmem:[%s3 + $0x38] sm:$0xff]
        %v4314 = vld [vmem:[%s3 + $0x40] sm:$0xff]
        %v4315 = vld [vmem:[%s3 + $0x48] sm:$0xff]
        %v4316 = vld [vmem:[%s3 + $0x50] sm:$0xff]
        %v4317 = vld [vmem:[%s3 + $0x58] sm:$0xff]
        %v4318 = vld [vmem:[%s3 + $0x60] sm:$0xff]
        %v4319 = vld [vmem:[%s3 + $0x68] sm:$0xff]
        %v4320 = vld [vmem:[%s3 + $0x70] sm:$0xff]
        %v4321 = vld [vmem:[%s3 + $0x78] sm:$0xff]
        %4322 = vmatprep.subr.mxu0 0.0
        %v4323 = vand.u32 %v4321, 4294901760
        %4324 = vmatpush1.msra.mxu0 %v4323
        %4325 = vmatprep.subr.mxu0 0.0
        %v4326 = vand.u32 %v4320, 4294901760
        %4327 = vmatpush1.msra.mxu0 %v4326
        %4328 = vmatprep.subr.mxu0 0.0
        %v4329 = vand.u32 %v4319, 4294901760
        %4330 = vmatpush1.msra.mxu0 %v4329
        %4331 = vmatprep.subr.mxu0 0.0
        %v4332 = vand.u32 %v4318, 4294901760
        %4333 = vmatpush1.msra.mxu0 %v4332
        %4334 = vmatprep.subr.mxu0 0.0
        %v4335 = vand.u32 %v4317, 4294901760
        %4336 = vmatpush1.msra.mxu0 %v4335
        %4337 = vmatprep.subr.mxu0 0.0
        %v4338 = vand.u32 %v4316, 4294901760
        %4339 = vmatpush1.msra.mxu0 %v4338
        %4340 = vmatprep.subr.mxu0 0.0
        %v4341 = vand.u32 %v4315, 4294901760
        %4342 = vmatpush1.msra.mxu0 %v4341
        %4343 = vmatprep.subr.mxu0 0.0
        %v4344 = vand.u32 %v4314, 4294901760
        %4345 = vmatpush1.msra.mxu0 %v4344
        %4346 = vmatprep.subr.mxu0 0.0
        %v4347 = vand.u32 %v4313, 4294901760
        %4348 = vmatpush1.msra.mxu0 %v4347
        %4349 = vmatprep.subr.mxu0 0.0
        %v4350 = vand.u32 %v4312, 4294901760
        %4351 = vmatpush1.msra.mxu0 %v4350
        %4352 = vmatprep.subr.mxu0 0.0
        %v4353 = vand.u32 %v4311, 4294901760
        %4354 = vmatpush1.msra.mxu0 %v4353
        %4355 = vmatprep.subr.mxu0 0.0
        %v4356 = vand.u32 %v4310, 4294901760
        %4357 = vmatpush1.msra.mxu0 %v4356
        %4358 = vmatprep.subr.mxu0 0.0
        %v4359 = vand.u32 %v4309, 4294901760
        %4360 = vmatpush1.msra.mxu0 %v4359
        %4361 = vmatprep.subr.mxu0 0.0
        %v4362 = vand.u32 %v4308, 4294901760
        %4363 = vmatpush1.msra.mxu0 %v4362
        %4364 = vmatprep.subr.mxu0 0.0
        %v4365 = vand.u32 %v4307, 4294901760
        %4366 = vmatpush1.msra.mxu0 %v4365
        %4367 = vmatprep.subr.mxu0 0.0
        %v4368 = vand.u32 %v4306, 4294901760
        %4369 = vmatpush1.msra.mxu0 %v4368
        %4370 = vmatprep.subr.mxu0 0.0
        %4371 = vmatpush2.msra.mxu0 0.0
        %4372 = vmatprep.subr.mxu0 0.0
        %4373 = vmatpush2.msra.mxu0 0.0
        %4374 = vmatprep.subr.mxu0 0.0
        %4375 = vmatpush2.msra.mxu0 0.0
        %4376 = vmatprep.subr.mxu0 0.0
        %4377 = vmatpush2.msra.mxu0 0.0
        %4378 = vmatprep.subr.mxu0 0.0
        %4379 = vmatpush2.msra.mxu0 0.0
        %4380 = vmatprep.subr.mxu0 0.0
        %4381 = vmatpush2.msra.mxu0 0.0
        %4382 = vmatprep.subr.mxu0 0.0
        %4383 = vmatpush2.msra.mxu0 0.0
        %4384 = vmatprep.subr.mxu0 0.0
        %4385 = vmatpush2.msra.mxu0 0.0
        %4386 = vmatprep.subr.mxu0 0.0
        %4387 = vmatpush2.msra.mxu0 0.0
        %4388 = vmatprep.subr.mxu0 0.0
        %4389 = vmatpush2.msra.mxu0 0.0
        %4390 = vmatprep.subr.mxu0 0.0
        %4391 = vmatpush2.msra.mxu0 0.0
        %4392 = vmatprep.subr.mxu0 0.0
        %4393 = vmatpush2.msra.mxu0 0.0
        %4394 = vmatprep.subr.mxu0 0.0
        %4395 = vmatpush2.msra.mxu0 0.0
        %4396 = vmatprep.subr.mxu0 0.0
        %4397 = vmatpush2.msra.mxu0 0.0
        %4398 = vmatprep.subr.mxu0 0.0
        %4399 = vmatpush2.msra.mxu0 0.0
        %4400 = vmatprep.subr.mxu0 0.0
        %4401 = vmatpush2.msra.mxu0 0.0
        %4402 = vmatprep.mubr.f32.mxu0 0.0
        %v4403 = vand.u32 %v3662, 4294901760
        %v4404 = vsub.f32 %v3662, %v4403
        %v4405 = vand.u32 %v4404, 4294901760
        %v4406 = vsub.f32 %v4404, %v4405
        %v4407 = vand.u32 %v4406, 4294901760
        %4408 = vmatmul.mubr.f32.gmra.mxu0 %v4407
        %v4409 = vpop.f32.mrf.mxu0
        %v4410 = vadd.f32 %v1683, %v4409
        %v4411 = vpop.f32.mrf.mxu0
        %4412 = vmatprep.mubr.f32.mxu0 0.0
        %v4413 = vand.u32 %v4303, 4294901760
        %v4414 = vsub.f32 %v4303, %v4413
        %v4415 = vand.u32 %v4414, 4294901760
        %v4416 = vsub.f32 %v4414, %v4415
        %v4417 = vand.u32 %v4416, 4294901760
        %4418 = vmatmul.mubr.f32.gmra.mxu0 %v4417
        %v4419 = vpop.f32.mrf.mxu0
        %v4420 = vadd.f32 %v1689, %v4419
        %v4421 = vpop.f32.mrf.mxu0
        %4422 = vdwg.mxu0
        %4423 = vmatprep.subr.mxu0 0.0
        %v4424 = vand.u32 %v4321, 4294901760
        %v4425 = vsub.f32 %v4321, %v4424
        %v4426 = vand.u32 %v4425, 4294901760
        %v4427 = vsub.f32 %v4425, %v4426
        %v4428 = vand.u32 %v4427, 4294901760
        %4429 = vmatpush1.msra.mxu0 %v4428
        %4430 = vmatprep.subr.mxu0 0.0
        %v4431 = vand.u32 %v4320, 4294901760
        %v4432 = vsub.f32 %v4320, %v4431
        %v4433 = vand.u32 %v4432, 4294901760
        %v4434 = vsub.f32 %v4432, %v4433
        %v4435 = vand.u32 %v4434, 4294901760
        %4436 = vmatpush1.msra.mxu0 %v4435
        %4437 = vmatprep.subr.mxu0 0.0
        %v4438 = vand.u32 %v4319, 4294901760
        %v4439 = vsub.f32 %v4319, %v4438
        %v4440 = vand.u32 %v4439, 4294901760
        %v4441 = vsub.f32 %v4439, %v4440
        %v4442 = vand.u32 %v4441, 4294901760
        %4443 = vmatpush1.msra.mxu0 %v4442
        %4444 = vmatprep.subr.mxu0 0.0
        %v4445 = vand.u32 %v4318, 4294901760
        %v4446 = vsub.f32 %v4318, %v4445
        %v4447 = vand.u32 %v4446, 4294901760
        %v4448 = vsub.f32 %v4446, %v4447
        %v4449 = vand.u32 %v4448, 4294901760
        %4450 = vmatpush1.msra.mxu0 %v4449
        %4451 = vmatprep.subr.mxu0 0.0
        %v4452 = vand.u32 %v4317, 4294901760
        %v4453 = vsub.f32 %v4317, %v4452
        %v4454 = vand.u32 %v4453, 4294901760
        %v4455 = vsub.f32 %v4453, %v4454
        %v4456 = vand.u32 %v4455, 4294901760
        %4457 = vmatpush1.msra.mxu0 %v4456
        %4458 = vmatprep.subr.mxu0 0.0
        %v4459 = vand.u32 %v4316, 4294901760
        %v4460 = vsub.f32 %v4316, %v4459
        %v4461 = vand.u32 %v4460, 4294901760
        %v4462 = vsub.f32 %v4460, %v4461
        %v4463 = vand.u32 %v4462, 4294901760
        %4464 = vmatpush1.msra.mxu0 %v4463
        %4465 = vmatprep.subr.mxu0 0.0
        %v4466 = vand.u32 %v4315, 4294901760
        %v4467 = vsub.f32 %v4315, %v4466
        %v4468 = vand.u32 %v4467, 4294901760
        %v4469 = vsub.f32 %v4467, %v4468
        %v4470 = vand.u32 %v4469, 4294901760
        %4471 = vmatpush1.msra.mxu0 %v4470
        %4472 = vmatprep.subr.mxu0 0.0
        %v4473 = vand.u32 %v4314, 4294901760
        %v4474 = vsub.f32 %v4314, %v4473
        %v4475 = vand.u32 %v4474, 4294901760
        %v4476 = vsub.f32 %v4474, %v4475
        %v4477 = vand.u32 %v4476, 4294901760
        %4478 = vmatpush1.msra.mxu0 %v4477
        %4479 = vmatprep.subr.mxu0 0.0
        %v4480 = vand.u32 %v4313, 4294901760
        %v4481 = vsub.f32 %v4313, %v4480
        %v4482 = vand.u32 %v4481, 4294901760
        %v4483 = vsub.f32 %v4481, %v4482
        %v4484 = vand.u32 %v4483, 4294901760
        %4485 = vmatpush1.msra.mxu0 %v4484
        %4486 = vmatprep.subr.mxu0 0.0
        %v4487 = vand.u32 %v4312, 4294901760
        %v4488 = vsub.f32 %v4312, %v4487
        %v4489 = vand.u32 %v4488, 4294901760
        %v4490 = vsub.f32 %v4488, %v4489
        %v4491 = vand.u32 %v4490, 4294901760
        %4492 = vmatpush1.msra.mxu0 %v4491
        %4493 = vmatprep.subr.mxu0 0.0
        %v4494 = vand.u32 %v4311, 4294901760
        %v4495 = vsub.f32 %v4311, %v4494
        %v4496 = vand.u32 %v4495, 4294901760
        %v4497 = vsub.f32 %v4495, %v4496
        %v4498 = vand.u32 %v4497, 4294901760
        %4499 = vmatpush1.msra.mxu0 %v4498
        %4500 = vmatprep.subr.mxu0 0.0
        %v4501 = vand.u32 %v4310, 4294901760
        %v4502 = vsub.f32 %v4310, %v4501
        %v4503 = vand.u32 %v4502, 4294901760
        %v4504 = vsub.f32 %v4502, %v4503
        %v4505 = vand.u32 %v4504, 4294901760
        %4506 = vmatpush1.msra.mxu0 %v4505
        %4507 = vmatprep.subr.mxu0 0.0
        %v4508 = vand.u32 %v4309, 4294901760
        %v4509 = vsub.f32 %v4309, %v4508
        %v4510 = vand.u32 %v4509, 4294901760
        %v4511 = vsub.f32 %v4509, %v4510
        %v4512 = vand.u32 %v4511, 4294901760
        %4513 = vmatpush1.msra.mxu0 %v4512
        %4514 = vmatprep.subr.mxu0 0.0
        %v4515 = vand.u32 %v4308, 4294901760
        %v4516 = vsub.f32 %v4308, %v4515
        %v4517 = vand.u32 %v4516, 4294901760
        %v4518 = vsub.f32 %v4516, %v4517
        %v4519 = vand.u32 %v4518, 4294901760
        %4520 = vmatpush1.msra.mxu0 %v4519
        %4521 = vmatprep.subr.mxu0 0.0
        %v4522 = vand.u32 %v4307, 4294901760
        %v4523 = vsub.f32 %v4307, %v4522
        %v4524 = vand.u32 %v4523, 4294901760
        %v4525 = vsub.f32 %v4523, %v4524
        %v4526 = vand.u32 %v4525, 4294901760
        %4527 = vmatpush1.msra.mxu0 %v4526
        %4528 = vmatprep.subr.mxu0 0.0
        %v4529 = vand.u32 %v4306, 4294901760
        %v4530 = vsub.f32 %v4306, %v4529
        %v4531 = vand.u32 %v4530, 4294901760
        %v4532 = vsub.f32 %v4530, %v4531
        %v4533 = vand.u32 %v4532, 4294901760
        %4534 = vmatpush1.msra.mxu0 %v4533
        %4535 = vmatprep.subr.mxu0 0.0
        %4536 = vmatpush2.msra.mxu0 0.0
        %4537 = vmatprep.subr.mxu0 0.0
        %4538 = vmatpush2.msra.mxu0 0.0
        %4539 = vmatprep.subr.mxu0 0.0
        %4540 = vmatpush2.msra.mxu0 0.0
        %4541 = vmatprep.subr.mxu0 0.0
        %4542 = vmatpush2.msra.mxu0 0.0
        %4543 = vmatprep.subr.mxu0 0.0
        %4544 = vmatpush2.msra.mxu0 0.0
        %4545 = vmatprep.subr.mxu0 0.0
        %4546 = vmatpush2.msra.mxu0 0.0
        %4547 = vmatprep.subr.mxu0 0.0
        %4548 = vmatpush2.msra.mxu0 0.0
        %4549 = vmatprep.subr.mxu0 0.0
        %4550 = vmatpush2.msra.mxu0 0.0
        %4551 = vmatprep.subr.mxu0 0.0
        %4552 = vmatpush2.msra.mxu0 0.0
        %4553 = vmatprep.subr.mxu0 0.0
        %4554 = vmatpush2.msra.mxu0 0.0
        %4555 = vmatprep.subr.mxu0 0.0
        %4556 = vmatpush2.msra.mxu0 0.0
        %4557 = vmatprep.subr.mxu0 0.0
        %4558 = vmatpush2.msra.mxu0 0.0
        %4559 = vmatprep.subr.mxu0 0.0
        %4560 = vmatpush2.msra.mxu0 0.0
        %4561 = vmatprep.subr.mxu0 0.0
        %4562 = vmatpush2.msra.mxu0 0.0
        %4563 = vmatprep.subr.mxu0 0.0
        %4564 = vmatpush2.msra.mxu0 0.0
        %4565 = vmatprep.subr.mxu0 0.0
        %4566 = vmatpush2.msra.mxu0 0.0
        %4567 = vmatprep.mubr.f32.mxu0 0.0
        %v4568 = vand.u32 %v3662, 4294901760
        %4569 = vmatmul.mubr.f32.gmra.mxu0 %v4568
        %v4570 = vpop.f32.mrf.mxu0
        %v4571 = vadd.f32 %v4410, %v4570
        %v4572 = vpop.f32.mrf.mxu0
        %4573 = vmatprep.mubr.f32.mxu0 0.0
        %v4574 = vand.u32 %v4303, 4294901760
        %4575 = vmatmul.mubr.f32.gmra.mxu0 %v4574
        %v4576 = vpop.f32.mrf.mxu0
        %v4577 = vadd.f32 %v4420, %v4576
        %v4578 = vpop.f32.mrf.mxu0
        %4579 = vdwg.mxu0
        %4580 = vmatprep.subr.mxu0 0.0
        %v4581 = vand.u32 %v4321, 4294901760
        %v4582 = vsub.f32 %v4321, %v4581
        %4583 = vmatpush1.msra.mxu0 %v4582
        %4584 = vmatprep.subr.mxu0 0.0
        %v4585 = vand.u32 %v4320, 4294901760
        %v4586 = vsub.f32 %v4320, %v4585
        %4587 = vmatpush1.msra.mxu0 %v4586
        %4588 = vmatprep.subr.mxu0 0.0
        %v4589 = vand.u32 %v4319, 4294901760
        %v4590 = vsub.f32 %v4319, %v4589
        %4591 = vmatpush1.msra.mxu0 %v4590
        %4592 = vmatprep.subr.mxu0 0.0
        %v4593 = vand.u32 %v4318, 4294901760
        %v4594 = vsub.f32 %v4318, %v4593
        %4595 = vmatpush1.msra.mxu0 %v4594
        %4596 = vmatprep.subr.mxu0 0.0
        %v4597 = vand.u32 %v4317, 4294901760
        %v4598 = vsub.f32 %v4317, %v4597
        %4599 = vmatpush1.msra.mxu0 %v4598
        %4600 = vmatprep.subr.mxu0 0.0
        %v4601 = vand.u32 %v4316, 4294901760
        %v4602 = vsub.f32 %v4316, %v4601
        %4603 = vmatpush1.msra.mxu0 %v4602
        %4604 = vmatprep.subr.mxu0 0.0
        %v4605 = vand.u32 %v4315, 4294901760
        %v4606 = vsub.f32 %v4315, %v4605
        %4607 = vmatpush1.msra.mxu0 %v4606
        %4608 = vmatprep.subr.mxu0 0.0
        %v4609 = vand.u32 %v4314, 4294901760
        %v4610 = vsub.f32 %v4314, %v4609
        %4611 = vmatpush1.msra.mxu0 %v4610
        %4612 = vmatprep.subr.mxu0 0.0
        %v4613 = vand.u32 %v4313, 4294901760
        %v4614 = vsub.f32 %v4313, %v4613
        %4615 = vmatpush1.msra.mxu0 %v4614
        %4616 = vmatprep.subr.mxu0 0.0
        %v4617 = vand.u32 %v4312, 4294901760
        %v4618 = vsub.f32 %v4312, %v4617
        %4619 = vmatpush1.msra.mxu0 %v4618
        %4620 = vmatprep.subr.mxu0 0.0
        %v4621 = vand.u32 %v4311, 4294901760
        %v4622 = vsub.f32 %v4311, %v4621
        %4623 = vmatpush1.msra.mxu0 %v4622
        %4624 = vmatprep.subr.mxu0 0.0
        %v4625 = vand.u32 %v4310, 4294901760
        %v4626 = vsub.f32 %v4310, %v4625
        %4627 = vmatpush1.msra.mxu0 %v4626
        %4628 = vmatprep.subr.mxu0 0.0
        %v4629 = vand.u32 %v4309, 4294901760
        %v4630 = vsub.f32 %v4309, %v4629
        %4631 = vmatpush1.msra.mxu0 %v4630
        %4632 = vmatprep.subr.mxu0 0.0
        %v4633 = vand.u32 %v4308, 4294901760
        %v4634 = vsub.f32 %v4308, %v4633
        %4635 = vmatpush1.msra.mxu0 %v4634
        %4636 = vmatprep.subr.mxu0 0.0
        %v4637 = vand.u32 %v4307, 4294901760
        %v4638 = vsub.f32 %v4307, %v4637
        %4639 = vmatpush1.msra.mxu0 %v4638
        %4640 = vmatprep.subr.mxu0 0.0
        %v4641 = vand.u32 %v4306, 4294901760
        %v4642 = vsub.f32 %v4306, %v4641
        %4643 = vmatpush1.msra.mxu0 %v4642
        %4644 = vmatprep.subr.mxu0 0.0
        %4645 = vmatpush2.msra.mxu0 0.0
        %4646 = vmatprep.subr.mxu0 0.0
        %4647 = vmatpush2.msra.mxu0 0.0
        %4648 = vmatprep.subr.mxu0 0.0
        %4649 = vmatpush2.msra.mxu0 0.0
        %4650 = vmatprep.subr.mxu0 0.0
        %4651 = vmatpush2.msra.mxu0 0.0
        %4652 = vmatprep.subr.mxu0 0.0
        %4653 = vmatpush2.msra.mxu0 0.0
        %4654 = vmatprep.subr.mxu0 0.0
        %4655 = vmatpush2.msra.mxu0 0.0
        %4656 = vmatprep.subr.mxu0 0.0
        %4657 = vmatpush2.msra.mxu0 0.0
        %4658 = vmatprep.subr.mxu0 0.0
        %4659 = vmatpush2.msra.mxu0 0.0
        %4660 = vmatprep.subr.mxu0 0.0
        %4661 = vmatpush2.msra.mxu0 0.0
        %4662 = vmatprep.subr.mxu0 0.0
        %4663 = vmatpush2.msra.mxu0 0.0
        %4664 = vmatprep.subr.mxu0 0.0
        %4665 = vmatpush2.msra.mxu0 0.0
        %4666 = vmatprep.subr.mxu0 0.0
        %4667 = vmatpush2.msra.mxu0 0.0
        %4668 = vmatprep.subr.mxu0 0.0
        %4669 = vmatpush2.msra.mxu0 0.0
        %4670 = vmatprep.subr.mxu0 0.0
        %4671 = vmatpush2.msra.mxu0 0.0
        %4672 = vmatprep.subr.mxu0 0.0
        %4673 = vmatpush2.msra.mxu0 0.0
        %4674 = vmatprep.subr.mxu0 0.0
        %4675 = vmatpush2.msra.mxu0 0.0
        %4676 = vmatprep.mubr.f32.mxu0 0.0
        %v4677 = vand.u32 %v3662, 4294901760
        %v4678 = vsub.f32 %v3662, %v4677
        %4679 = vmatmul.mubr.f32.gmra.mxu0 %v4678
        %v4680 = vpop.f32.mrf.mxu0
        %v4681 = vadd.f32 %v4571, %v4680
        %v4682 = vpop.f32.mrf.mxu0
        %4683 = vmatprep.mubr.f32.mxu0 0.0
        %v4684 = vand.u32 %v4303, 4294901760
        %v4685 = vsub.f32 %v4303, %v4684
        %4686 = vmatmul.mubr.f32.gmra.mxu0 %v4685
        %v4687 = vpop.f32.mrf.mxu0
        %v4688 = vadd.f32 %v4577, %v4687
        %v4689 = vpop.f32.mrf.mxu0
        %4690 = vdwg.mxu0
        %4691 = vmatprep.subr.mxu0 0.0
        %v4692 = vand.u32 %v4321, 4294901760
        %4693 = vmatpush1.msra.mxu0 %v4692
        %4694 = vmatprep.subr.mxu0 0.0
        %v4695 = vand.u32 %v4320, 4294901760
        %4696 = vmatpush1.msra.mxu0 %v4695
        %4697 = vmatprep.subr.mxu0 0.0
        %v4698 = vand.u32 %v4319, 4294901760
        %4699 = vmatpush1.msra.mxu0 %v4698
        %4700 = vmatprep.subr.mxu0 0.0
        %v4701 = vand.u32 %v4318, 4294901760
        %4702 = vmatpush1.msra.mxu0 %v4701
        %4703 = vmatprep.subr.mxu0 0.0
        %v4704 = vand.u32 %v4317, 4294901760
        %4705 = vmatpush1.msra.mxu0 %v4704
        %4706 = vmatprep.subr.mxu0 0.0
        %v4707 = vand.u32 %v4316, 4294901760
        %4708 = vmatpush1.msra.mxu0 %v4707
        %4709 = vmatprep.subr.mxu0 0.0
        %v4710 = vand.u32 %v4315, 4294901760
        %4711 = vmatpush1.msra.mxu0 %v4710
        %4712 = vmatprep.subr.mxu0 0.0
        %v4713 = vand.u32 %v4314, 4294901760
        %4714 = vmatpush1.msra.mxu0 %v4713
        %4715 = vmatprep.subr.mxu0 0.0
        %v4716 = vand.u32 %v4313, 4294901760
        %4717 = vmatpush1.msra.mxu0 %v4716
        %4718 = vmatprep.subr.mxu0 0.0
        %v4719 = vand.u32 %v4312, 4294901760
        %4720 = vmatpush1.msra.mxu0 %v4719
        %4721 = vmatprep.subr.mxu0 0.0
        %v4722 = vand.u32 %v4311, 4294901760
        %4723 = vmatpush1.msra.mxu0 %v4722
        %4724 = vmatprep.subr.mxu0 0.0
        %v4725 = vand.u32 %v4310, 4294901760
        %4726 = vmatpush1.msra.mxu0 %v4725
        %4727 = vmatprep.subr.mxu0 0.0
        %v4728 = vand.u32 %v4309, 4294901760
        %4729 = vmatpush1.msra.mxu0 %v4728
        %4730 = vmatprep.subr.mxu0 0.0
        %v4731 = vand.u32 %v4308, 4294901760
        %4732 = vmatpush1.msra.mxu0 %v4731
        %4733 = vmatprep.subr.mxu0 0.0
        %v4734 = vand.u32 %v4307, 4294901760
        %4735 = vmatpush1.msra.mxu0 %v4734
        %4736 = vmatprep.subr.mxu0 0.0
        %v4737 = vand.u32 %v4306, 4294901760
        %4738 = vmatpush1.msra.mxu0 %v4737
        %4739 = vmatprep.subr.mxu0 0.0
        %4740 = vmatpush2.msra.mxu0 0.0
        %4741 = vmatprep.subr.mxu0 0.0
        %4742 = vmatpush2.msra.mxu0 0.0
        %4743 = vmatprep.subr.mxu0 0.0
        %4744 = vmatpush2.msra.mxu0 0.0
        %4745 = vmatprep.subr.mxu0 0.0
        %4746 = vmatpush2.msra.mxu0 0.0
        %4747 = vmatprep.subr.mxu0 0.0
        %4748 = vmatpush2.msra.mxu0 0.0
        %4749 = vmatprep.subr.mxu0 0.0
        %4750 = vmatpush2.msra.mxu0 0.0
        %4751 = vmatprep.subr.mxu0 0.0
        %4752 = vmatpush2.msra.mxu0 0.0
        %4753 = vmatprep.subr.mxu0 0.0
        %4754 = vmatpush2.msra.mxu0 0.0
        %4755 = vmatprep.subr.mxu0 0.0
        %4756 = vmatpush2.msra.mxu0 0.0
        %4757 = vmatprep.subr.mxu0 0.0
        %4758 = vmatpush2.msra.mxu0 0.0
        %4759 = vmatprep.subr.mxu0 0.0
        %4760 = vmatpush2.msra.mxu0 0.0
        %4761 = vmatprep.subr.mxu0 0.0
        %4762 = vmatpush2.msra.mxu0 0.0
        %4763 = vmatprep.subr.mxu0 0.0
        %4764 = vmatpush2.msra.mxu0 0.0
        %4765 = vmatprep.subr.mxu0 0.0
        %4766 = vmatpush2.msra.mxu0 0.0
        %4767 = vmatprep.subr.mxu0 0.0
        %4768 = vmatpush2.msra.mxu0 0.0
        %4769 = vmatprep.subr.mxu0 0.0
        %4770 = vmatpush2.msra.mxu0 0.0
        %4771 = vmatprep.mubr.f32.mxu0 0.0
        %v4772 = vand.u32 %v3662, 4294901760
        %v4773 = vsub.f32 %v3662, %v4772
        %v4774 = vand.u32 %v4773, 4294901760
        %4775 = vmatmul.mubr.f32.gmra.mxu0 %v4774
        %v4776 = vpop.f32.mrf.mxu0
        %v4777 = vadd.f32 %v4681, %v4776
        %v4778 = vpop.f32.mrf.mxu0
        %4779 = vmatprep.mubr.f32.mxu0 0.0
        %v4780 = vand.u32 %v4303, 4294901760
        %v4781 = vsub.f32 %v4303, %v4780
        %v4782 = vand.u32 %v4781, 4294901760
        %4783 = vmatmul.mubr.f32.gmra.mxu0 %v4782
        %v4784 = vpop.f32.mrf.mxu0
        %v4785 = vadd.f32 %v4688, %v4784
        %v4786 = vpop.f32.mrf.mxu0
        %4787 = vdwg.mxu0
        %4788 = vmatprep.subr.mxu0 0.0
        %v4789 = vand.u32 %v4321, 4294901760
        %v4790 = vsub.f32 %v4321, %v4789
        %v4791 = vand.u32 %v4790, 4294901760
        %4792 = vmatpush1.msra.mxu0 %v4791
        %4793 = vmatprep.subr.mxu0 0.0
        %v4794 = vand.u32 %v4320, 4294901760
        %v4795 = vsub.f32 %v4320, %v4794
        %v4796 = vand.u32 %v4795, 4294901760
        %4797 = vmatpush1.msra.mxu0 %v4796
        %4798 = vmatprep.subr.mxu0 0.0
        %v4799 = vand.u32 %v4319, 4294901760
        %v4800 = vsub.f32 %v4319, %v4799
        %v4801 = vand.u32 %v4800, 4294901760
        %4802 = vmatpush1.msra.mxu0 %v4801
        %4803 = vmatprep.subr.mxu0 0.0
        %v4804 = vand.u32 %v4318, 4294901760
        %v4805 = vsub.f32 %v4318, %v4804
        %v4806 = vand.u32 %v4805, 4294901760
        %4807 = vmatpush1.msra.mxu0 %v4806
        %4808 = vmatprep.subr.mxu0 0.0
        %v4809 = vand.u32 %v4317, 4294901760
        %v4810 = vsub.f32 %v4317, %v4809
        %v4811 = vand.u32 %v4810, 4294901760
        %4812 = vmatpush1.msra.mxu0 %v4811
        %4813 = vmatprep.subr.mxu0 0.0
        %v4814 = vand.u32 %v4316, 4294901760
        %v4815 = vsub.f32 %v4316, %v4814
        %v4816 = vand.u32 %v4815, 4294901760
        %4817 = vmatpush1.msra.mxu0 %v4816
        %4818 = vmatprep.subr.mxu0 0.0
        %v4819 = vand.u32 %v4315, 4294901760
        %v4820 = vsub.f32 %v4315, %v4819
        %v4821 = vand.u32 %v4820, 4294901760
        %4822 = vmatpush1.msra.mxu0 %v4821
        %4823 = vmatprep.subr.mxu0 0.0
        %v4824 = vand.u32 %v4314, 4294901760
        %v4825 = vsub.f32 %v4314, %v4824
        %v4826 = vand.u32 %v4825, 4294901760
        %4827 = vmatpush1.msra.mxu0 %v4826
        %4828 = vmatprep.subr.mxu0 0.0
        %v4829 = vand.u32 %v4313, 4294901760
        %v4830 = vsub.f32 %v4313, %v4829
        %v4831 = vand.u32 %v4830, 4294901760
        %4832 = vmatpush1.msra.mxu0 %v4831
        %4833 = vmatprep.subr.mxu0 0.0
        %v4834 = vand.u32 %v4312, 4294901760
        %v4835 = vsub.f32 %v4312, %v4834
        %v4836 = vand.u32 %v4835, 4294901760
        %4837 = vmatpush1.msra.mxu0 %v4836
        %4838 = vmatprep.subr.mxu0 0.0
        %v4839 = vand.u32 %v4311, 4294901760
        %v4840 = vsub.f32 %v4311, %v4839
        %v4841 = vand.u32 %v4840, 4294901760
        %4842 = vmatpush1.msra.mxu0 %v4841
        %4843 = vmatprep.subr.mxu0 0.0
        %v4844 = vand.u32 %v4310, 4294901760
        %v4845 = vsub.f32 %v4310, %v4844
        %v4846 = vand.u32 %v4845, 4294901760
        %4847 = vmatpush1.msra.mxu0 %v4846
        %4848 = vmatprep.subr.mxu0 0.0
        %v4849 = vand.u32 %v4309, 4294901760
        %v4850 = vsub.f32 %v4309, %v4849
        %v4851 = vand.u32 %v4850, 4294901760
        %4852 = vmatpush1.msra.mxu0 %v4851
        %4853 = vmatprep.subr.mxu0 0.0
        %v4854 = vand.u32 %v4308, 4294901760
        %v4855 = vsub.f32 %v4308, %v4854
        %v4856 = vand.u32 %v4855, 4294901760
        %4857 = vmatpush1.msra.mxu0 %v4856
        %4858 = vmatprep.subr.mxu0 0.0
        %v4859 = vand.u32 %v4307, 4294901760
        %v4860 = vsub.f32 %v4307, %v4859
        %v4861 = vand.u32 %v4860, 4294901760
        %4862 = vmatpush1.msra.mxu0 %v4861
        %4863 = vmatprep.subr.mxu0 0.0
        %v4864 = vand.u32 %v4306, 4294901760
        %v4865 = vsub.f32 %v4306, %v4864
        %v4866 = vand.u32 %v4865, 4294901760
        %4867 = vmatpush1.msra.mxu0 %v4866
        %4868 = vmatprep.subr.mxu0 0.0
        %4869 = vmatpush2.msra.mxu0 0.0
        %4870 = vmatprep.subr.mxu0 0.0
        %4871 = vmatpush2.msra.mxu0 0.0
        %4872 = vmatprep.subr.mxu0 0.0
        %4873 = vmatpush2.msra.mxu0 0.0
        %4874 = vmatprep.subr.mxu0 0.0
        %4875 = vmatpush2.msra.mxu0 0.0
        %4876 = vmatprep.subr.mxu0 0.0
        %4877 = vmatpush2.msra.mxu0 0.0
        %4878 = vmatprep.subr.mxu0 0.0
        %4879 = vmatpush2.msra.mxu0 0.0
        %4880 = vmatprep.subr.mxu0 0.0
        %4881 = vmatpush2.msra.mxu0 0.0
        %4882 = vmatprep.subr.mxu0 0.0
        %4883 = vmatpush2.msra.mxu0 0.0
        %4884 = vmatprep.subr.mxu0 0.0
        %4885 = vmatpush2.msra.mxu0 0.0
        %4886 = vmatprep.subr.mxu0 0.0
        %4887 = vmatpush2.msra.mxu0 0.0
        %4888 = vmatprep.subr.mxu0 0.0
        %4889 = vmatpush2.msra.mxu0 0.0
        %4890 = vmatprep.subr.mxu0 0.0
        %4891 = vmatpush2.msra.mxu0 0.0
        %4892 = vmatprep.subr.mxu0 0.0
        %4893 = vmatpush2.msra.mxu0 0.0
        %4894 = vmatprep.subr.mxu0 0.0
        %4895 = vmatpush2.msra.mxu0 0.0
        %4896 = vmatprep.subr.mxu0 0.0
        %4897 = vmatpush2.msra.mxu0 0.0
        %4898 = vmatprep.subr.mxu0 0.0
        %4899 = vmatpush2.msra.mxu0 0.0
        %4900 = vmatprep.mubr.f32.mxu0 0.0
        %v4901 = vand.u32 %v3662, 4294901760
        %4902 = vmatmul.mubr.f32.gmra.mxu0 %v4901
        %v4903 = vpop.f32.mrf.mxu0
        %v4904 = vadd.f32 %v4777, %v4903
        %v4905 = vpop.f32.mrf.mxu0
        %4906 = vmatprep.mubr.f32.mxu0 0.0
        %v4907 = vand.u32 %v4303, 4294901760
        %4908 = vmatmul.mubr.f32.gmra.mxu0 %v4907
        %v4909 = vpop.f32.mrf.mxu0
        %v4910 = vadd.f32 %v4785, %v4909
        %v4911 = vpop.f32.mrf.mxu0
        %4912 = vdwg.mxu0
        %4913 = vmatprep.subr.mxu0 0.0
        %v4914 = vand.u32 %v4321, 4294901760
        %4915 = vmatpush1.msra.mxu0 %v4914
        %4916 = vmatprep.subr.mxu0 0.0
        %v4917 = vand.u32 %v4320, 4294901760
        %4918 = vmatpush1.msra.mxu0 %v4917
        %4919 = vmatprep.subr.mxu0 0.0
        %v4920 = vand.u32 %v4319, 4294901760
        %4921 = vmatpush1.msra.mxu0 %v4920
        %4922 = vmatprep.subr.mxu0 0.0
        %v4923 = vand.u32 %v4318, 4294901760
        %4924 = vmatpush1.msra.mxu0 %v4923
        %4925 = vmatprep.subr.mxu0 0.0
        %v4926 = vand.u32 %v4317, 4294901760
        %4927 = vmatpush1.msra.mxu0 %v4926
        %4928 = vmatprep.subr.mxu0 0.0
        %v4929 = vand.u32 %v4316, 4294901760
        %4930 = vmatpush1.msra.mxu0 %v4929
        %4931 = vmatprep.subr.mxu0 0.0
        %v4932 = vand.u32 %v4315, 4294901760
        %4933 = vmatpush1.msra.mxu0 %v4932
        %4934 = vmatprep.subr.mxu0 0.0
        %v4935 = vand.u32 %v4314, 4294901760
        %4936 = vmatpush1.msra.mxu0 %v4935
        %4937 = vmatprep.subr.mxu0 0.0
        %v4938 = vand.u32 %v4313, 4294901760
        %4939 = vmatpush1.msra.mxu0 %v4938
        %4940 = vmatprep.subr.mxu0 0.0
        %v4941 = vand.u32 %v4312, 4294901760
        %4942 = vmatpush1.msra.mxu0 %v4941
        %4943 = vmatprep.subr.mxu0 0.0
        %v4944 = vand.u32 %v4311, 4294901760
        %4945 = vmatpush1.msra.mxu0 %v4944
        %4946 = vmatprep.subr.mxu0 0.0
        %v4947 = vand.u32 %v4310, 4294901760
        %4948 = vmatpush1.msra.mxu0 %v4947
        %4949 = vmatprep.subr.mxu0 0.0
        %v4950 = vand.u32 %v4309, 4294901760
        %4951 = vmatpush1.msra.mxu0 %v4950
        %4952 = vmatprep.subr.mxu0 0.0
        %v4953 = vand.u32 %v4308, 4294901760
        %4954 = vmatpush1.msra.mxu0 %v4953
        %4955 = vmatprep.subr.mxu0 0.0
        %v4956 = vand.u32 %v4307, 4294901760
        %4957 = vmatpush1.msra.mxu0 %v4956
        %4958 = vmatprep.subr.mxu0 0.0
        %v4959 = vand.u32 %v4306, 4294901760
        %4960 = vmatpush1.msra.mxu0 %v4959
        %4961 = vmatprep.subr.mxu0 0.0
        %4962 = vmatpush2.msra.mxu0 0.0
        %4963 = vmatprep.subr.mxu0 0.0
        %4964 = vmatpush2.msra.mxu0 0.0
        %4965 = vmatprep.subr.mxu0 0.0
        %4966 = vmatpush2.msra.mxu0 0.0
        %4967 = vmatprep.subr.mxu0 0.0
        %4968 = vmatpush2.msra.mxu0 0.0
        %4969 = vmatprep.subr.mxu0 0.0
        %4970 = vmatpush2.msra.mxu0 0.0
        %4971 = vmatprep.subr.mxu0 0.0
        %4972 = vmatpush2.msra.mxu0 0.0
        %4973 = vmatprep.subr.mxu0 0.0
        %4974 = vmatpush2.msra.mxu0 0.0
        %4975 = vmatprep.subr.mxu0 0.0
        %4976 = vmatpush2.msra.mxu0 0.0
        %4977 = vmatprep.subr.mxu0 0.0
        %4978 = vmatpush2.msra.mxu0 0.0
        %4979 = vmatprep.subr.mxu0 0.0
        %4980 = vmatpush2.msra.mxu0 0.0
        %4981 = vmatprep.subr.mxu0 0.0
        %4982 = vmatpush2.msra.mxu0 0.0
        %4983 = vmatprep.subr.mxu0 0.0
        %4984 = vmatpush2.msra.mxu0 0.0
        %4985 = vmatprep.subr.mxu0 0.0
        %4986 = vmatpush2.msra.mxu0 0.0
        %4987 = vmatprep.subr.mxu0 0.0
        %4988 = vmatpush2.msra.mxu0 0.0
        %4989 = vmatprep.subr.mxu0 0.0
        %4990 = vmatpush2.msra.mxu0 0.0
        %4991 = vmatprep.subr.mxu0 0.0
        %4992 = vmatpush2.msra.mxu0 0.0
        %4993 = vmatprep.mubr.f32.mxu0 0.0
        %v4994 = vand.u32 %v3662, 4294901760
        %4995 = vmatmul.mubr.f32.gmra.mxu0 %v4994
        %v4996 = vpop.f32.mrf.mxu0
        %v4997 = vadd.f32 %v4904, %v4996
        %v4998 = vpop.f32.mrf.mxu0
        %4999 = vmatprep.mubr.f32.mxu0 0.0
        %v5000 = vand.u32 %v4303, 4294901760
        %5001 = vmatmul.mubr.f32.gmra.mxu0 %v5000
        %v5002 = vpop.f32.mrf.mxu0
        %v5003 = vadd.f32 %v4910, %v5002
        %v5004 = vpop.f32.mrf.mxu0
        %5005 = vdwg.mxu0
        %v5006 = vtanh.pop %v4997
        %v5007 = vtanh.pop %v5003
        %5008 = vst [vmem:[%s267] sm:$0xff] %v5006
        %5009 = vst [vmem:[%s267 + $0x8] sm:$0xff] %v5007
        %5010 = vst [vmem:[%s274] sm:$0xff] %v3021
        %5011 = vst [vmem:[%s274 + $0x8] sm:$0xff] %v3023
        %s5012 = sand.u32 %s147, 1
        %s5013 = scalar_lea.sflag [#allocation3], %s5012
        %s5014 = sand.u32 %s147, 1
        %s5015 = smul.addr %s5014, 16
        %s5016 = scalar_lea.vmem [#allocation2], %s5015
        %s5017 = sand.u32 %s173, 1
        %s5018 = scalar_lea.sflag [#allocation5], %s5017
        %s5019 = sand.u32 %s173, 1
        %s5020 = smul.addr %s5019, 16
        %s5021 = scalar_lea.vmem [#allocation4], %s5020
        // Predicated region
        $region41: #{attention_forward.1} parent=39 // pred_check
          %p5022 = pneg %p157
        $region42: #{attention_forward.1} parent=39 // pred_check_branch
          %5024 = sbr.rel (%p5022) target = $region44
        $region43: #{attention_forward.1} parent=39 // pred_region
          %s5025 = smul.u32 2, %s24
          %s5027 = ssub.s32 256, 256
          %5028 = vsyncadd %s5013, %s5027
          %s5029 = smul.addr %s5025, 128
          %s5030 = scalar_lea.hbm %s5, %s5029
          %s5031 = sshll.u32 %s5016, 4
          %s5032 = int_to_ptr.vmem [resolvable:$true] %s5031
          %5037 = dma.vmem_to_hbm [thread:$0]  %s5032, 256, %s5030, %s5013, 128, 128, 8
        $region44: #{attention_forward.1} parent=39 // pred_fallthru
          _
        // Predicated region
        $region45: #{attention_forward.1} parent=39 // pred_check
          %p5038 = pneg %p183
        $region46: #{attention_forward.1} parent=39 // pred_check_branch
          %5040 = sbr.rel (%p5038) target = $region48
        $region47: #{attention_forward.1} parent=39 // pred_region
          %s5041 = smul.u32 2, %s24
          %s5043 = ssub.s32 256, 256
          %5044 = vsyncadd %s5018, %s5043
          %s5045 = smul.addr %s5041, 128
          %s5046 = scalar_lea.hbm %s6, %s5045
          %s5047 = sshll.u32 %s5021, 4
          %s5048 = int_to_ptr.vmem [resolvable:$true] %s5047
          %5053 = dma.vmem_to_hbm [thread:$0]  %s5048, 256, %s5046, %s5018, 128, 128, 8
        $region48: #{attention_forward.1} parent=39 // pred_fallthru
          _
      $region40: #{attention_forward.1} parent=5 // pred_fallthru
        _
      %p5054 = scmp.le.s32.totalorder 2, %s19
      // Predicated region
      $region49: #{attention_forward.1} parent=5 // pred_check
        %p5055 = pneg %p5054
      $region50: #{attention_forward.1} parent=5 // pred_check_branch
        %5057 = sbr.rel (%p5055) target = $region52
      $region51: #{attention_forward.1} parent=5 // pred_region
        %s5058 = ssub.s32 %s19, 2
        // Predicated region
        $region53: #{attention_forward.1} parent=51 // pred_check
          %p5059 = pneg %p163
        $region54: #{attention_forward.1} parent=51 // pred_check_branch
          %5061 = sbr.rel (%p5059) target = $region56
        $region55: #{attention_forward.1} parent=51 // pred_region
          %s5062 = sand.u32 %s148, 1
          %s5063 = scalar_lea.sflag [#allocation3], %s5062
          %s5064 = sand.u32 %s148, 1
          %s5065 = smul.addr %s5064, 16
          %s5066 = scalar_lea.vmem [#allocation2], %s5065
          %5067 = dma.done %s5063, 256
        $region56: #{attention_forward.1} parent=51 // pred_fallthru
          _
        // Predicated region
        $region57: #{attention_forward.1} parent=51 // pred_check
          %p5068 = pneg %p189
        $region58: #{attention_forward.1} parent=51 // pred_check_branch
          %5070 = sbr.rel (%p5068) target = $region60
        $region59: #{attention_forward.1} parent=51 // pred_region
          %s5071 = sand.u32 %s174, 1
          %s5072 = scalar_lea.sflag [#allocation5], %s5071
          %s5073 = sand.u32 %s174, 1
          %s5074 = smul.addr %s5073, 16
          %s5075 = scalar_lea.vmem [#allocation4], %s5074
          %5076 = dma.done %s5072, 256
        $region60: #{attention_forward.1} parent=51 // pred_fallthru
          _
      $region52: #{attention_forward.1} parent=5 // pred_fallthru
        _
    $region6: #{attention_forward.1} parent=1 // loop_footer
      %s23 = sadd.s32 1, %s19
    $region7: #{attention_forward.1} parent=1 // loop_footer_branch
      %18 = sbr.rel target = $region3
    $region8: #{attention_forward.1} parent=1 // loop_exit
      _
    %5077 = vsyncpa [#allocation3], 1
    %s5078 = scalar_lea.sflag [#allocation3], 1
    %5079 = vsyncpa %s5078, 1
    %5080 = vsyncpa [#allocation5], 1
    %s5081 = scalar_lea.sflag [#allocation5], 1
    %5082 = vsyncpa %s5081, 1

</llo_original>
